<compile_context>
chip_gen: v6e
topology: v6e:2x2x1
jax: 0.10.0
libtpu: 0.0.40
codegen_flags: <defaults>
</compile_context>

<pallas_src>
import functools

import jax
import jax.numpy as jnp
from jax.experimental import pallas as pl
from jax.experimental.pallas import tpu as pltpu

_LANES = 128
_SUBLANES = 8
_VMEM_LIMIT = 32 * 1024 * 1024  # fits v7x (64 MiB physical) and v5e/v6e scoped VMEM


# -----------------------------------------------------------------------------
# small helpers
# -----------------------------------------------------------------------------
def _round_up(x, m):
    return ((x + m - 1) // m) * m


def _choose_tile(m, max_tile):
    # Multiple of the 8-row sublane, capped so double-buffered tiles stay small.
    return min(max_tile, _round_up(m, _SUBLANES))


def _pad_axis(a, axis, target):
    pads = [(0, 0)] * a.ndim
    pads[axis] = (0, target - a.shape[axis])
    return jnp.pad(a, pads)


def _pad2(a, rows, cols):
    return jnp.pad(a, ((0, rows - a.shape[0]), (0, cols - a.shape[1])))


# -----------------------------------------------------------------------------
# in-kernel helpers
# -----------------------------------------------------------------------------
def _accumulate_stats(conv, stats_ref):
    # row 0: per-channel sum, row 1: per-channel sum of squares (f32).
    stats_ref[0:1, :] += jnp.sum(conv, axis=0, keepdims=True)
    stats_ref[1:2, :] += jnp.sum(conv * conv, axis=0, keepdims=True)


def _mask_rows(y, tile_m, m_true):
    row = pl.program_id(0) * tile_m + jax.lax.broadcasted_iota(jnp.int32, y.shape, 0)
    return jnp.where(row < m_true, y, 0.0)


# -----------------------------------------------------------------------------
# Pallas kernels
# -----------------------------------------------------------------------------
def pw_conv_stats_kernel(x_ref, w_ref, conv_ref, stats_ref):
    """1x1 conv as GEMM (bf16 operands, f32 accumulate) + BN stat accumulation."""
    @pl.when(pl.program_id(0) == 0)
    def _init():
        stats_ref[...] = jnp.zeros_like(stats_ref)

    conv = jnp.dot(x_ref[...], w_ref[...], preferred_element_type=jnp.float32)
    conv_ref[...] = conv
    _accumulate_stats(conv, stats_ref)


def dw_conv_stats_kernel(taps_ref, w_ref, conv_ref, stats_ref):
    """3x3 depthwise conv: weighted sum of 9 taps per channel (VPU, f32) + stats."""
    @pl.when(pl.program_id(0) == 0)
    def _init():
        stats_ref[...] = jnp.zeros_like(stats_ref)

    w = w_ref[...]                      # (9, 1, CP) f32
    acc = taps_ref[0] * w[0]            # (tile_m, CP)
    for k in range(1, 9):
        acc = acc + taps_ref[k] * w[k]
    conv_ref[...] = acc
    _accumulate_stats(acc, stats_ref)


def bn_relu6_pw_conv_stats_kernel(conv_in_ref, scale_ref, bias_ref, w_ref,
                                  conv_ref, stats_ref, *, tile_m, m_true, mask_rows):
    """Fused: BN affine + ReLU6 of the previous conv tile, then 1x1 projection GEMM + stats."""
    @pl.when(pl.program_id(0) == 0)
    def _init():
        stats_ref[...] = jnp.zeros_like(stats_ref)

    act = jnp.clip(conv_in_ref[...] * scale_ref[...] + bias_ref[...], 0.0, 6.0)
    if mask_rows:  # keep zero-padded rows exactly zero so they don't bias stats
        act = _mask_rows(act, tile_m, m_true)
    conv = jnp.dot(act.astype(jnp.bfloat16), w_ref[...],
                   preferred_element_type=jnp.float32)
    conv_ref[...] = conv
    _accumulate_stats(conv, stats_ref)


def bn_act_kernel(conv_ref, scale_ref, bias_ref, out_ref, *,
                  relu6, tile_m, m_true, mask_rows):
    y = conv_ref[...] * scale_ref[...] + bias_ref[...]
    if relu6:
        y = jnp.clip(y, 0.0, 6.0)
    if mask_rows:
        y = _mask_rows(y, tile_m, m_true)
    out_ref[...] = y


def bn_act_res_kernel(conv_ref, scale_ref, bias_ref, res_ref, out_ref, *,
                      tile_m, m_true, mask_rows):
    y = conv_ref[...] * scale_ref[...] + bias_ref[...] + res_ref[...]
    if mask_rows:
        y = _mask_rows(y, tile_m, m_true)
    out_ref[...] = y


# -----------------------------------------------------------------------------
# pallas_call wrappers
# -----------------------------------------------------------------------------
def _stats_compiler_params():
    return pltpu.CompilerParams(dimension_semantics=("arbitrary",),
                                vmem_limit_bytes=_VMEM_LIMIT)


def _parallel_compiler_params():
    return pltpu.CompilerParams(dimension_semantics=("parallel",),
                                vmem_limit_bytes=_VMEM_LIMIT)


def _pw_conv_stats(x2d, w2d, tile_m):
    m_pad, cpi = x2d.shape
    cpo = w2d.shape[1]
    return pl.pallas_call(
        pw_conv_stats_kernel,
        out_shape=(jax.ShapeDtypeStruct((m_pad, cpo), jnp.float32),
                   jax.ShapeDtypeStruct((8, cpo), jnp.float32)),
        grid=(m_pad // tile_m,),
        in_specs=[pl.BlockSpec((tile_m, cpi), lambda i: (i, 0)),
                  pl.BlockSpec((cpi, cpo), lambda i: (0, 0))],
        out_specs=(pl.BlockSpec((tile_m, cpo), lambda i: (i, 0)),
                   pl.BlockSpec((8, cpo), lambda i: (0, 0))),
        compiler_params=_stats_compiler_params(),
    )(x2d, w2d)


def _dw_conv_stats(taps, w_dw, tile_m):
    _, m_pad, cp = taps.shape
    return pl.pallas_call(
        dw_conv_stats_kernel,
        out_shape=(jax.ShapeDtypeStruct((m_pad, cp), jnp.float32),
                   jax.ShapeDtypeStruct((8, cp), jnp.float32)),
        grid=(m_pad // tile_m,),
        in_specs=[pl.BlockSpec((9, tile_m, cp), lambda i: (0, i, 0)),
                  pl.BlockSpec((9, 1, cp), lambda i: (0, 0, 0))],
        out_specs=(pl.BlockSpec((tile_m, cp), lambda i: (i, 0)),
                   pl.BlockSpec((8, cp), lambda i: (0, 0))),
        compiler_params=_stats_compiler_params(),
    )(taps, w_dw)


def _bn_relu6_pw_conv_stats(conv_in, scale, bias, w2d, tile_m, *, m_true):
    m_pad, cpi = conv_in.shape
    cpo = w2d.shape[1]
    kern = functools.partial(bn_relu6_pw_conv_stats_kernel, tile_m=tile_m,
                             m_true=m_true, mask_rows=(m_pad != m_true))
    return pl.pallas_call(
        kern,
        out_shape=(jax.ShapeDtypeStruct((m_pad, cpo), jnp.float32),
                   jax.ShapeDtypeStruct((8, cpo), jnp.float32)),
        grid=(m_pad // tile_m,),
        in_specs=[pl.BlockSpec((tile_m, cpi), lambda i: (i, 0)),
                  pl.BlockSpec((1, cpi), lambda i: (0, 0)),
                  pl.BlockSpec((1, cpi), lambda i: (0, 0)),
                  pl.BlockSpec((cpi, cpo), lambda i: (0, 0))],
        out_specs=(pl.BlockSpec((tile_m, cpo), lambda i: (i, 0)),
                   pl.BlockSpec((8, cpo), lambda i: (0, 0))),
        compiler_params=_stats_compiler_params(),
    )(conv_in, scale, bias, w2d)


def _bn_act(conv, scale, bias, tile_m, *, relu6, m_true):
    m_pad, cp = conv.shape
    kern = functools.partial(bn_act_kernel, relu6=relu6, tile_m=tile_m,
                             m_true=m_true, mask_rows=(m_pad != m_true))
    return pl.pallas_call(
        kern,
        out_shape=jax.ShapeDtypeStruct((m_pad, cp), jnp.float32),
        grid=(m_pad // tile_m,),
        in_specs=[pl.BlockSpec((tile_m, cp), lambda i: (i, 0)),
                  pl.BlockSpec((1, cp), lambda i: (0, 0)),
                  pl.BlockSpec((1, cp), lambda i: (0, 0))],
        out_specs=pl.BlockSpec((tile_m, cp), lambda i: (i, 0)),
        compiler_params=_parallel_compiler_params(),
    )(conv, scale, bias)


def _bn_act_res(conv, scale, bias, res, tile_m, *, m_true):
    m_pad, cp = conv.shape
    kern = functools.partial(bn_act_res_kernel, tile_m=tile_m,
                             m_true=m_true, mask_rows=(m_pad != m_true))
    return pl.pallas_call(
        kern,
        out_shape=jax.ShapeDtypeStruct((m_pad, cp), jnp.float32),
        grid=(m_pad // tile_m,),
        in_specs=[pl.BlockSpec((tile_m, cp), lambda i: (i, 0)),
                  pl.BlockSpec((1, cp), lambda i: (0, 0)),
                  pl.BlockSpec((1, cp), lambda i: (0, 0)),
                  pl.BlockSpec((tile_m, cp), lambda i: (i, 0))],
        out_specs=pl.BlockSpec((tile_m, cp), lambda i: (i, 0)),
        compiler_params=_parallel_compiler_params(),
    )(conv, scale, bias, res)


# -----------------------------------------------------------------------------
# glue
# -----------------------------------------------------------------------------
def _bn_scale_bias(stats, m_true, gamma, beta, cp, eps):
    """Per-channel scale/bias from accumulated sum / sumsq (training-mode, biased var)."""
    s, sq = stats[0], stats[1]
    mean = s / m_true
    var = jnp.maximum(sq / m_true - mean * mean, 0.0)
    inv = jax.lax.rsqrt(var + eps)
    scale = _pad_axis(gamma.astype(jnp.float32), 0, cp) * inv
    bias = _pad_axis(beta.astype(jnp.float32), 0, cp) - mean * scale
    return scale.reshape(1, cp), bias.reshape(1, cp)


def _dw_taps(x_nhwc, stride):
    """Stacked-tap layout (9, N*OH*OW, C) for the 3x3 depthwise conv (pad=1)."""
    n, h, w, cp = x_nhwc.shape
    xp = jnp.pad(x_nhwc, ((0, 0), (1, 1), (1, 1), (0, 0)))
    oh = (h + 2 - 3) // stride + 1
    ow = (w + 2 - 3) // stride + 1
    cols = []
    for kh in range(3):
        for kw in range(3):
            cols.append(xp[:, kh:kh + stride * oh:stride,
                           kw:kw + stride * ow:stride, :])
    taps = jnp.stack(cols, axis=0).reshape(9, n * oh * ow, cp)
    return taps, oh, ow


# -----------------------------------------------------------------------------
# Bottleneck forward
# -----------------------------------------------------------------------------
def bottleneck_forward(x, params, *, t_factor, stride, out_chan,
                       eps=1e-5, max_tile_m=256):
    """x: (N, Cin, H, W) f32 (PyTorch NCHW). Returns (N, Cout, OH, OW) f32."""
    n, cin, h, w = x.shape
    cexp = cin * t_factor
    cpexp = _round_up(cexp, _LANES)
    cpout = _round_up(out_chan, _LANES)

    # NCHW -> NHWC so the channel dim is lane-dense inside the kernels.
    x_nhwc = jnp.transpose(x, (0, 2, 3, 1)).astype(jnp.float32)

    # ---- stage 1: 1x1 expansion conv + BN(batch stats) + ReLU6 (skipped if t==1)
    if t_factor != 1:
        cpin = _round_up(cin, _LANES)
        m1 = n * h * w
        tile1 = _choose_tile(m1, max_tile_m)
        m1_pad = _round_up(m1, tile1)
        x2d = _pad2(x_nhwc.reshape(m1, cin), m1_pad, cpin).astype(jnp.bfloat16)
        w_pw = _pad2(params["w_pw"].reshape(cexp, cin).T,
                     cpin, cpexp).astype(jnp.bfloat16)
        conv1, st1 = _pw_conv_stats(x2d, w_pw, tile1)
        sc1, bi1 = _bn_scale_bias(st1, m1, params["g_pw"], params["b_pw"], cpexp, eps)
        act1 = _bn_act(conv1, sc1, bi1, tile1, relu6=True, m_true=m1)
        act1_nhwc = act1[:m1].reshape(n, h, w, cpexp)
    else:
        act1_nhwc = _pad_axis(x_nhwc, 3, cpexp)

    # ---- stage 2: 3x3 depthwise conv (stride s, pad 1) -> conv tiles + batch stats
    taps, oh, ow = _dw_taps(act1_nhwc, stride)
    m2 = n * oh * ow
    tile2 = _choose_tile(m2, max_tile_m)
    m2_pad = _round_up(m2, tile2)
    taps = _pad_axis(taps, 1, m2_pad)
    w_dw = _pad_axis(
        jnp.transpose(params["w_dw"][:, 0, :, :], (1, 2, 0)).reshape(9, 1, cexp),
        2, cpexp).astype(jnp.float32)
    conv2, st2 = _dw_conv_stats(taps, w_dw, tile2)
    sc2, bi2 = _bn_scale_bias(st2, m2, params["g_dw"], params["b_dw"], cpexp, eps)

    # ---- stage 3: fused [dw BN + ReLU6] + 1x1 projection conv + batch stats
    w_po = _pad2(params["w_po"].reshape(out_chan, cexp).T,
                 cpexp, cpout).astype(jnp.bfloat16)
    conv3, st3 = _bn_relu6_pw_conv_stats(conv2, sc2, bi2, w_po, tile2, m_true=m2)
    sc3, bi3 = _bn_scale_bias(st3, m2, params["g_po"], params["b_po"], cpout, eps)

    # ---- final: BN affine (+ residual when cin==cout and stride==1), no activation
    if cin == out_chan and stride == 1:
        res2d = _pad2(x_nhwc.reshape(n * h * w, cin), m2_pad, cpout)
        out2d = _bn_act_res(conv3, sc3, bi3, res2d, tile2, m_true=m2)
    else:
        out2d = _bn_act(conv3, sc3, bi3, tile2, relu6=False, m_true=m2)

    out = out2d[:m2, :out_chan].reshape(n, oh, ow, out_chan)
    return jnp.transpose(out, (0, 3, 1, 2))


# -----------------------------------------------------------------------------
# Pure-JAX reference (mirrors the module; bf16 operands only for the 1x1 GEMMs,
# matching the kernel's MXU precision choice).
# -----------------------------------------------------------------------------
def bottleneck_ref(x, params, *, t_factor, stride, out_chan, eps=1e-5):
    n, cin, h, w = x.shape
    cexp = cin * t_factor

    def bn(v, g, b):
        mean = jnp.mean(v, axis=(0, 2, 3), keepdims=True)
        var = jnp.mean(jnp.square(v - mean), axis=(0, 2, 3), keepdims=True)
        return ((v - mean) * jax.lax.rsqrt(var + eps)
                * g.reshape(1, -1, 1, 1) + b.reshape(1, -1, 1, 1))

    hcur = x
    if t_factor != 1:
        c = jax.lax.conv_general_dilated(
            hcur.astype(jnp.bfloat16), params["w_pw"].astype(jnp.bfloat16),
            window_strides=(1, 1), padding=[(0, 0), (0, 0)],
            dimension_numbers=("NCHW", "OIHW", "NCHW"),
            preferred_element_type=jnp.float32)
        hcur = jnp.clip(bn(c, params["g_pw"], params["b_pw"]), 0.0, 6.0)
    c = jax.lax.conv_general_dilated(
        hcur, params["w_dw"], window_strides=(stride, stride),
        padding=[(1, 1), (1, 1)], dimension_numbers=("NCHW", "OIHW", "NCHW"),
        feature_group_count=cexp, preferred_element_type=jnp.float32)
    hcur = jnp.clip(bn(c, params["g_dw"], params["b_dw"]), 0.0, 6.0)
    c = jax.lax.conv_general_dilated(
        hcur.astype(jnp.bfloat16), params["w_po"].astype(jnp.bfloat16),
        window_strides=(1, 1), padding=[(0, 0), (0, 0)],
        dimension_numbers=("NCHW", "OIHW", "NCHW"),
        preferred_element_type=jnp.float32)
    out = bn(c, params["g_po"], params["b_po"])
    if cin == out_chan and stride == 1:
        out = out + x
    return out


def make_params(key, cin, t_factor, out_chan):
    cexp = cin * t_factor
    ks = jax.random.split(key, 9)
    p = {}
    if t_factor != 1:
        p["w_pw"] = 0.3 * jax.random.normal(ks[0], (cexp, cin, 1, 1), jnp.float32)
        p["g_pw"] = jax.random.uniform(ks[1], (cexp,), jnp.float32, 0.5, 1.5)
        p["b_pw"] = 0.1 * jax.random.normal(ks[2], (cexp,), jnp.float32)
    p["w_dw"] = 0.3 * jax.random.normal(ks[3], (cexp, 1, 3, 3), jnp.float32)
    p["g_dw"] = jax.random.uniform(ks[4], (cexp,), jnp.float32, 0.5, 1.5)
    p["b_dw"] = 0.1 * jax.random.normal(ks[5], (cexp,), jnp.float32)
    p["w_po"] = 0.3 * jax.random.normal(ks[6], (out_chan, cexp, 1, 1), jnp.float32)
    p["g_po"] = jax.random.uniform(ks[7], (out_chan,), jnp.float32, 0.5, 1.5)
    p["b_po"] = 0.1 * jax.random.normal(ks[8], (out_chan,), jnp.float32)
    return p


if __name__ == "__main__":
    key = jax.random.PRNGKey(0)
    k1, k2, k3, k4 = jax.random.split(key, 4)

    # Config 1: expansion (t=6) + residual (cin==cout, stride=1)
    n, cin, hh, ww, t, cout, s = 2, 4, 16, 16, 6, 4, 1
    x1 = jax.random.normal(k1, (n, cin, hh, ww), jnp.float32)
    p1 = make_params(k2, cin, t, cout)
    fwd1 = jax.jit(functools.partial(bottleneck_forward,
                                     t_factor=t, stride=s, out_chan=cout))
    out1 = jax.block_until_ready(fwd1(x1, p1))
    ref1 = bottleneck_ref(x1, p1, t_factor=t, stride=s, out_chan=cout)
    assert out1.shape == (n, cout, hh, ww), out1.shape
    assert jnp.allclose(out1, ref1, atol=2e-2, rtol=2e-2), \
        float(jnp.max(jnp.abs(out1 - ref1)))

    # Config 2: t=1 (no expansion), strided depthwise, no residual, partial M tile
    n, cin, hh, ww, t, cout, s = 2, 4, 9, 9, 1, 8, 2
    x2 = jax.random.normal(k3, (n, cin, hh, ww), jnp.float32)
    p2 = make_params(k4, cin, t, cout)
    fwd2 = jax.jit(functools.partial(bottleneck_forward,
                                     t_factor=t, stride=s, out_chan=cout))
    out2 = jax.block_until_ready(fwd2(x2, p2))
    ref2 = bottleneck_ref(x2, p2, t_factor=t, stride=s, out_chan=cout)
    oh = (hh + 2 - 3) // s + 1
    assert out2.shape == (n, cout, oh, oh), out2.shape
    assert jnp.allclose(out2, ref2, atol=2e-2, rtol=2e-2), \
        float(jnp.max(jnp.abs(out2 - ref2)))

    print("KERNEL_OK")
</pallas_src>

<mosaic_0001>
module attributes {stable_mosaic.version = 11 : i64} {
  func.func @pw_conv_stats_kernel(%arg0: i32, %arg1: memref<256x128xbf16, #tpu.memory_space<vmem>>, %arg2: memref<128x128xbf16, #tpu.memory_space<vmem>>, %arg3: memref<256x128xf32, #tpu.memory_space<vmem>>, %arg4: memref<8x128xf32, #tpu.memory_space<vmem>>) attributes {dimension_semantics = [#tpu.dimension_semantics<arbitrary>], iteration_bounds = array<i64: 2>, scalar_prefetch = 0 : i64, scratch_operands = 0 : i64, tpu.core_type = #tpu.core_type<tc>, window_params = [{transform_indices = @transform_0, window_bounds = array<i64: 256, 128>}, {pipeline_mode = #tpu.pipeline_mode<synchronous>, transform_indices = @transform_1, window_bounds = array<i64: 128, 128>}, {transform_indices = @transform_2, window_bounds = array<i64: 256, 128>}, {pipeline_mode = #tpu.pipeline_mode<synchronous>, transform_indices = @transform_3, window_bounds = array<i64: 8, 128>}]} {
    %c0_i32 = arith.constant 0 : i32
    %0 = arith.cmpi eq, %arg0, %c0_i32 : i32
    %1 = arith.extui %0 : i1 to i32
    %c0_i32_0 = arith.constant 0 : i32
    %2 = arith.cmpi ne, %1, %c0_i32_0 : i32
    scf.if %2 {
      %cst_15 = arith.constant 0.000000e+00 : f32
      %18 = vector.broadcast %cst_15 : f32 to vector<8x128xf32>
      %c0_16 = arith.constant 0 : index
      %c0_17 = arith.constant 0 : index
      %19 = vector.load %arg4[%c0_16, %c0_17] : memref<8x128xf32, #tpu.memory_space<vmem>>, vector<8x128xf32>
      tpu.vector_store %arg4[%c0_16, %c0_17], %18 {strides = array<i32>} : memref<8x128xf32, #tpu.memory_space<vmem>>, vector<8x128xf32>,
    } else {
    }
    %c0 = arith.constant 0 : index
    %c0_1 = arith.constant 0 : index
    %3 = vector.load %arg1[%c0, %c0_1] : memref<256x128xbf16, #tpu.memory_space<vmem>>, vector<256x128xbf16>
    %c0_2 = arith.constant 0 : index
    %c0_3 = arith.constant 0 : index
    %4 = vector.load %arg2[%c0_2, %c0_3] : memref<128x128xbf16, #tpu.memory_space<vmem>>, vector<128x128xbf16>
    %cst = arith.constant dense<0.000000e+00> : vector<256x128xf32>
    %5 = tpu.matmul %3, %4, %cst {dimension_numbers = #tpu.dot_dimension_numbers<[1], [0], [0], [1], [0, 0, 1, 1], [], []>} : vector<256x128xbf16>, vector<128x128xbf16>, vector<256x128xf32> -> vector<256x128xf32>
    %c0_4 = arith.constant 0 : index
    %c0_5 = arith.constant 0 : index
    %6 = vector.load %arg3[%c0_4, %c0_5] : memref<256x128xf32, #tpu.memory_space<vmem>>, vector<256x128xf32>
    tpu.vector_store %arg3[%c0_4, %c0_5], %5 {strides = array<i32>} : memref<256x128xf32, #tpu.memory_space<vmem>>, vector<256x128xf32>,
    %c0_6 = arith.constant 0 : index
    %c0_7 = arith.constant 0 : index
    %7 = vector.load %arg4[%c0_6, %c0_7] : memref<8x128xf32, #tpu.memory_space<vmem>>, vector<1x128xf32>
    %cst_8 = arith.constant dense<0.000000e+00> : vector<128xf32>
    %8 = vector.multi_reduction <add>, %5, %cst_8 [0] : vector<256x128xf32> to vector<128xf32>
    %9 = vector.shape_cast %8 : vector<128xf32> to vector<1x128xf32>
    %10 = arith.addf %7, %9 : vector<1x128xf32>
    %c0_9 = arith.constant 0 : index
    %c0_10 = arith.constant 0 : index
    %11 = vector.load %arg4[%c0_9, %c0_10] : memref<8x128xf32, #tpu.memory_space<vmem>>, vector<1x128xf32>
    tpu.vector_store %arg4[%c0_9, %c0_10], %10 {strides = array<i32>} : memref<8x128xf32, #tpu.memory_space<vmem>>, vector<1x128xf32>,
    %c1 = arith.constant 1 : index
    %c0_11 = arith.constant 0 : index
    %12 = vector.load %arg4[%c1, %c0_11] : memref<8x128xf32, #tpu.memory_space<vmem>>, vector<1x128xf32>
    %13 = arith.mulf %5, %5 : vector<256x128xf32>
    %cst_12 = arith.constant dense<0.000000e+00> : vector<128xf32>
    %14 = vector.multi_reduction <add>, %13, %cst_12 [0] : vector<256x128xf32> to vector<128xf32>
    %15 = vector.shape_cast %14 : vector<128xf32> to vector<1x128xf32>
    %16 = arith.addf %12, %15 : vector<1x128xf32>
    %c1_13 = arith.constant 1 : index
    %c0_14 = arith.constant 0 : index
    %17 = vector.load %arg4[%c1_13, %c0_14] : memref<8x128xf32, #tpu.memory_space<vmem>>, vector<1x128xf32>
    tpu.vector_store %arg4[%c1_13, %c0_14], %16 {strides = array<i32>} : memref<8x128xf32, #tpu.memory_space<vmem>>, vector<1x128xf32>,
    return
  }
  func.func @transform_0(%arg0: i32) -> (i32, i32) {
    %c0_i32 = arith.constant 0 : i32
    %c0_i32_0 = arith.constant 0 : i32
    return %arg0, %c0_i32 : i32, i32
  }
  func.func @transform_1(%arg0: i32) -> (i32, i32) {
    %c0_i32 = arith.constant 0 : i32
    %c0_i32_0 = arith.constant 0 : i32
    %c0_i32_1 = arith.constant 0 : i32
    return %c0_i32, %c0_i32_0 : i32, i32
  }
  func.func @transform_2(%arg0: i32) -> (i32, i32) {
    %c0_i32 = arith.constant 0 : i32
    %c0_i32_0 = arith.constant 0 : i32
    return %arg0, %c0_i32 : i32, i32
  }
  func.func @transform_3(%arg0: i32) -> (i32, i32) {
    %c0_i32 = arith.constant 0 : i32
    %c0_i32_0 = arith.constant 0 : i32
    %c0_i32_1 = arith.constant 0 : i32
    return %c0_i32, %c0_i32_0 : i32, i32
  }
}

module attributes {stable_mosaic.version = 11 : i64} {
  func.func @bn_act_kernel(%arg0: i32, %arg1: memref<256x128xf32, #tpu.memory_space<vmem>>, %arg2: memref<1x128xf32, #tpu.memory_space<vmem>>, %arg3: memref<1x128xf32, #tpu.memory_space<vmem>>, %arg4: memref<256x128xf32, #tpu.memory_space<vmem>>) attributes {dimension_semantics = [#tpu.dimension_semantics<parallel>], iteration_bounds = array<i64: 2>, scalar_prefetch = 0 : i64, scratch_operands = 0 : i64, tpu.core_type = #tpu.core_type<tc>, window_params = [{transform_indices = @transform_0, window_bounds = array<i64: 256, 128>}, {pipeline_mode = #tpu.pipeline_mode<synchronous>, transform_indices = @transform_1, window_bounds = array<i64: 1, 128>}, {pipeline_mode = #tpu.pipeline_mode<synchronous>, transform_indices = @transform_2, window_bounds = array<i64: 1, 128>}, {transform_indices = @transform_3, window_bounds = array<i64: 256, 128>}]} {
    %c0 = arith.constant 0 : index
    %c0_0 = arith.constant 0 : index
    %0 = vector.load %arg1[%c0, %c0_0] : memref<256x128xf32, #tpu.memory_space<vmem>>, vector<256x128xf32>
    %c0_1 = arith.constant 0 : index
    %c0_2 = arith.constant 0 : index
    %1 = vector.load %arg2[%c0_1, %c0_2] : memref<1x128xf32, #tpu.memory_space<vmem>>, vector<1x128xf32>
    %2 = vector.broadcast %1 : vector<1x128xf32> to vector<256x128xf32>
    %3 = arith.mulf %0, %2 : vector<256x128xf32>
    %c0_3 = arith.constant 0 : index
    %c0_4 = arith.constant 0 : index
    %4 = vector.load %arg3[%c0_3, %c0_4] : memref<1x128xf32, #tpu.memory_space<vmem>>, vector<1x128xf32>
    %5 = vector.broadcast %4 : vector<1x128xf32> to vector<256x128xf32>
    %6 = arith.addf %3, %5 : vector<256x128xf32>
    %cst = arith.constant 0.000000e+00 : f32
    %cst_5 = arith.constant 6.000000e+00 : f32
    %7 = vector.broadcast %cst : f32 to vector<256x128xf32>
    %8 = arith.maximumf %7, %6 : vector<256x128xf32>
    %9 = vector.broadcast %cst_5 : f32 to vector<256x128xf32>
    %10 = arith.minimumf %9, %8 : vector<256x128xf32>
    %c0_6 = arith.constant 0 : index
    %c0_7 = arith.constant 0 : index
    %11 = vector.load %arg4[%c0_6, %c0_7] : memref<256x128xf32, #tpu.memory_space<vmem>>, vector<256x128xf32>
    tpu.vector_store %arg4[%c0_6, %c0_7], %10 {strides = array<i32>} : memref<256x128xf32, #tpu.memory_space<vmem>>, vector<256x128xf32>,
    return
  }
  func.func @transform_0(%arg0: i32) -> (i32, i32) {
    %c0_i32 = arith.constant 0 : i32
    %c0_i32_0 = arith.constant 0 : i32
    return %arg0, %c0_i32 : i32, i32
  }
  func.func @transform_1(%arg0: i32) -> (i32, i32) {
    %c0_i32 = arith.constant 0 : i32
    %c0_i32_0 = arith.constant 0 : i32
    %c0_i32_1 = arith.constant 0 : i32
    return %c0_i32, %c0_i32_0 : i32, i32
  }
  func.func @transform_2(%arg0: i32) -> (i32, i32) {
    %c0_i32 = arith.constant 0 : i32
    %c0_i32_0 = arith.constant 0 : i32
    %c0_i32_1 = arith.constant 0 : i32
    return %c0_i32, %c0_i32_0 : i32, i32
  }
  func.func @transform_3(%arg0: i32) -> (i32, i32) {
    %c0_i32 = arith.constant 0 : i32
    %c0_i32_0 = arith.constant 0 : i32
    return %arg0, %c0_i32 : i32, i32
  }
}

module attributes {stable_mosaic.version = 11 : i64} {
  func.func @dw_conv_stats_kernel(%arg0: i32, %arg1: memref<9x256x128xf32, #tpu.memory_space<vmem>>, %arg2: memref<9x1x128xf32, #tpu.memory_space<vmem>>, %arg3: memref<256x128xf32, #tpu.memory_space<vmem>>, %arg4: memref<8x128xf32, #tpu.memory_space<vmem>>) attributes {dimension_semantics = [#tpu.dimension_semantics<arbitrary>], iteration_bounds = array<i64: 2>, scalar_prefetch = 0 : i64, scratch_operands = 0 : i64, tpu.core_type = #tpu.core_type<tc>, window_params = [{transform_indices = @transform_0, window_bounds = array<i64: 9, 256, 128>}, {pipeline_mode = #tpu.pipeline_mode<synchronous>, transform_indices = @transform_1, window_bounds = array<i64: 9, 1, 128>}, {transform_indices = @transform_2, window_bounds = array<i64: 256, 128>}, {pipeline_mode = #tpu.pipeline_mode<synchronous>, transform_indices = @transform_3, window_bounds = array<i64: 8, 128>}]} {
    %c0_i32 = arith.constant 0 : i32
    %0 = arith.cmpi eq, %arg0, %c0_i32 : i32
    %1 = arith.extui %0 : i1 to i32
    %c0_i32_0 = arith.constant 0 : i32
    %2 = arith.cmpi ne, %1, %c0_i32_0 : i32
    scf.if %2 {
      %cst_33 = arith.constant 0.000000e+00 : f32
      %78 = vector.broadcast %cst_33 : f32 to vector<8x128xf32>
      %c0_34 = arith.constant 0 : index
      %c0_35 = arith.constant 0 : index
      %79 = vector.load %arg4[%c0_34, %c0_35] : memref<8x128xf32, #tpu.memory_space<vmem>>, vector<8x128xf32>
      tpu.vector_store %arg4[%c0_34, %c0_35], %78 {strides = array<i32>} : memref<8x128xf32, #tpu.memory_space<vmem>>, vector<8x128xf32>,
    } else {
    }
    %c0 = arith.constant 0 : index
    %c0_1 = arith.constant 0 : index
    %c0_2 = arith.constant 0 : index
    %3 = vector.load %arg2[%c0, %c0_1, %c0_2] : memref<9x1x128xf32, #tpu.memory_space<vmem>>, vector<9x1x128xf32>
    %c0_3 = arith.constant 0 : index
    %c0_4 = arith.constant 0 : index
    %c0_5 = arith.constant 0 : index
    %4 = vector.load %arg1[%c0_3, %c0_4, %c0_5] : memref<9x256x128xf32, #tpu.memory_space<vmem>>, vector<1x256x128xf32>
    %5 = vector.shape_cast %4 : vector<1x256x128xf32> to vector<256x128xf32>
    %6 = vector.extract_strided_slice %3 {offsets = [0, 0, 0], sizes = [1, 1, 128], strides = [1, 1, 1]} : vector<9x1x128xf32> to vector<1x1x128xf32>
    %7 = vector.shape_cast %6 : vector<1x1x128xf32> to vector<1x128xf32>
    %8 = vector.broadcast %7 : vector<1x128xf32> to vector<256x128xf32>
    %9 = arith.mulf %5, %8 : vector<256x128xf32>
    %c1 = arith.constant 1 : index
    %c0_6 = arith.constant 0 : index
    %c0_7 = arith.constant 0 : index
    %10 = vector.load %arg1[%c1, %c0_6, %c0_7] : memref<9x256x128xf32, #tpu.memory_space<vmem>>, vector<1x256x128xf32>
    %11 = vector.shape_cast %10 : vector<1x256x128xf32> to vector<256x128xf32>
    %12 = vector.extract_strided_slice %3 {offsets = [1, 0, 0], sizes = [1, 1, 128], strides = [1, 1, 1]} : vector<9x1x128xf32> to vector<1x1x128xf32>
    %13 = vector.shape_cast %12 : vector<1x1x128xf32> to vector<1x128xf32>
    %14 = vector.broadcast %13 : vector<1x128xf32> to vector<256x128xf32>
    %15 = arith.mulf %11, %14 : vector<256x128xf32>
    %16 = arith.addf %9, %15 : vector<256x128xf32>
    %c2 = arith.constant 2 : index
    %c0_8 = arith.constant 0 : index
    %c0_9 = arith.constant 0 : index
    %17 = vector.load %arg1[%c2, %c0_8, %c0_9] : memref<9x256x128xf32, #tpu.memory_space<vmem>>, vector<1x256x128xf32>
    %18 = vector.shape_cast %17 : vector<1x256x128xf32> to vector<256x128xf32>
    %19 = vector.extract_strided_slice %3 {offsets = [2, 0, 0], sizes = [1, 1, 128], strides = [1, 1, 1]} : vector<9x1x128xf32> to vector<1x1x128xf32>
    %20 = vector.shape_cast %19 : vector<1x1x128xf32> to vector<1x128xf32>
    %21 = vector.broadcast %20 : vector<1x128xf32> to vector<256x128xf32>
    %22 = arith.mulf %18, %21 : vector<256x128xf32>
    %23 = arith.addf %16, %22 : vector<256x128xf32>
    %c3 = arith.constant 3 : index
    %c0_10 = arith.constant 0 : index
    %c0_11 = arith.constant 0 : index
    %24 = vector.load %arg1[%c3, %c0_10, %c0_11] : memref<9x256x128xf32, #tpu.memory_space<vmem>>, vector<1x256x128xf32>
    %25 = vector.shape_cast %24 : vector<1x256x128xf32> to vector<256x128xf32>
    %26 = vector.extract_strided_slice %3 {offsets = [3, 0, 0], sizes = [1, 1, 128], strides = [1, 1, 1]} : vector<9x1x128xf32> to vector<1x1x128xf32>
    %27 = vector.shape_cast %26 : vector<1x1x128xf32> to vector<1x128xf32>
    %28 = vector.broadcast %27 : vector<1x128xf32> to vector<256x128xf32>
    %29 = arith.mulf %25, %28 : vector<256x128xf32>
    %30 = arith.addf %23, %29 : vector<256x128xf32>
    %c4 = arith.constant 4 : index
    %c0_12 = arith.constant 0 : index
    %c0_13 = arith.constant 0 : index
    %31 = vector.load %arg1[%c4, %c0_12, %c0_13] : memref<9x256x128xf32, #tpu.memory_space<vmem>>, vector<1x256x128xf32>
    %32 = vector.shape_cast %31 : vector<1x256x128xf32> to vector<256x128xf32>
    %33 = vector.extract_strided_slice %3 {offsets = [4, 0, 0], sizes = [1, 1, 128], strides = [1, 1, 1]} : vector<9x1x128xf32> to vector<1x1x128xf32>
    %34 = vector.shape_cast %33 : vector<1x1x128xf32> to vector<1x128xf32>
    %35 = vector.broadcast %34 : vector<1x128xf32> to vector<256x128xf32>
    %36 = arith.mulf %32, %35 : vector<256x128xf32>
    %37 = arith.addf %30, %36 : vector<256x128xf32>
    %c5 = arith.constant 5 : index
    %c0_14 = arith.constant 0 : index
    %c0_15 = arith.constant 0 : index
    %38 = vector.load %arg1[%c5, %c0_14, %c0_15] : memref<9x256x128xf32, #tpu.memory_space<vmem>>, vector<1x256x128xf32>
    %39 = vector.shape_cast %38 : vector<1x256x128xf32> to vector<256x128xf32>
    %40 = vector.extract_strided_slice %3 {offsets = [5, 0, 0], sizes = [1, 1, 128], strides = [1, 1, 1]} : vector<9x1x128xf32> to vector<1x1x128xf32>
    %41 = vector.shape_cast %40 : vector<1x1x128xf32> to vector<1x128xf32>
    %42 = vector.broadcast %41 : vector<1x128xf32> to vector<256x128xf32>
    %43 = arith.mulf %39, %42 : vector<256x128xf32>
    %44 = arith.addf %37, %43 : vector<256x128xf32>
    %c6 = arith.constant 6 : index
    %c0_16 = arith.constant 0 : index
    %c0_17 = arith.constant 0 : index
    %45 = vector.load %arg1[%c6, %c0_16, %c0_17] : memref<9x256x128xf32, #tpu.memory_space<vmem>>, vector<1x256x128xf32>
    %46 = vector.shape_cast %45 : vector<1x256x128xf32> to vector<256x128xf32>
    %47 = vector.extract_strided_slice %3 {offsets = [6, 0, 0], sizes = [1, 1, 128], strides = [1, 1, 1]} : vector<9x1x128xf32> to vector<1x1x128xf32>
    %48 = vector.shape_cast %47 : vector<1x1x128xf32> to vector<1x128xf32>
    %49 = vector.broadcast %48 : vector<1x128xf32> to vector<256x128xf32>
    %50 = arith.mulf %46, %49 : vector<256x128xf32>
    %51 = arith.addf %44, %50 : vector<256x128xf32>
    %c7 = arith.constant 7 : index
    %c0_18 = arith.constant 0 : index
    %c0_19 = arith.constant 0 : index
    %52 = vector.load %arg1[%c7, %c0_18, %c0_19] : memref<9x256x128xf32, #tpu.memory_space<vmem>>, vector<1x256x128xf32>
    %53 = vector.shape_cast %52 : vector<1x256x128xf32> to vector<256x128xf32>
    %54 = vector.extract_strided_slice %3 {offsets = [7, 0, 0], sizes = [1, 1, 128], strides = [1, 1, 1]} : vector<9x1x128xf32> to vector<1x1x128xf32>
    %55 = vector.shape_cast %54 : vector<1x1x128xf32> to vector<1x128xf32>
    %56 = vector.broadcast %55 : vector<1x128xf32> to vector<256x128xf32>
    %57 = arith.mulf %53, %56 : vector<256x128xf32>
    %58 = arith.addf %51, %57 : vector<256x128xf32>
    %c8 = arith.constant 8 : index
    %c0_20 = arith.constant 0 : index
    %c0_21 = arith.constant 0 : index
    %59 = vector.load %arg1[%c8, %c0_20, %c0_21] : memref<9x256x128xf32, #tpu.memory_space<vmem>>, vector<1x256x128xf32>
    %60 = vector.shape_cast %59 : vector<1x256x128xf32> to vector<256x128xf32>
    %61 = vector.extract_strided_slice %3 {offsets = [8, 0, 0], sizes = [1, 1, 128], strides = [1, 1, 1]} : vector<9x1x128xf32> to vector<1x1x128xf32>
    %62 = vector.shape_cast %61 : vector<1x1x128xf32> to vector<1x128xf32>
    %63 = vector.broadcast %62 : vector<1x128xf32> to vector<256x128xf32>
    %64 = arith.mulf %60, %63 : vector<256x128xf32>
    %65 = arith.addf %58, %64 : vector<256x128xf32>
    %c0_22 = arith.constant 0 : index
    %c0_23 = arith.constant 0 : index
    %66 = vector.load %arg3[%c0_22, %c0_23] : memref<256x128xf32, #tpu.memory_space<vmem>>, vector<256x128xf32>
    tpu.vector_store %arg3[%c0_22, %c0_23], %65 {strides = array<i32>} : memref<256x128xf32, #tpu.memory_space<vmem>>, vector<256x128xf32>,
    %c0_24 = arith.constant 0 : index
    %c0_25 = arith.constant 0 : index
    %67 = vector.load %arg4[%c0_24, %c0_25] : memref<8x128xf32, #tpu.memory_space<vmem>>, vector<1x128xf32>
    %cst = arith.constant dense<0.000000e+00> : vector<128xf32>
    %68 = vector.multi_reduction <add>, %65, %cst [0] : vector<256x128xf32> to vector<128xf32>
    %69 = vector.shape_cast %68 : vector<128xf32> to vector<1x128xf32>
    %70 = arith.addf %67, %69 : vector<1x128xf32>
    %c0_26 = arith.constant 0 : index
    %c0_27 = arith.constant 0 : index
    %71 = vector.load %arg4[%c0_26, %c0_27] : memref<8x128xf32, #tpu.memory_space<vmem>>, vector<1x128xf32>
    tpu.vector_store %arg4[%c0_26, %c0_27], %70 {strides = array<i32>} : memref<8x128xf32, #tpu.memory_space<vmem>>, vector<1x128xf32>,
    %c1_28 = arith.constant 1 : index
    %c0_29 = arith.constant 0 : index
    %72 = vector.load %arg4[%c1_28, %c0_29] : memref<8x128xf32, #tpu.memory_space<vmem>>, vector<1x128xf32>
    %73 = arith.mulf %65, %65 : vector<256x128xf32>
    %cst_30 = arith.constant dense<0.000000e+00> : vector<128xf32>
    %74 = vector.multi_reduction <add>, %73, %cst_30 [0] : vector<256x128xf32> to vector<128xf32>
    %75 = vector.shape_cast %74 : vector<128xf32> to vector<1x128xf32>
    %76 = arith.addf %72, %75 : vector<1x128xf32>
    %c1_31 = arith.constant 1 : index
    %c0_32 = arith.constant 0 : index
    %77 = vector.load %arg4[%c1_31, %c0_32] : memref<8x128xf32, #tpu.memory_space<vmem>>, vector<1x128xf32>
    tpu.vector_store %arg4[%c1_31, %c0_32], %76 {strides = array<i32>} : memref<8x128xf32, #tpu.memory_space<vmem>>, vector<1x128xf32>,
    return
  }
  func.func @transform_0(%arg0: i32) -> (i32, i32, i32) {
    %c0_i32 = arith.constant 0 : i32
    %c0_i32_0 = arith.constant 0 : i32
    %c0_i32_1 = arith.constant 0 : i32
    return %c0_i32, %arg0, %c0_i32_0 : i32, i32, i32
  }
  func.func @transform_1(%arg0: i32) -> (i32, i32, i32) {
    %c0_i32 = arith.constant 0 : i32
    %c0_i32_0 = arith.constant 0 : i32
    %c0_i32_1 = arith.constant 0 : i32
    %c0_i32_2 = arith.constant 0 : i32
    return %c0_i32, %c0_i32_0, %c0_i32_1 : i32, i32, i32
  }
  func.func @transform_2(%arg0: i32) -> (i32, i32) {
    %c0_i32 = arith.constant 0 : i32
    %c0_i32_0 = arith.constant 0 : i32
    return %arg0, %c0_i32 : i32, i32
  }
  func.func @transform_3(%arg0: i32) -> (i32, i32) {
    %c0_i32 = arith.constant 0 : i32
    %c0_i32_0 = arith.constant 0 : i32
    %c0_i32_1 = arith.constant 0 : i32
    return %c0_i32, %c0_i32_0 : i32, i32
  }
}

module attributes {stable_mosaic.version = 11 : i64} {
  func.func @bn_act_res_kernel(%arg0: i32, %arg1: memref<256x128xf32, #tpu.memory_space<vmem>>, %arg2: memref<1x128xf32, #tpu.memory_space<vmem>>, %arg3: memref<1x128xf32, #tpu.memory_space<vmem>>, %arg4: memref<256x128xf32, #tpu.memory_space<vmem>>, %arg5: memref<256x128xf32, #tpu.memory_space<vmem>>) attributes {dimension_semantics = [#tpu.dimension_semantics<parallel>], iteration_bounds = array<i64: 2>, scalar_prefetch = 0 : i64, scratch_operands = 0 : i64, tpu.core_type = #tpu.core_type<tc>, window_params = [{transform_indices = @transform_0, window_bounds = array<i64: 256, 128>}, {pipeline_mode = #tpu.pipeline_mode<synchronous>, transform_indices = @transform_1, window_bounds = array<i64: 1, 128>}, {pipeline_mode = #tpu.pipeline_mode<synchronous>, transform_indices = @transform_2, window_bounds = array<i64: 1, 128>}, {transform_indices = @transform_3, window_bounds = array<i64: 256, 128>}, {transform_indices = @transform_4, window_bounds = array<i64: 256, 128>}]} {
    %c0 = arith.constant 0 : index
    %c0_0 = arith.constant 0 : index
    %0 = vector.load %arg1[%c0, %c0_0] : memref<256x128xf32, #tpu.memory_space<vmem>>, vector<256x128xf32>
    %c0_1 = arith.constant 0 : index
    %c0_2 = arith.constant 0 : index
    %1 = vector.load %arg2[%c0_1, %c0_2] : memref<1x128xf32, #tpu.memory_space<vmem>>, vector<1x128xf32>
    %2 = vector.broadcast %1 : vector<1x128xf32> to vector<256x128xf32>
    %3 = arith.mulf %0, %2 : vector<256x128xf32>
    %c0_3 = arith.constant 0 : index
    %c0_4 = arith.constant 0 : index
    %4 = vector.load %arg3[%c0_3, %c0_4] : memref<1x128xf32, #tpu.memory_space<vmem>>, vector<1x128xf32>
    %5 = vector.broadcast %4 : vector<1x128xf32> to vector<256x128xf32>
    %6 = arith.addf %3, %5 : vector<256x128xf32>
    %c0_5 = arith.constant 0 : index
    %c0_6 = arith.constant 0 : index
    %7 = vector.load %arg4[%c0_5, %c0_6] : memref<256x128xf32, #tpu.memory_space<vmem>>, vector<256x128xf32>
    %8 = arith.addf %6, %7 : vector<256x128xf32>
    %c0_7 = arith.constant 0 : index
    %c0_8 = arith.constant 0 : index
    %9 = vector.load %arg5[%c0_7, %c0_8] : memref<256x128xf32, #tpu.memory_space<vmem>>, vector<256x128xf32>
    tpu.vector_store %arg5[%c0_7, %c0_8], %8 {strides = array<i32>} : memref<256x128xf32, #tpu.memory_space<vmem>>, vector<256x128xf32>,
    return
  }
  func.func @transform_0(%arg0: i32) -> (i32, i32) {
    %c0_i32 = arith.constant 0 : i32
    %c0_i32_0 = arith.constant 0 : i32
    return %arg0, %c0_i32 : i32, i32
  }
  func.func @transform_1(%arg0: i32) -> (i32, i32) {
    %c0_i32 = arith.constant 0 : i32
    %c0_i32_0 = arith.constant 0 : i32
    %c0_i32_1 = arith.constant 0 : i32
    return %c0_i32, %c0_i32_0 : i32, i32
  }
  func.func @transform_2(%arg0: i32) -> (i32, i32) {
    %c0_i32 = arith.constant 0 : i32
    %c0_i32_0 = arith.constant 0 : i32
    %c0_i32_1 = arith.constant 0 : i32
    return %c0_i32, %c0_i32_0 : i32, i32
  }
  func.func @transform_3(%arg0: i32) -> (i32, i32) {
    %c0_i32 = arith.constant 0 : i32
    %c0_i32_0 = arith.constant 0 : i32
    return %arg0, %c0_i32 : i32, i32
  }
  func.func @transform_4(%arg0: i32) -> (i32, i32) {
    %c0_i32 = arith.constant 0 : i32
    %c0_i32_0 = arith.constant 0 : i32
    return %arg0, %c0_i32 : i32, i32
  }
}

module attributes {stable_mosaic.version = 11 : i64} {
  func.func @bn_relu6_pw_conv_stats_kernel(%arg0: i32, %arg1: memref<256x128xf32, #tpu.memory_space<vmem>>, %arg2: memref<1x128xf32, #tpu.memory_space<vmem>>, %arg3: memref<1x128xf32, #tpu.memory_space<vmem>>, %arg4: memref<128x128xbf16, #tpu.memory_space<vmem>>, %arg5: memref<256x128xf32, #tpu.memory_space<vmem>>, %arg6: memref<8x128xf32, #tpu.memory_space<vmem>>) attributes {dimension_semantics = [#tpu.dimension_semantics<arbitrary>], iteration_bounds = array<i64: 2>, scalar_prefetch = 0 : i64, scratch_operands = 0 : i64, tpu.core_type = #tpu.core_type<tc>, window_params = [{transform_indices = @transform_0, window_bounds = array<i64: 256, 128>}, {pipeline_mode = #tpu.pipeline_mode<synchronous>, transform_indices = @transform_1, window_bounds = array<i64: 1, 128>}, {pipeline_mode = #tpu.pipeline_mode<synchronous>, transform_indices = @transform_2, window_bounds = array<i64: 1, 128>}, {pipeline_mode = #tpu.pipeline_mode<synchronous>, transform_indices = @transform_3, window_bounds = array<i64: 128, 128>}, {transform_indices = @transform_4, window_bounds = array<i64: 256, 128>}, {pipeline_mode = #tpu.pipeline_mode<synchronous>, transform_indices = @transform_5, window_bounds = array<i64: 8, 128>}]} {
    %c0_i32 = arith.constant 0 : i32
    %0 = arith.cmpi eq, %arg0, %c0_i32 : i32
    %1 = arith.extui %0 : i1 to i32
    %c0_i32_0 = arith.constant 0 : i32
    %2 = arith.cmpi ne, %1, %c0_i32_0 : i32
    scf.if %2 {
      %cst_21 = arith.constant 0.000000e+00 : f32
      %29 = vector.broadcast %cst_21 : f32 to vector<8x128xf32>
      %c0_22 = arith.constant 0 : index
      %c0_23 = arith.constant 0 : index
      %30 = vector.load %arg6[%c0_22, %c0_23] : memref<8x128xf32, #tpu.memory_space<vmem>>, vector<8x128xf32>
      tpu.vector_store %arg6[%c0_22, %c0_23], %29 {strides = array<i32>} : memref<8x128xf32, #tpu.memory_space<vmem>>, vector<8x128xf32>,
    } else {
    }
    %c0 = arith.constant 0 : index
    %c0_1 = arith.constant 0 : index
    %3 = vector.load %arg1[%c0, %c0_1] : memref<256x128xf32, #tpu.memory_space<vmem>>, vector<256x128xf32>
    %c0_2 = arith.constant 0 : index
    %c0_3 = arith.constant 0 : index
    %4 = vector.load %arg2[%c0_2, %c0_3] : memref<1x128xf32, #tpu.memory_space<vmem>>, vector<1x128xf32>
    %5 = vector.broadcast %4 : vector<1x128xf32> to vector<256x128xf32>
    %6 = arith.mulf %3, %5 : vector<256x128xf32>
    %c0_4 = arith.constant 0 : index
    %c0_5 = arith.constant 0 : index
    %7 = vector.load %arg3[%c0_4, %c0_5] : memref<1x128xf32, #tpu.memory_space<vmem>>, vector<1x128xf32>
    %8 = vector.broadcast %7 : vector<1x128xf32> to vector<256x128xf32>
    %9 = arith.addf %6, %8 : vector<256x128xf32>
    %cst = arith.constant 0.000000e+00 : f32
    %cst_6 = arith.constant 6.000000e+00 : f32
    %10 = vector.broadcast %cst : f32 to vector<256x128xf32>
    %11 = arith.maximumf %10, %9 : vector<256x128xf32>
    %12 = vector.broadcast %cst_6 : f32 to vector<256x128xf32>
    %13 = arith.minimumf %12, %11 : vector<256x128xf32>
    %14 = arith.truncf %13 : vector<256x128xf32> to vector<256x128xbf16>
    %c0_7 = arith.constant 0 : index
    %c0_8 = arith.constant 0 : index
    %15 = vector.load %arg4[%c0_7, %c0_8] : memref<128x128xbf16, #tpu.memory_space<vmem>>, vector<128x128xbf16>
    %cst_9 = arith.constant dense<0.000000e+00> : vector<256x128xf32>
    %16 = tpu.matmul %14, %15, %cst_9 {dimension_numbers = #tpu.dot_dimension_numbers<[1], [0], [0], [1], [0, 0, 1, 1], [], []>} : vector<256x128xbf16>, vector<128x128xbf16>, vector<256x128xf32> -> vector<256x128xf32>
    %c0_10 = arith.constant 0 : index
    %c0_11 = arith.constant 0 : index
    %17 = vector.load %arg5[%c0_10, %c0_11] : memref<256x128xf32, #tpu.memory_space<vmem>>, vector<256x128xf32>
    tpu.vector_store %arg5[%c0_10, %c0_11], %16 {strides = array<i32>} : memref<256x128xf32, #tpu.memory_space<vmem>>, vector<256x128xf32>,
    %c0_12 = arith.constant 0 : index
    %c0_13 = arith.constant 0 : index
    %18 = vector.load %arg6[%c0_12, %c0_13] : memref<8x128xf32, #tpu.memory_space<vmem>>, vector<1x128xf32>
    %cst_14 = arith.constant dense<0.000000e+00> : vector<128xf32>
    %19 = vector.multi_reduction <add>, %16, %cst_14 [0] : vector<256x128xf32> to vector<128xf32>
    %20 = vector.shape_cast %19 : vector<128xf32> to vector<1x128xf32>
    %21 = arith.addf %18, %20 : vector<1x128xf32>
    %c0_15 = arith.constant 0 : index
    %c0_16 = arith.constant 0 : index
    %22 = vector.load %arg6[%c0_15, %c0_16] : memref<8x128xf32, #tpu.memory_space<vmem>>, vector<1x128xf32>
    tpu.vector_store %arg6[%c0_15, %c0_16], %21 {strides = array<i32>} : memref<8x128xf32, #tpu.memory_space<vmem>>, vector<1x128xf32>,
    %c1 = arith.constant 1 : index
    %c0_17 = arith.constant 0 : index
    %23 = vector.load %arg6[%c1, %c0_17] : memref<8x128xf32, #tpu.memory_space<vmem>>, vector<1x128xf32>
    %24 = arith.mulf %16, %16 : vector<256x128xf32>
    %cst_18 = arith.constant dense<0.000000e+00> : vector<128xf32>
    %25 = vector.multi_reduction <add>, %24, %cst_18 [0] : vector<256x128xf32> to vector<128xf32>
    %26 = vector.shape_cast %25 : vector<128xf32> to vector<1x128xf32>
    %27 = arith.addf %23, %26 : vector<1x128xf32>
    %c1_19 = arith.constant 1 : index
    %c0_20 = arith.constant 0 : index
    %28 = vector.load %arg6[%c1_19, %c0_20] : memref<8x128xf32, #tpu.memory_space<vmem>>, vector<1x128xf32>
    tpu.vector_store %arg6[%c1_19, %c0_20], %27 {strides = array<i32>} : memref<8x128xf32, #tpu.memory_space<vmem>>, vector<1x128xf32>,
    return
  }
  func.func @transform_0(%arg0: i32) -> (i32, i32) {
    %c0_i32 = arith.constant 0 : i32
    %c0_i32_0 = arith.constant 0 : i32
    return %arg0, %c0_i32 : i32, i32
  }
  func.func @transform_1(%arg0: i32) -> (i32, i32) {
    %c0_i32 = arith.constant 0 : i32
    %c0_i32_0 = arith.constant 0 : i32
    %c0_i32_1 = arith.constant 0 : i32
    return %c0_i32, %c0_i32_0 : i32, i32
  }
  func.func @transform_2(%arg0: i32) -> (i32, i32) {
    %c0_i32 = arith.constant 0 : i32
    %c0_i32_0 = arith.constant 0 : i32
    %c0_i32_1 = arith.constant 0 : i32
    return %c0_i32, %c0_i32_0 : i32, i32
  }
  func.func @transform_3(%arg0: i32) -> (i32, i32) {
    %c0_i32 = arith.constant 0 : i32
    %c0_i32_0 = arith.constant 0 : i32
    %c0_i32_1 = arith.constant 0 : i32
    return %c0_i32, %c0_i32_0 : i32, i32
  }
  func.func @transform_4(%arg0: i32) -> (i32, i32) {
    %c0_i32 = arith.constant 0 : i32
    %c0_i32_0 = arith.constant 0 : i32
    return %arg0, %c0_i32 : i32, i32
  }
  func.func @transform_5(%arg0: i32) -> (i32, i32) {
    %c0_i32 = arith.constant 0 : i32
    %c0_i32_0 = arith.constant 0 : i32
    %c0_i32_1 = arith.constant 0 : i32
    return %c0_i32, %c0_i32_0 : i32, i32
  }
}

</mosaic_0001>

<llo_original>
// kernel: bottleneck_forward.6
$region0: #{bottleneck_forward.6}
  #allocation0 [shape = 'u32[]', space=smem, size = 0x4, offset = 0x4, fixed_abs, tag = 'smem constant byte address 0x4 - core index']
  #allocation1 [shape = 'u32[144,128]{1,0:T(1,128)}', space=vmem, size = 0x12000, scoped, tag = 'internal scratch']
  %s0 = inlined_call_operand.vmem [shape: f32[512,128], index: 0, kind: input, shape index: {}]
  %s1 = inlined_call_operand.vmem [shape: f32[1,128], index: 1, kind: input, shape index: {}]
  %s2 = inlined_call_operand.vmem [shape: f32[1,128], index: 2, kind: input, shape index: {}]
  %s3 = inlined_call_operand.vmem [shape: f32[512,128], index: 3, kind: output, shape index: {}]
  %s4 = sld [smem:[#allocation0]]
  $region45: #{bottleneck_forward.6} parent=0
    _
  %s6 = ssub.s32 1, %s4
  %s7 = scalar_select 0, %s6, %s4
  loop: start=0, step=1, limit=4
  $region2: #{bottleneck_forward.6} parent=0 // loop_pre_header
    _
  $region3: #{bottleneck_forward.6} parent=0 // loop_header
    %s9 = sphi 0, %s13
    %p10 = scmp.ge.s32.totalorder %s9, 4
    %s19 = sphi 0, %s21
    %s22 = sphi 0, %s19
    %s23 = sphi 0, %s22
    %s39 = sphi 0, %s23
    %s43 = sphi 0, %s43
    %s45 = sphi 0, %s43
    %s46 = sphi 0, %s45
    %s60 = sphi 0, %s46
    %s64 = sphi 0, %s64
    %s66 = sphi 0, %s64
    %s67 = sphi 0, %s66
    %s81 = sphi 0, %s67
    %s87 = sphi 0, %s89
    %s90 = sphi 0, %s87
    %s91 = sphi 0, %s90
    %s107 = sphi 0, %s91
  $region4: #{bottleneck_forward.6} parent=0 // loop_header_branch
    %12 = sbr.rel (%p10) target = $region8
  $region5: #{bottleneck_forward.6} parent=0 // loop_body
    %s14 = ssub.s32 %s9, 1
    %s15 = ssub.s32 %s9, 2
    %s16 = sadd.s32 %s9, 1
    %s17 = ssub.s32 %s9, %s16
    %p18 = scmp.eq.s32.totalorder %s17, 0
    %s20 = sadd.s32 %s19, 1
    %s21 = scalar_select %p18, %s19, %s20
    %p24 = pneg %p18
    %p25 = scmp.eq.s32.totalorder %s9, 1
    %p26 = por %p24, %p25
    %p27 = scmp.ne.s32.totalorder %s19, %s22
    %p28 = scmp.eq.s32.totalorder %s9, 0
    %p29 = por %p27, %p28
    %p30 = scmp.ne.s32.totalorder %s19, %s22
    %p31 = scmp.eq.s32.totalorder %s14, 1
    %p32 = por %p30, %p31
    %p33 = scmp.ne.s32.totalorder %s22, %s23
    %p34 = scmp.eq.s32.totalorder %s14, 0
    %p35 = por %p33, %p34
    %p36 = scmp.ne.s32.totalorder %s22, %s23
    %p37 = scmp.eq.s32.totalorder %s15, 1
    %p38 = por %p36, %p37
    %p40 = scmp.ne.s32.totalorder %s23, %s39
    %p41 = scmp.eq.s32.totalorder %s15, 0
    %p42 = por %p40, %p41
    %s44 = sadd.s32 %s43, 1
    %p47 = scmp.eq.s32.totalorder %s9, 1
    %p48 = scmp.ne.s32.totalorder %s43, %s45
    %p49 = scmp.eq.s32.totalorder %s9, 0
    %p50 = por %p48, %p49
    %p51 = scmp.ne.s32.totalorder %s43, %s45
    %p52 = scmp.eq.s32.totalorder %s14, 1
    %p53 = por %p51, %p52
    %p54 = scmp.ne.s32.totalorder %s45, %s46
    %p55 = scmp.eq.s32.totalorder %s14, 0
    %p56 = por %p54, %p55
    %p57 = scmp.ne.s32.totalorder %s45, %s46
    %p58 = scmp.eq.s32.totalorder %s15, 1
    %p59 = por %p57, %p58
    %p61 = scmp.ne.s32.totalorder %s46, %s60
    %p62 = scmp.eq.s32.totalorder %s15, 0
    %p63 = por %p61, %p62
    %s65 = sadd.s32 %s64, 1
    %p68 = scmp.eq.s32.totalorder %s9, 1
    %p69 = scmp.ne.s32.totalorder %s64, %s66
    %p70 = scmp.eq.s32.totalorder %s9, 0
    %p71 = por %p69, %p70
    %p72 = scmp.ne.s32.totalorder %s64, %s66
    %p73 = scmp.eq.s32.totalorder %s14, 1
    %p74 = por %p72, %p73
    %p75 = scmp.ne.s32.totalorder %s66, %s67
    %p76 = scmp.eq.s32.totalorder %s14, 0
    %p77 = por %p75, %p76
    %p78 = scmp.ne.s32.totalorder %s66, %s67
    %p79 = scmp.eq.s32.totalorder %s15, 1
    %p80 = por %p78, %p79
    %p82 = scmp.ne.s32.totalorder %s67, %s81
    %p83 = scmp.eq.s32.totalorder %s15, 0
    %p84 = por %p82, %p83
    %s85 = ssub.s32 %s9, %s16
    %p86 = scmp.eq.s32.totalorder %s85, 0
    %s88 = sadd.s32 %s87, 1
    %s89 = scalar_select %p86, %s87, %s88
    %p92 = pneg %p86
    %p93 = scmp.eq.s32.totalorder %s9, 1
    %p94 = por %p92, %p93
    %p95 = scmp.ne.s32.totalorder %s87, %s90
    %p96 = scmp.eq.s32.totalorder %s9, 0
    %p97 = por %p95, %p96
    %p98 = scmp.ne.s32.totalorder %s87, %s90
    %p99 = scmp.eq.s32.totalorder %s14, 1
    %p100 = por %p98, %p99
    %p101 = scmp.ne.s32.totalorder %s90, %s91
    %p102 = scmp.eq.s32.totalorder %s14, 0
    %p103 = por %p101, %p102
    %p104 = scmp.ne.s32.totalorder %s90, %s91
    %p105 = scmp.eq.s32.totalorder %s15, 1
    %p106 = por %p104, %p105
    %p108 = scmp.ne.s32.totalorder %s91, %s107
    %p109 = scmp.eq.s32.totalorder %s15, 0
    %p110 = por %p108, %p109
    %p111 = scmp.le.s32.totalorder 1, %s9
    %p112 = scmp.lt.s32.totalorder %s9, 3
    %p113 = pnand %p111, %p112
    %p114 = pneg %p113
    // Predicated region
    $region9: #{bottleneck_forward.6} parent=5 // pred_check
      _
    $region10: #{bottleneck_forward.6} parent=5 // pred_check_branch
      %116 = sbr.rel (%p113) target = $region12
    $region11: #{bottleneck_forward.6} parent=5 // pred_region
      %s117 = ssub.s32 %s9, 1
      // Predicated region
      $region13: #{bottleneck_forward.6} parent=11 // pred_check
        %p118 = pneg %p56
      $region14: #{bottleneck_forward.6} parent=11 // pred_check_branch
        %120 = sbr.rel (%p118) target = $region16
      $region15: #{bottleneck_forward.6} parent=11 // pred_region
        _
      $region16: #{bottleneck_forward.6} parent=11 // pred_fallthru
        _
      // Predicated region
      $region17: #{bottleneck_forward.6} parent=11 // pred_check
        %p121 = pneg %p77
      $region18: #{bottleneck_forward.6} parent=11 // pred_check_branch
        %123 = sbr.rel (%p121) target = $region20
      $region19: #{bottleneck_forward.6} parent=11 // pred_region
        _
      $region20: #{bottleneck_forward.6} parent=11 // pred_fallthru
        _
    $region12: #{bottleneck_forward.6} parent=5 // pred_fallthru
      _
    %p124 = scmp.lt.s32.totalorder %s9, 2
    // Predicated region
    $region21: #{bottleneck_forward.6} parent=5 // pred_check
      %p125 = pneg %p124
    $region22: #{bottleneck_forward.6} parent=5 // pred_check_branch
      %127 = sbr.rel (%p125) target = $region24
    $region23: #{bottleneck_forward.6} parent=5 // pred_region
      // Predicated region
      $region25: #{bottleneck_forward.6} parent=23 // pred_check
        %p128 = pneg %p29
      $region26: #{bottleneck_forward.6} parent=23 // pred_check_branch
        %130 = sbr.rel (%p128) target = $region28
      $region27: #{bottleneck_forward.6} parent=23 // pred_region
        %s131 = smul.u32 32, %s9
        %p132 = scmp.lt.s32.totalorder %s131, 63
        %s133 = scalar_select %p132, %s131, 63
        %s134 = smul.addr %s133, 8
        %s135 = scalar_lea.vmem %s0, %s134
        %s136 = smul.u32 32, %s9
      $region28: #{bottleneck_forward.6} parent=23 // pred_fallthru
        _
    $region24: #{bottleneck_forward.6} parent=5 // pred_fallthru
      _
    %p137 = scmp.le.s32.totalorder 1, %s9
    %p138 = scmp.lt.s32.totalorder %s9, 3
    %p139 = pnand %p137, %p138
    %p140 = pneg %p139
    // Predicated region
    $region29: #{bottleneck_forward.6} parent=5 // pred_check
      _
    $region30: #{bottleneck_forward.6} parent=5 // pred_check_branch
      %142 = sbr.rel (%p139) target = $region32
    $region31: #{bottleneck_forward.6} parent=5 // pred_region
      %s143 = ssub.s32 %s9, 1
      %s144 = smul.u32 32, %s14
      %p145 = scmp.lt.s32.totalorder %s144, 63
      %s146 = scalar_select %p145, %s144, 63
      %s147 = smul.addr %s146, 8
      %s148 = scalar_lea.vmem %s0, %s147
      %p149 = pneg %p35
      %p150 = pneg %p32
      %p151 = pneg %p56
      %p152 = pneg %p53
      %p153 = pneg %p77
      %p154 = pneg %p74
      %p155 = pneg %p103
      %p156 = pneg %p100
      %s157 = smul.u32 32, %s14
      %p158 = scmp.lt.s32.totalorder %s157, 63
      %s159 = scalar_select %p158, %s157, 63
      %s160 = smul.addr %s159, 8
      %s161 = scalar_lea.vmem %s3, %s160
      %s162 = smul.u32 32, %s14
      %p163 = scmp.lt.s32.totalorder %s162, 63
      %s164 = scalar_select %p163, %s162, 63
      %s165 = smul.addr %s164, 8
      %s166 = scalar_lea.vmem %s0, %s165
      %s167 = smul.u32 32, %s14
      %s168 = smul.u32 32, %s14
      %p169 = scmp.lt.s32.totalorder %s168, 63
      %s170 = scalar_select %p169, %s168, 63
      %s171 = smul.addr %s170, 8
      %s172 = scalar_lea.vmem %s3, %s171
      %s173 = smul.u32 32, %s14
      %v174 = vld [vmem:[%s166] sm:$0xff]
      %v175 = vld [vmem:[%s166 + $0x8] sm:$0xff]
      %v176 = vld [vmem:[%s166 + $0x10] sm:$0xff]
      %v177 = vld [vmem:[%s166 + $0x18] sm:$0xff]
      %v178 = vld [vmem:[%s166 + $0x20] sm:$0xff]
      %v179 = vld [vmem:[%s166 + $0x28] sm:$0xff]
      %v180 = vld [vmem:[%s166 + $0x30] sm:$0xff]
      %v181 = vld [vmem:[%s166 + $0x38] sm:$0xff]
      %v182 = vld [vmem:[%s166 + $0x40] sm:$0xff]
      %v183 = vld [vmem:[%s166 + $0x48] sm:$0xff]
      %v184 = vld [vmem:[%s166 + $0x50] sm:$0xff]
      %v185 = vld [vmem:[%s166 + $0x58] sm:$0xff]
      %v186 = vld [vmem:[%s166 + $0x60] sm:$0xff]
      %v187 = vld [vmem:[%s166 + $0x68] sm:$0xff]
      %v188 = vld [vmem:[%s166 + $0x70] sm:$0xff]
      %v189 = vld [vmem:[%s166 + $0x78] sm:$0xff]
      %v190 = vld [vmem:[%s166 + $0x80] sm:$0xff]
      %v191 = vld [vmem:[%s166 + $0x88] sm:$0xff]
      %v192 = vld [vmem:[%s166 + $0x90] sm:$0xff]
      %v193 = vld [vmem:[%s166 + $0x98] sm:$0xff]
      %v194 = vld [vmem:[%s166 + $0xa0] sm:$0xff]
      %v195 = vld [vmem:[%s166 + $0xa8] sm:$0xff]
      %v196 = vld [vmem:[%s166 + $0xb0] sm:$0xff]
      %v197 = vld [vmem:[%s166 + $0xb8] sm:$0xff]
      %v198 = vld [vmem:[%s166 + $0xc0] sm:$0xff]
      %v199 = vld [vmem:[%s166 + $0xc8] sm:$0xff]
      %v200 = vld [vmem:[%s166 + $0xd0] sm:$0xff]
      %v201 = vld [vmem:[%s166 + $0xd8] sm:$0xff]
      %v202 = vld [vmem:[%s166 + $0xe0] sm:$0xff]
      %v203 = vld [vmem:[%s166 + $0xe8] sm:$0xff]
      %v204 = vld [vmem:[%s166 + $0xf0] sm:$0xff]
      %v205 = vld [vmem:[%s166 + $0xf8] sm:$0xff]
      %v206 = vld [vmem:[%s1] sm:$0x1]
      %v208 = vlaneseq
      %v209 = vshrl.u32 %v208, 7
      %v210 = vsub.s32 0, %v209
      %v211 = vrot.slane %v206, %v210
      %v213 = vmul.f32 %v174, %v211
      %v214 = vmul.f32 %v175, %v211
      %v215 = vmul.f32 %v176, %v211
      %v216 = vmul.f32 %v177, %v211
      %v217 = vmul.f32 %v178, %v211
      %v218 = vmul.f32 %v179, %v211
      %v219 = vmul.f32 %v180, %v211
      %v220 = vmul.f32 %v181, %v211
      %v221 = vmul.f32 %v182, %v211
      %v222 = vmul.f32 %v183, %v211
      %v223 = vmul.f32 %v184, %v211
      %v224 = vmul.f32 %v185, %v211
      %v225 = vmul.f32 %v186, %v211
      %v226 = vmul.f32 %v187, %v211
      %v227 = vmul.f32 %v188, %v211
      %v228 = vmul.f32 %v189, %v211
      %v229 = vmul.f32 %v190, %v211
      %v230 = vmul.f32 %v191, %v211
      %v231 = vmul.f32 %v192, %v211
      %v232 = vmul.f32 %v193, %v211
      %v233 = vmul.f32 %v194, %v211
      %v234 = vmul.f32 %v195, %v211
      %v235 = vmul.f32 %v196, %v211
      %v236 = vmul.f32 %v197, %v211
      %v237 = vmul.f32 %v198, %v211
      %v238 = vmul.f32 %v199, %v211
      %v239 = vmul.f32 %v200, %v211
      %v240 = vmul.f32 %v201, %v211
      %v241 = vmul.f32 %v202, %v211
      %v242 = vmul.f32 %v203, %v211
      %v243 = vmul.f32 %v204, %v211
      %v244 = vmul.f32 %v205, %v211
      %v245 = vld [vmem:[%s2] sm:$0x1]
      %v247 = vlaneseq
      %v248 = vshrl.u32 %v247, 7
      %v249 = vsub.s32 0, %v248
      %v250 = vrot.slane %v245, %v249
      %v252 = vadd.f32 %v213, %v250
      %v253 = vadd.f32 %v214, %v250
      %v254 = vadd.f32 %v215, %v250
      %v255 = vadd.f32 %v216, %v250
      %v256 = vadd.f32 %v217, %v250
      %v257 = vadd.f32 %v218, %v250
      %v258 = vadd.f32 %v219, %v250
      %v259 = vadd.f32 %v220, %v250
      %v260 = vadd.f32 %v221, %v250
      %v261 = vadd.f32 %v222, %v250
      %v262 = vadd.f32 %v223, %v250
      %v263 = vadd.f32 %v224, %v250
      %v264 = vadd.f32 %v225, %v250
      %v265 = vadd.f32 %v226, %v250
      %v266 = vadd.f32 %v227, %v250
      %v267 = vadd.f32 %v228, %v250
      %v268 = vadd.f32 %v229, %v250
      %v269 = vadd.f32 %v230, %v250
      %v270 = vadd.f32 %v231, %v250
      %v271 = vadd.f32 %v232, %v250
      %v272 = vadd.f32 %v233, %v250
      %v273 = vadd.f32 %v234, %v250
      %v274 = vadd.f32 %v235, %v250
      %v275 = vadd.f32 %v236, %v250
      %v276 = vadd.f32 %v237, %v250
      %v277 = vadd.f32 %v238, %v250
      %v278 = vadd.f32 %v239, %v250
      %v279 = vadd.f32 %v240, %v250
      %v280 = vadd.f32 %v241, %v250
      %v281 = vadd.f32 %v242, %v250
      %v282 = vadd.f32 %v243, %v250
      %v283 = vadd.f32 %v244, %v250
      %v284 = vmax.f32 %v252, 0.0
      %v285 = vmax.f32 %v253, 0.0
      %v286 = vmax.f32 %v254, 0.0
      %v287 = vmax.f32 %v255, 0.0
      %v288 = vmax.f32 %v256, 0.0
      %v289 = vmax.f32 %v257, 0.0
      %v290 = vmax.f32 %v258, 0.0
      %v291 = vmax.f32 %v259, 0.0
      %v292 = vmax.f32 %v260, 0.0
      %v293 = vmax.f32 %v261, 0.0
      %v294 = vmax.f32 %v262, 0.0
      %v295 = vmax.f32 %v263, 0.0
      %v296 = vmax.f32 %v264, 0.0
      %v297 = vmax.f32 %v265, 0.0
      %v298 = vmax.f32 %v266, 0.0
      %v299 = vmax.f32 %v267, 0.0
      %v300 = vmax.f32 %v268, 0.0
      %v301 = vmax.f32 %v269, 0.0
      %v302 = vmax.f32 %v270, 0.0
      %v303 = vmax.f32 %v271, 0.0
      %v304 = vmax.f32 %v272, 0.0
      %v305 = vmax.f32 %v273, 0.0
      %v306 = vmax.f32 %v274, 0.0
      %v307 = vmax.f32 %v275, 0.0
      %v308 = vmax.f32 %v276, 0.0
      %v309 = vmax.f32 %v277, 0.0
      %v310 = vmax.f32 %v278, 0.0
      %v311 = vmax.f32 %v279, 0.0
      %v312 = vmax.f32 %v280, 0.0
      %v313 = vmax.f32 %v281, 0.0
      %v314 = vmax.f32 %v282, 0.0
      %v315 = vmax.f32 %v283, 0.0
      %v316 = vmin.f32 %v284, 6.0
      %v317 = vmin.f32 %v285, 6.0
      %v318 = vmin.f32 %v286, 6.0
      %v319 = vmin.f32 %v287, 6.0
      %v320 = vmin.f32 %v288, 6.0
      %v321 = vmin.f32 %v289, 6.0
      %v322 = vmin.f32 %v290, 6.0
      %v323 = vmin.f32 %v291, 6.0
      %v324 = vmin.f32 %v292, 6.0
      %v325 = vmin.f32 %v293, 6.0
      %v326 = vmin.f32 %v294, 6.0
      %v327 = vmin.f32 %v295, 6.0
      %v328 = vmin.f32 %v296, 6.0
      %v329 = vmin.f32 %v297, 6.0
      %v330 = vmin.f32 %v298, 6.0
      %v331 = vmin.f32 %v299, 6.0
      %v332 = vmin.f32 %v300, 6.0
      %v333 = vmin.f32 %v301, 6.0
      %v334 = vmin.f32 %v302, 6.0
      %v335 = vmin.f32 %v303, 6.0
      %v336 = vmin.f32 %v304, 6.0
      %v337 = vmin.f32 %v305, 6.0
      %v338 = vmin.f32 %v306, 6.0
      %v339 = vmin.f32 %v307, 6.0
      %v340 = vmin.f32 %v308, 6.0
      %v341 = vmin.f32 %v309, 6.0
      %v342 = vmin.f32 %v310, 6.0
      %v343 = vmin.f32 %v311, 6.0
      %v344 = vmin.f32 %v312, 6.0
      %v345 = vmin.f32 %v313, 6.0
      %v346 = vmin.f32 %v314, 6.0
      %v347 = vmin.f32 %v315, 6.0
      %348 = vst [vmem:[%s172] sm:$0xff] %v316
      %349 = vst [vmem:[%s172 + $0x8] sm:$0xff] %v317
      %350 = vst [vmem:[%s172 + $0x10] sm:$0xff] %v318
      %351 = vst [vmem:[%s172 + $0x18] sm:$0xff] %v319
      %352 = vst [vmem:[%s172 + $0x20] sm:$0xff] %v320
      %353 = vst [vmem:[%s172 + $0x28] sm:$0xff] %v321
      %354 = vst [vmem:[%s172 + $0x30] sm:$0xff] %v322
      %355 = vst [vmem:[%s172 + $0x38] sm:$0xff] %v323
      %356 = vst [vmem:[%s172 + $0x40] sm:$0xff] %v324
      %357 = vst [vmem:[%s172 + $0x48] sm:$0xff] %v325
      %358 = vst [vmem:[%s172 + $0x50] sm:$0xff] %v326
      %359 = vst [vmem:[%s172 + $0x58] sm:$0xff] %v327
      %360 = vst [vmem:[%s172 + $0x60] sm:$0xff] %v328
      %361 = vst [vmem:[%s172 + $0x68] sm:$0xff] %v329
      %362 = vst [vmem:[%s172 + $0x70] sm:$0xff] %v330
      %363 = vst [vmem:[%s172 + $0x78] sm:$0xff] %v331
      %364 = vst [vmem:[%s172 + $0x80] sm:$0xff] %v332
      %365 = vst [vmem:[%s172 + $0x88] sm:$0xff] %v333
      %366 = vst [vmem:[%s172 + $0x90] sm:$0xff] %v334
      %367 = vst [vmem:[%s172 + $0x98] sm:$0xff] %v335
      %368 = vst [vmem:[%s172 + $0xa0] sm:$0xff] %v336
      %369 = vst [vmem:[%s172 + $0xa8] sm:$0xff] %v337
      %370 = vst [vmem:[%s172 + $0xb0] sm:$0xff] %v338
      %371 = vst [vmem:[%s172 + $0xb8] sm:$0xff] %v339
      %372 = vst [vmem:[%s172 + $0xc0] sm:$0xff] %v340
      %373 = vst [vmem:[%s172 + $0xc8] sm:$0xff] %v341
      %374 = vst [vmem:[%s172 + $0xd0] sm:$0xff] %v342
      %375 = vst [vmem:[%s172 + $0xd8] sm:$0xff] %v343
      %376 = vst [vmem:[%s172 + $0xe0] sm:$0xff] %v344
      %377 = vst [vmem:[%s172 + $0xe8] sm:$0xff] %v345
      %378 = vst [vmem:[%s172 + $0xf0] sm:$0xff] %v346
      %379 = vst [vmem:[%s172 + $0xf8] sm:$0xff] %v347
      %s380 = smul.u32 32, %s14
      %p381 = scmp.lt.s32.totalorder %s380, 63
      %s382 = scalar_select %p381, %s380, 63
      %s383 = smul.addr %s382, 8
      %s384 = scalar_lea.vmem %s3, %s383
      // Predicated region
      $region33: #{bottleneck_forward.6} parent=31 // pred_check
        %p385 = pneg %p100
      $region34: #{bottleneck_forward.6} parent=31 // pred_check_branch
        %387 = sbr.rel (%p385) target = $region36
      $region35: #{bottleneck_forward.6} parent=31 // pred_region
        %s388 = smul.u32 32, %s14
      $region36: #{bottleneck_forward.6} parent=31 // pred_fallthru
        _
    $region32: #{bottleneck_forward.6} parent=5 // pred_fallthru
      _
    %p389 = scmp.le.s32.totalorder 2, %s9
    // Predicated region
    $region37: #{bottleneck_forward.6} parent=5 // pred_check
      %p390 = pneg %p389
    $region38: #{bottleneck_forward.6} parent=5 // pred_check_branch
      %392 = sbr.rel (%p390) target = $region40
    $region39: #{bottleneck_forward.6} parent=5 // pred_region
      %s393 = ssub.s32 %s9, 2
      // Predicated region
      $region41: #{bottleneck_forward.6} parent=39 // pred_check
        %p394 = pneg %p106
      $region42: #{bottleneck_forward.6} parent=39 // pred_check_branch
        %396 = sbr.rel (%p394) target = $region44
      $region43: #{bottleneck_forward.6} parent=39 // pred_region
        %s397 = smul.u32 32, %s15
        %p398 = scmp.lt.s32.totalorder %s397, 63
        %s399 = scalar_select %p398, %s397, 63
        %s400 = smul.addr %s399, 8
        %s401 = scalar_lea.vmem %s3, %s400
      $region44: #{bottleneck_forward.6} parent=39 // pred_fallthru
        _
    $region40: #{bottleneck_forward.6} parent=5 // pred_fallthru
      _
  $region6: #{bottleneck_forward.6} parent=0 // loop_footer
    %s13 = sadd.s32 1, %s9
  $region7: #{bottleneck_forward.6} parent=0 // loop_footer_branch
    %8 = sbr.rel target = $region3
  $region8: #{bottleneck_forward.6} parent=0 // loop_exit
    _

// kernel: bottleneck_forward.5
$region0: #{bottleneck_forward.5}
  #allocation0 [shape = 'u32[]', space=smem, size = 0x4, offset = 0x4, fixed_abs, tag = 'smem constant byte address 0x4 - core index']
  #allocation1 [shape = 'u32[144,128]{1,0:T(1,128)}', space=vmem, size = 0x12000, scoped, tag = 'internal scratch']
  %s0 = inlined_call_operand.vmem [shape: bf16[512,128], index: 0, kind: input, shape index: {}]
  %s1 = inlined_call_operand.vmem [shape: bf16[128,128], index: 1, kind: input, shape index: {}]
  %s2 = inlined_call_operand.vmem [shape: f32[512,128], index: 2, kind: output, shape index: {0}]
  %s3 = inlined_call_operand.vmem [shape: f32[8,128], index: 3, kind: output, shape index: {1}]
  %4 = xla_tuple %s2, %s3
  %s5 = sld [smem:[#allocation0]]
  $region53: #{bottleneck_forward.5} parent=0
    _
  %s7 = ssub.s32 1, %s5
  %s8 = scalar_select 0, %s7, %s5
  loop: start=0, step=1, limit=4
  $region2: #{bottleneck_forward.5} parent=0 // loop_pre_header
    _
  $region3: #{bottleneck_forward.5} parent=0 // loop_header
    %s10 = sphi 0, %s14
    %p11 = scmp.ge.s32.totalorder %s10, 4
    %s20 = sphi 0, %s22
    %s23 = sphi 0, %s20
    %s24 = sphi 0, %s23
    %s40 = sphi 0, %s24
    %s44 = sphi 0, %s44
    %s46 = sphi 0, %s44
    %s47 = sphi 0, %s46
    %s61 = sphi 0, %s47
    %s67 = sphi 0, %s69
    %s70 = sphi 0, %s67
    %s71 = sphi 0, %s70
    %s87 = sphi 0, %s71
    %s91 = sphi 0, %s91
    %s93 = sphi 0, %s91
    %s94 = sphi 0, %s93
    %s108 = sphi 0, %s94
  $region4: #{bottleneck_forward.5} parent=0 // loop_header_branch
    %13 = sbr.rel (%p11) target = $region8
  $region5: #{bottleneck_forward.5} parent=0 // loop_body
    %s15 = ssub.s32 %s10, 1
    %s16 = ssub.s32 %s10, 2
    %s17 = sadd.s32 %s10, 1
    %s18 = ssub.s32 %s10, %s17
    %p19 = scmp.eq.s32.totalorder %s18, 0
    %s21 = sadd.s32 %s20, 1
    %s22 = scalar_select %p19, %s20, %s21
    %p25 = pneg %p19
    %p26 = scmp.eq.s32.totalorder %s10, 1
    %p27 = por %p25, %p26
    %p28 = scmp.ne.s32.totalorder %s20, %s23
    %p29 = scmp.eq.s32.totalorder %s10, 0
    %p30 = por %p28, %p29
    %p31 = scmp.ne.s32.totalorder %s20, %s23
    %p32 = scmp.eq.s32.totalorder %s15, 1
    %p33 = por %p31, %p32
    %p34 = scmp.ne.s32.totalorder %s23, %s24
    %p35 = scmp.eq.s32.totalorder %s15, 0
    %p36 = por %p34, %p35
    %p37 = scmp.ne.s32.totalorder %s23, %s24
    %p38 = scmp.eq.s32.totalorder %s16, 1
    %p39 = por %p37, %p38
    %p41 = scmp.ne.s32.totalorder %s24, %s40
    %p42 = scmp.eq.s32.totalorder %s16, 0
    %p43 = por %p41, %p42
    %s45 = sadd.s32 %s44, 1
    %p48 = scmp.eq.s32.totalorder %s10, 1
    %p49 = scmp.ne.s32.totalorder %s44, %s46
    %p50 = scmp.eq.s32.totalorder %s10, 0
    %p51 = por %p49, %p50
    %p52 = scmp.ne.s32.totalorder %s44, %s46
    %p53 = scmp.eq.s32.totalorder %s15, 1
    %p54 = por %p52, %p53
    %p55 = scmp.ne.s32.totalorder %s46, %s47
    %p56 = scmp.eq.s32.totalorder %s15, 0
    %p57 = por %p55, %p56
    %p58 = scmp.ne.s32.totalorder %s46, %s47
    %p59 = scmp.eq.s32.totalorder %s16, 1
    %p60 = por %p58, %p59
    %p62 = scmp.ne.s32.totalorder %s47, %s61
    %p63 = scmp.eq.s32.totalorder %s16, 0
    %p64 = por %p62, %p63
    %s65 = ssub.s32 %s10, %s17
    %p66 = scmp.eq.s32.totalorder %s65, 0
    %s68 = sadd.s32 %s67, 1
    %s69 = scalar_select %p66, %s67, %s68
    %p72 = pneg %p66
    %p73 = scmp.eq.s32.totalorder %s10, 1
    %p74 = por %p72, %p73
    %p75 = scmp.ne.s32.totalorder %s67, %s70
    %p76 = scmp.eq.s32.totalorder %s10, 0
    %p77 = por %p75, %p76
    %p78 = scmp.ne.s32.totalorder %s67, %s70
    %p79 = scmp.eq.s32.totalorder %s15, 1
    %p80 = por %p78, %p79
    %p81 = scmp.ne.s32.totalorder %s70, %s71
    %p82 = scmp.eq.s32.totalorder %s15, 0
    %p83 = por %p81, %p82
    %p84 = scmp.ne.s32.totalorder %s70, %s71
    %p85 = scmp.eq.s32.totalorder %s16, 1
    %p86 = por %p84, %p85
    %p88 = scmp.ne.s32.totalorder %s71, %s87
    %p89 = scmp.eq.s32.totalorder %s16, 0
    %p90 = por %p88, %p89
    %s92 = sadd.s32 %s91, 1
    %p95 = scmp.eq.s32.totalorder %s10, 1
    %p96 = scmp.ne.s32.totalorder %s91, %s93
    %p97 = scmp.eq.s32.totalorder %s10, 0
    %p98 = por %p96, %p97
    %p99 = scmp.ne.s32.totalorder %s91, %s93
    %p100 = scmp.eq.s32.totalorder %s15, 1
    %p101 = por %p99, %p100
    %p102 = scmp.ne.s32.totalorder %s93, %s94
    %p103 = scmp.eq.s32.totalorder %s15, 0
    %p104 = por %p102, %p103
    %p105 = scmp.ne.s32.totalorder %s93, %s94
    %p106 = scmp.eq.s32.totalorder %s16, 1
    %p107 = por %p105, %p106
    %p109 = scmp.ne.s32.totalorder %s94, %s108
    %p110 = scmp.eq.s32.totalorder %s16, 0
    %p111 = por %p109, %p110
    %p112 = scmp.le.s32.totalorder 1, %s10
    %p113 = scmp.lt.s32.totalorder %s10, 3
    %p114 = pnand %p112, %p113
    %p115 = pneg %p114
    // Predicated region
    $region9: #{bottleneck_forward.5} parent=5 // pred_check
      _
    $region10: #{bottleneck_forward.5} parent=5 // pred_check_branch
      %117 = sbr.rel (%p114) target = $region12
    $region11: #{bottleneck_forward.5} parent=5 // pred_region
      %s118 = ssub.s32 %s10, 1
      // Predicated region
      $region13: #{bottleneck_forward.5} parent=11 // pred_check
        %p119 = pneg %p57
      $region14: #{bottleneck_forward.5} parent=11 // pred_check_branch
        %121 = sbr.rel (%p119) target = $region16
      $region15: #{bottleneck_forward.5} parent=11 // pred_region
        _
      $region16: #{bottleneck_forward.5} parent=11 // pred_fallthru
        _
    $region12: #{bottleneck_forward.5} parent=5 // pred_fallthru
      _
    %p122 = scmp.lt.s32.totalorder %s10, 2
    // Predicated region
    $region17: #{bottleneck_forward.5} parent=5 // pred_check
      %p123 = pneg %p122
    $region18: #{bottleneck_forward.5} parent=5 // pred_check_branch
      %125 = sbr.rel (%p123) target = $region20
    $region19: #{bottleneck_forward.5} parent=5 // pred_region
      // Predicated region
      $region21: #{bottleneck_forward.5} parent=19 // pred_check
        %p126 = pneg %p30
      $region22: #{bottleneck_forward.5} parent=19 // pred_check_branch
        %128 = sbr.rel (%p126) target = $region24
      $region23: #{bottleneck_forward.5} parent=19 // pred_region
        %s129 = smul.u32 32, %s10
        %p130 = scmp.lt.s32.totalorder %s129, 63
        %s131 = scalar_select %p130, %s129, 63
        %s132 = smul.addr %s131, 4
        %s133 = scalar_lea.vmem %s0, %s132
        %s134 = smul.u32 32, %s10
      $region24: #{bottleneck_forward.5} parent=19 // pred_fallthru
        _
    $region20: #{bottleneck_forward.5} parent=5 // pred_fallthru
      _
    %p135 = scmp.le.s32.totalorder 1, %s10
    %p136 = scmp.lt.s32.totalorder %s10, 3
    %p137 = pnand %p135, %p136
    %p138 = pneg %p137
    // Predicated region
    $region25: #{bottleneck_forward.5} parent=5 // pred_check
      _
    $region26: #{bottleneck_forward.5} parent=5 // pred_check_branch
      %140 = sbr.rel (%p137) target = $region28
    $region27: #{bottleneck_forward.5} parent=5 // pred_region
      %s141 = ssub.s32 %s10, 1
      %s142 = smul.u32 32, %s15
      %p143 = scmp.lt.s32.totalorder %s142, 63
      %s144 = scalar_select %p143, %s142, 63
      %s145 = smul.addr %s144, 4
      %s146 = scalar_lea.vmem %s0, %s145
      %p147 = pneg %p36
      %p148 = pneg %p33
      %p149 = pneg %p57
      %p150 = pneg %p54
      %p151 = pneg %p83
      %p152 = pneg %p80
      %s153 = smul.u32 32, %s15
      %p154 = scmp.lt.s32.totalorder %s153, 63
      %s155 = scalar_select %p154, %s153, 63
      %s156 = smul.addr %s155, 8
      %s157 = scalar_lea.vmem %s2, %s156
      %p158 = pneg %p104
      %p159 = pneg %p101
      %s160 = smul.u32 32, %s15
      %p161 = scmp.lt.s32.totalorder %s160, 63
      %s162 = scalar_select %p161, %s160, 63
      %s163 = smul.addr %s162, 4
      %s164 = scalar_lea.vmem %s0, %s163
      %s165 = smul.u32 32, %s15
      %s166 = smul.u32 32, %s15
      %p167 = scmp.lt.s32.totalorder %s166, 63
      %s168 = scalar_select %p167, %s166, 63
      %s169 = smul.addr %s168, 8
      %s170 = scalar_lea.vmem %s2, %s169
      %s171 = smul.u32 32, %s15
      %p173 = scmp.eq.s32.totalorder %s15, 0
      // Predicated region
      $region29: #{bottleneck_forward.5} parent=27 // pred_check
        %p174 = pneg %p173
      $region30: #{bottleneck_forward.5} parent=27 // pred_check_branch
        %176 = sbr.rel (%p174) target = $region32
      $region31: #{bottleneck_forward.5} parent=27 // pred_region
        %177 = vst [vmem:[%s3] sm:$0xff] 0.0
      $region32: #{bottleneck_forward.5} parent=27 // pred_fallthru
        _
      %v178 = vld [vmem:[%s164] sm:$0xf]
      %v179 = vld [vmem:[%s164 + $0x4] sm:$0xf]
      %v180 = vld [vmem:[%s164 + $0x8] sm:$0xf]
      %v181 = vld [vmem:[%s164 + $0xc] sm:$0xf]
      %v182 = vld [vmem:[%s164 + $0x10] sm:$0xf]
      %v183 = vld [vmem:[%s164 + $0x14] sm:$0xf]
      %v184 = vld [vmem:[%s164 + $0x18] sm:$0xf]
      %v185 = vld [vmem:[%s164 + $0x1c] sm:$0xf]
      %v186 = vld [vmem:[%s164 + $0x20] sm:$0xf]
      %v187 = vld [vmem:[%s164 + $0x24] sm:$0xf]
      %v188 = vld [vmem:[%s164 + $0x28] sm:$0xf]
      %v189 = vld [vmem:[%s164 + $0x2c] sm:$0xf]
      %v190 = vld [vmem:[%s164 + $0x30] sm:$0xf]
      %v191 = vld [vmem:[%s164 + $0x34] sm:$0xf]
      %v192 = vld [vmem:[%s164 + $0x38] sm:$0xf]
      %v193 = vld [vmem:[%s164 + $0x3c] sm:$0xf]
      %v194 = vld [vmem:[%s164 + $0x40] sm:$0xf]
      %v195 = vld [vmem:[%s164 + $0x44] sm:$0xf]
      %v196 = vld [vmem:[%s164 + $0x48] sm:$0xf]
      %v197 = vld [vmem:[%s164 + $0x4c] sm:$0xf]
      %v198 = vld [vmem:[%s164 + $0x50] sm:$0xf]
      %v199 = vld [vmem:[%s164 + $0x54] sm:$0xf]
      %v200 = vld [vmem:[%s164 + $0x58] sm:$0xf]
      %v201 = vld [vmem:[%s164 + $0x5c] sm:$0xf]
      %v202 = vld [vmem:[%s164 + $0x60] sm:$0xf]
      %v203 = vld [vmem:[%s164 + $0x64] sm:$0xf]
      %v204 = vld [vmem:[%s164 + $0x68] sm:$0xf]
      %v205 = vld [vmem:[%s164 + $0x6c] sm:$0xf]
      %v206 = vld [vmem:[%s164 + $0x70] sm:$0xf]
      %v207 = vld [vmem:[%s164 + $0x74] sm:$0xf]
      %v208 = vld [vmem:[%s164 + $0x78] sm:$0xf]
      %v209 = vld [vmem:[%s164 + $0x7c] sm:$0xf]
      %v210 = vld [vmem:[%s1] sm:$0xf]
      %v211 = vld [vmem:[%s1 + $0x4] sm:$0xf]
      %v212 = vld [vmem:[%s1 + $0x8] sm:$0xf]
      %v213 = vld [vmem:[%s1 + $0xc] sm:$0xf]
      %v214 = vld [vmem:[%s1 + $0x10] sm:$0xf]
      %v215 = vld [vmem:[%s1 + $0x14] sm:$0xf]
      %v216 = vld [vmem:[%s1 + $0x18] sm:$0xf]
      %v217 = vld [vmem:[%s1 + $0x1c] sm:$0xf]
      %v218 = vld [vmem:[%s1 + $0x20] sm:$0xf]
      %v219 = vld [vmem:[%s1 + $0x24] sm:$0xf]
      %v220 = vld [vmem:[%s1 + $0x28] sm:$0xf]
      %v221 = vld [vmem:[%s1 + $0x2c] sm:$0xf]
      %v222 = vld [vmem:[%s1 + $0x30] sm:$0xf]
      %v223 = vld [vmem:[%s1 + $0x34] sm:$0xf]
      %v224 = vld [vmem:[%s1 + $0x38] sm:$0xf]
      %v225 = vld [vmem:[%s1 + $0x3c] sm:$0xf]
      %v258 = vunpack.c.l.b16 %v178
      %v259 = vunpack.c.l.b16 %v179
      %v260 = vunpack.c.l.b16 %v180
      %v261 = vunpack.c.l.b16 %v181
      %v262 = vunpack.c.l.b16 %v182
      %v263 = vunpack.c.l.b16 %v183
      %v264 = vunpack.c.l.b16 %v184
      %v265 = vunpack.c.l.b16 %v185
      %v266 = vunpack.c.l.b16 %v186
      %v267 = vunpack.c.l.b16 %v187
      %v268 = vunpack.c.l.b16 %v188
      %v269 = vunpack.c.l.b16 %v189
      %v270 = vunpack.c.l.b16 %v190
      %v271 = vunpack.c.l.b16 %v191
      %v272 = vunpack.c.l.b16 %v192
      %v273 = vunpack.c.l.b16 %v193
      %v274 = vunpack.c.l.b16 %v194
      %v275 = vunpack.c.l.b16 %v195
      %v276 = vunpack.c.l.b16 %v196
      %v277 = vunpack.c.l.b16 %v197
      %v278 = vunpack.c.l.b16 %v198
      %v279 = vunpack.c.l.b16 %v199
      %v280 = vunpack.c.l.b16 %v200
      %v281 = vunpack.c.l.b16 %v201
      %v282 = vunpack.c.l.b16 %v202
      %v283 = vunpack.c.l.b16 %v203
      %v284 = vunpack.c.l.b16 %v204
      %v285 = vunpack.c.l.b16 %v205
      %v286 = vunpack.c.l.b16 %v206
      %v287 = vunpack.c.l.b16 %v207
      %v288 = vunpack.c.l.b16 %v208
      %v289 = vunpack.c.l.b16 %v209
      %v290 = vpack.c.b16 %v259, %v258
      %v291 = vpack.c.b16 %v261, %v260
      %v292 = vpack.c.b16 %v263, %v262
      %v293 = vpack.c.b16 %v265, %v264
      %v294 = vpack.c.b16 %v267, %v266
      %v295 = vpack.c.b16 %v269, %v268
      %v296 = vpack.c.b16 %v271, %v270
      %v297 = vpack.c.b16 %v273, %v272
      %v298 = vpack.c.b16 %v275, %v274
      %v299 = vpack.c.b16 %v277, %v276
      %v300 = vpack.c.b16 %v279, %v278
      %v301 = vpack.c.b16 %v281, %v280
      %v302 = vpack.c.b16 %v283, %v282
      %v303 = vpack.c.b16 %v285, %v284
      %v304 = vpack.c.b16 %v287, %v286
      %v305 = vpack.c.b16 %v289, %v288
      %v338 = vunpack.c.l.b16 %v210
      %v339 = vunpack.c.l.b16 %v211
      %v340 = vunpack.c.l.b16 %v212
      %v341 = vunpack.c.l.b16 %v213
      %v342 = vunpack.c.l.b16 %v214
      %v343 = vunpack.c.l.b16 %v215
      %v344 = vunpack.c.l.b16 %v216
      %v345 = vunpack.c.l.b16 %v217
      %v346 = vunpack.c.l.b16 %v218
      %v347 = vunpack.c.l.b16 %v219
      %v348 = vunpack.c.l.b16 %v220
      %v349 = vunpack.c.l.b16 %v221
      %v350 = vunpack.c.l.b16 %v222
      %v351 = vunpack.c.l.b16 %v223
      %v352 = vunpack.c.l.b16 %v224
      %v353 = vunpack.c.l.b16 %v225
      %v354 = vpack.c.b16 %v339, %v338
      %v355 = vpack.c.b16 %v341, %v340
      %v356 = vpack.c.b16 %v343, %v342
      %v357 = vpack.c.b16 %v345, %v344
      %v358 = vpack.c.b16 %v347, %v346
      %v359 = vpack.c.b16 %v349, %v348
      %v360 = vpack.c.b16 %v351, %v350
      %v361 = vpack.c.b16 %v353, %v352
      %370 = vmatprep.subr.bf16.mxu0 0
      %371 = vmatpush1.bf16.msra.mxu0 %v361
      %372 = vmatprep.subr.bf16.mxu0 0
      %373 = vmatpush1.bf16.msra.mxu0 %v360
      %374 = vmatprep.subr.bf16.mxu0 0
      %375 = vmatpush1.bf16.msra.mxu0 %v359
      %376 = vmatprep.subr.bf16.mxu0 0
      %377 = vmatpush1.bf16.msra.mxu0 %v358
      %378 = vmatprep.subr.bf16.mxu0 0
      %379 = vmatpush1.bf16.msra.mxu0 %v357
      %380 = vmatprep.subr.bf16.mxu0 0
      %381 = vmatpush1.bf16.msra.mxu0 %v356
      %382 = vmatprep.subr.bf16.mxu0 0
      %383 = vmatpush1.bf16.msra.mxu0 %v355
      %384 = vmatprep.subr.bf16.mxu0 0
      %385 = vmatpush1.bf16.msra.mxu0 %v354
      %386 = vmatprep.subr.bf16.mxu0 0
      %387 = vmatpush2.bf16.msra.mxu0 0
      %388 = vmatprep.subr.bf16.mxu0 0
      %389 = vmatpush2.bf16.msra.mxu0 0
      %390 = vmatprep.subr.bf16.mxu0 0
      %391 = vmatpush2.bf16.msra.mxu0 0
      %392 = vmatprep.subr.bf16.mxu0 0
      %393 = vmatpush2.bf16.msra.mxu0 0
      %394 = vmatprep.subr.bf16.mxu0 0
      %395 = vmatpush2.bf16.msra.mxu0 0
      %396 = vmatprep.subr.bf16.mxu0 0
      %397 = vmatpush2.bf16.msra.mxu0 0
      %398 = vmatprep.subr.bf16.mxu0 0
      %399 = vmatpush2.bf16.msra.mxu0 0
      %400 = vmatprep.subr.bf16.mxu0 0
      %401 = vmatpush2.bf16.msra.mxu0 0
      %402 = vmatprep.mubr.bf16.mxu0 0
      %403 = vmatmul.mubr.bf16.gmra.mxu0 %v290
      %v404 = vpop.f32.mrf.mxu0
      %v405 = vadd.f32 0.0, %v404
      %v406 = vpop.f32.mrf.mxu0
      %v407 = vpop.f32.mrf.mxu0
      %v408 = vadd.f32 0.0, %v407
      %v409 = vpop.f32.mrf.mxu0
      %410 = vmatprep.mubr.bf16.mxu0 0
      %411 = vmatmul.mubr.bf16.gmra.mxu0 %v291
      %v412 = vpop.f32.mrf.mxu0
      %v413 = vadd.f32 0.0, %v412
      %v414 = vpop.f32.mrf.mxu0
      %v415 = vpop.f32.mrf.mxu0
      %v416 = vadd.f32 0.0, %v415
      %v417 = vpop.f32.mrf.mxu0
      %418 = vmatprep.mubr.bf16.mxu0 0
      %419 = vmatmul.mubr.bf16.gmra.mxu0 %v292
      %v420 = vpop.f32.mrf.mxu0
      %v421 = vadd.f32 0.0, %v420
      %v422 = vpop.f32.mrf.mxu0
      %v423 = vpop.f32.mrf.mxu0
      %v424 = vadd.f32 0.0, %v423
      %v425 = vpop.f32.mrf.mxu0
      %426 = vmatprep.mubr.bf16.mxu0 0
      %427 = vmatmul.mubr.bf16.gmra.mxu0 %v293
      %v428 = vpop.f32.mrf.mxu0
      %v429 = vadd.f32 0.0, %v428
      %v430 = vpop.f32.mrf.mxu0
      %v431 = vpop.f32.mrf.mxu0
      %v432 = vadd.f32 0.0, %v431
      %v433 = vpop.f32.mrf.mxu0
      %434 = vmatprep.mubr.bf16.mxu0 0
      %435 = vmatmul.mubr.bf16.gmra.mxu0 %v294
      %v436 = vpop.f32.mrf.mxu0
      %v437 = vadd.f32 0.0, %v436
      %v438 = vpop.f32.mrf.mxu0
      %v439 = vpop.f32.mrf.mxu0
      %v440 = vadd.f32 0.0, %v439
      %v441 = vpop.f32.mrf.mxu0
      %442 = vmatprep.mubr.bf16.mxu0 0
      %443 = vmatmul.mubr.bf16.gmra.mxu0 %v295
      %v444 = vpop.f32.mrf.mxu0
      %v445 = vadd.f32 0.0, %v444
      %v446 = vpop.f32.mrf.mxu0
      %v447 = vpop.f32.mrf.mxu0
      %v448 = vadd.f32 0.0, %v447
      %v449 = vpop.f32.mrf.mxu0
      %450 = vmatprep.mubr.bf16.mxu0 0
      %451 = vmatmul.mubr.bf16.gmra.mxu0 %v296
      %v452 = vpop.f32.mrf.mxu0
      %v453 = vadd.f32 0.0, %v452
      %v454 = vpop.f32.mrf.mxu0
      %v455 = vpop.f32.mrf.mxu0
      %v456 = vadd.f32 0.0, %v455
      %v457 = vpop.f32.mrf.mxu0
      %458 = vmatprep.mubr.bf16.mxu0 0
      %459 = vmatmul.mubr.bf16.gmra.mxu0 %v297
      %v460 = vpop.f32.mrf.mxu0
      %v461 = vadd.f32 0.0, %v460
      %v462 = vpop.f32.mrf.mxu0
      %v463 = vpop.f32.mrf.mxu0
      %v464 = vadd.f32 0.0, %v463
      %v465 = vpop.f32.mrf.mxu0
      %466 = vmatprep.mubr.bf16.mxu0 0
      %467 = vmatmul.mubr.bf16.gmra.mxu0 %v298
      %v468 = vpop.f32.mrf.mxu0
      %v469 = vadd.f32 0.0, %v468
      %v470 = vpop.f32.mrf.mxu0
      %v471 = vpop.f32.mrf.mxu0
      %v472 = vadd.f32 0.0, %v471
      %v473 = vpop.f32.mrf.mxu0
      %474 = vmatprep.mubr.bf16.mxu0 0
      %475 = vmatmul.mubr.bf16.gmra.mxu0 %v299
      %v476 = vpop.f32.mrf.mxu0
      %v477 = vadd.f32 0.0, %v476
      %v478 = vpop.f32.mrf.mxu0
      %v479 = vpop.f32.mrf.mxu0
      %v480 = vadd.f32 0.0, %v479
      %v481 = vpop.f32.mrf.mxu0
      %482 = vmatprep.mubr.bf16.mxu0 0
      %483 = vmatmul.mubr.bf16.gmra.mxu0 %v300
      %v484 = vpop.f32.mrf.mxu0
      %v485 = vadd.f32 0.0, %v484
      %v486 = vpop.f32.mrf.mxu0
      %v487 = vpop.f32.mrf.mxu0
      %v488 = vadd.f32 0.0, %v487
      %v489 = vpop.f32.mrf.mxu0
      %490 = vmatprep.mubr.bf16.mxu0 0
      %491 = vmatmul.mubr.bf16.gmra.mxu0 %v301
      %v492 = vpop.f32.mrf.mxu0
      %v493 = vadd.f32 0.0, %v492
      %v494 = vpop.f32.mrf.mxu0
      %v495 = vpop.f32.mrf.mxu0
      %v496 = vadd.f32 0.0, %v495
      %v497 = vpop.f32.mrf.mxu0
      %498 = vmatprep.mubr.bf16.mxu0 0
      %499 = vmatmul.mubr.bf16.gmra.mxu0 %v302
      %v500 = vpop.f32.mrf.mxu0
      %v501 = vadd.f32 0.0, %v500
      %v502 = vpop.f32.mrf.mxu0
      %v503 = vpop.f32.mrf.mxu0
      %v504 = vadd.f32 0.0, %v503
      %v505 = vpop.f32.mrf.mxu0
      %506 = vmatprep.mubr.bf16.mxu0 0
      %507 = vmatmul.mubr.bf16.gmra.mxu0 %v303
      %v508 = vpop.f32.mrf.mxu0
      %v509 = vadd.f32 0.0, %v508
      %v510 = vpop.f32.mrf.mxu0
      %v511 = vpop.f32.mrf.mxu0
      %v512 = vadd.f32 0.0, %v511
      %v513 = vpop.f32.mrf.mxu0
      %514 = vmatprep.mubr.bf16.mxu0 0
      %515 = vmatmul.mubr.bf16.gmra.mxu0 %v304
      %v516 = vpop.f32.mrf.mxu0
      %v517 = vadd.f32 0.0, %v516
      %v518 = vpop.f32.mrf.mxu0
      %v519 = vpop.f32.mrf.mxu0
      %v520 = vadd.f32 0.0, %v519
      %v521 = vpop.f32.mrf.mxu0
      %522 = vmatprep.mubr.bf16.mxu0 0
      %523 = vmatmul.mubr.bf16.gmra.mxu0 %v305
      %v524 = vpop.f32.mrf.mxu0
      %v525 = vadd.f32 0.0, %v524
      %v526 = vpop.f32.mrf.mxu0
      %v527 = vpop.f32.mrf.mxu0
      %v528 = vadd.f32 0.0, %v527
      %v529 = vpop.f32.mrf.mxu0
      %530 = vdwg.mxu0
      %531 = vst [vmem:[%s170] sm:$0xff] %v405
      %532 = vst [vmem:[%s170 + $0x8] sm:$0xff] %v408
      %533 = vst [vmem:[%s170 + $0x10] sm:$0xff] %v413
      %534 = vst [vmem:[%s170 + $0x18] sm:$0xff] %v416
      %535 = vst [vmem:[%s170 + $0x20] sm:$0xff] %v421
      %536 = vst [vmem:[%s170 + $0x28] sm:$0xff] %v424
      %537 = vst [vmem:[%s170 + $0x30] sm:$0xff] %v429
      %538 = vst [vmem:[%s170 + $0x38] sm:$0xff] %v432
      %539 = vst [vmem:[%s170 + $0x40] sm:$0xff] %v437
      %540 = vst [vmem:[%s170 + $0x48] sm:$0xff] %v440
      %541 = vst [vmem:[%s170 + $0x50] sm:$0xff] %v445
      %542 = vst [vmem:[%s170 + $0x58] sm:$0xff] %v448
      %543 = vst [vmem:[%s170 + $0x60] sm:$0xff] %v453
      %544 = vst [vmem:[%s170 + $0x68] sm:$0xff] %v456
      %545 = vst [vmem:[%s170 + $0x70] sm:$0xff] %v461
      %546 = vst [vmem:[%s170 + $0x78] sm:$0xff] %v464
      %547 = vst [vmem:[%s170 + $0x80] sm:$0xff] %v469
      %548 = vst [vmem:[%s170 + $0x88] sm:$0xff] %v472
      %549 = vst [vmem:[%s170 + $0x90] sm:$0xff] %v477
      %550 = vst [vmem:[%s170 + $0x98] sm:$0xff] %v480
      %551 = vst [vmem:[%s170 + $0xa0] sm:$0xff] %v485
      %552 = vst [vmem:[%s170 + $0xa8] sm:$0xff] %v488
      %553 = vst [vmem:[%s170 + $0xb0] sm:$0xff] %v493
      %554 = vst [vmem:[%s170 + $0xb8] sm:$0xff] %v496
      %555 = vst [vmem:[%s170 + $0xc0] sm:$0xff] %v501
      %556 = vst [vmem:[%s170 + $0xc8] sm:$0xff] %v504
      %557 = vst [vmem:[%s170 + $0xd0] sm:$0xff] %v509
      %558 = vst [vmem:[%s170 + $0xd8] sm:$0xff] %v512
      %559 = vst [vmem:[%s170 + $0xe0] sm:$0xff] %v517
      %560 = vst [vmem:[%s170 + $0xe8] sm:$0xff] %v520
      %561 = vst [vmem:[%s170 + $0xf0] sm:$0xff] %v525
      %562 = vst [vmem:[%s170 + $0xf8] sm:$0xff] %v528
      %v563 = vld [vmem:[%s3] sm:$0x1]
      %v564 = vadd.f32 %v405, %v408
      %v565 = vadd.f32 %v564, %v413
      %v566 = vadd.f32 %v565, %v416
      %v567 = vadd.f32 %v566, %v421
      %v568 = vadd.f32 %v567, %v424
      %v569 = vadd.f32 %v568, %v429
      %v570 = vadd.f32 %v569, %v432
      %v571 = vadd.f32 %v570, %v437
      %v572 = vadd.f32 %v571, %v440
      %v573 = vadd.f32 %v572, %v445
      %v574 = vadd.f32 %v573, %v448
      %v575 = vadd.f32 %v574, %v453
      %v576 = vadd.f32 %v575, %v456
      %v577 = vadd.f32 %v576, %v461
      %v578 = vadd.f32 %v577, %v464
      %v579 = vadd.f32 %v578, %v469
      %v580 = vadd.f32 %v579, %v472
      %v581 = vadd.f32 %v580, %v477
      %v582 = vadd.f32 %v581, %v480
      %v583 = vadd.f32 %v582, %v485
      %v584 = vadd.f32 %v583, %v488
      %v585 = vadd.f32 %v584, %v493
      %v586 = vadd.f32 %v585, %v496
      %v587 = vadd.f32 %v586, %v501
      %v588 = vadd.f32 %v587, %v504
      %v589 = vadd.f32 %v588, %v509
      %v590 = vadd.f32 %v589, %v512
      %v591 = vadd.f32 %v590, %v517
      %v592 = vadd.f32 %v591, %v520
      %v593 = vadd.f32 %v592, %v525
      %v594 = vadd.f32 %v593, %v528
      %v595 = vrot.slane %v594, 4
      %v596 = vadd.f32 %v594, %v595
      %v597 = vrot.slane %v596, 2
      %v598 = vadd.f32 %v596, %v597
      %v599 = vrot.slane %v598, 1
      %v600 = vadd.f32 %v598, %v599
      %v601 = vadd.f32 %v563, %v600
      %602 = vst [vmem:[%s3] sm:$0x1] %v601
      %v603 = vld [vmem:[%s3 + $0x1] sm:$0x1]
      %v604 = vmul.f32 %v405, %v405
      %v605 = vmul.f32 %v408, %v408
      %v606 = vmul.f32 %v413, %v413
      %v607 = vmul.f32 %v416, %v416
      %v608 = vmul.f32 %v421, %v421
      %v609 = vmul.f32 %v424, %v424
      %v610 = vmul.f32 %v429, %v429
      %v611 = vmul.f32 %v432, %v432
      %v612 = vmul.f32 %v437, %v437
      %v613 = vmul.f32 %v440, %v440
      %v614 = vmul.f32 %v445, %v445
      %v615 = vmul.f32 %v448, %v448
      %v616 = vmul.f32 %v453, %v453
      %v617 = vmul.f32 %v456, %v456
      %v618 = vmul.f32 %v461, %v461
      %v619 = vmul.f32 %v464, %v464
      %v620 = vmul.f32 %v469, %v469
      %v621 = vmul.f32 %v472, %v472
      %v622 = vmul.f32 %v477, %v477
      %v623 = vmul.f32 %v480, %v480
      %v624 = vmul.f32 %v485, %v485
      %v625 = vmul.f32 %v488, %v488
      %v626 = vmul.f32 %v493, %v493
      %v627 = vmul.f32 %v496, %v496
      %v628 = vmul.f32 %v501, %v501
      %v629 = vmul.f32 %v504, %v504
      %v630 = vmul.f32 %v509, %v509
      %v631 = vmul.f32 %v512, %v512
      %v632 = vmul.f32 %v517, %v517
      %v633 = vmul.f32 %v520, %v520
      %v634 = vmul.f32 %v525, %v525
      %v635 = vmul.f32 %v528, %v528
      %v636 = vadd.f32 %v604, %v605
      %v637 = vadd.f32 %v636, %v606
      %v638 = vadd.f32 %v637, %v607
      %v639 = vadd.f32 %v638, %v608
      %v640 = vadd.f32 %v639, %v609
      %v641 = vadd.f32 %v640, %v610
      %v642 = vadd.f32 %v641, %v611
      %v643 = vadd.f32 %v642, %v612
      %v644 = vadd.f32 %v643, %v613
      %v645 = vadd.f32 %v644, %v614
      %v646 = vadd.f32 %v645, %v615
      %v647 = vadd.f32 %v646, %v616
      %v648 = vadd.f32 %v647, %v617
      %v649 = vadd.f32 %v648, %v618
      %v650 = vadd.f32 %v649, %v619
      %v651 = vadd.f32 %v650, %v620
      %v652 = vadd.f32 %v651, %v621
      %v653 = vadd.f32 %v652, %v622
      %v654 = vadd.f32 %v653, %v623
      %v655 = vadd.f32 %v654, %v624
      %v656 = vadd.f32 %v655, %v625
      %v657 = vadd.f32 %v656, %v626
      %v658 = vadd.f32 %v657, %v627
      %v659 = vadd.f32 %v658, %v628
      %v660 = vadd.f32 %v659, %v629
      %v661 = vadd.f32 %v660, %v630
      %v662 = vadd.f32 %v661, %v631
      %v663 = vadd.f32 %v662, %v632
      %v664 = vadd.f32 %v663, %v633
      %v665 = vadd.f32 %v664, %v634
      %v666 = vadd.f32 %v665, %v635
      %v667 = vrot.slane %v666, 4
      %v668 = vadd.f32 %v666, %v667
      %v669 = vrot.slane %v668, 2
      %v670 = vadd.f32 %v668, %v669
      %v671 = vrot.slane %v670, 1
      %v672 = vadd.f32 %v670, %v671
      %v673 = vadd.f32 %v603, %v672
      %674 = vst [vmem:[%s3 + $0x1] sm:$0x1] %v673
      %s675 = smul.u32 32, %s15
      %p676 = scmp.lt.s32.totalorder %s675, 63
      %s677 = scalar_select %p676, %s675, 63
      %s678 = smul.addr %s677, 8
      %s679 = scalar_lea.vmem %s2, %s678
      // Predicated region
      $region33: #{bottleneck_forward.5} parent=27 // pred_check
        %p680 = pneg %p80
      $region34: #{bottleneck_forward.5} parent=27 // pred_check_branch
        %682 = sbr.rel (%p680) target = $region36
      $region35: #{bottleneck_forward.5} parent=27 // pred_region
        %s683 = smul.u32 32, %s15
      $region36: #{bottleneck_forward.5} parent=27 // pred_fallthru
        _
      // Predicated region
      $region37: #{bottleneck_forward.5} parent=27 // pred_check
        %p684 = pneg %p101
      $region38: #{bottleneck_forward.5} parent=27 // pred_check_branch
        %686 = sbr.rel (%p684) target = $region40
      $region39: #{bottleneck_forward.5} parent=27 // pred_region
        _
      $region40: #{bottleneck_forward.5} parent=27 // pred_fallthru
        _
      // Predicated region
      $region41: #{bottleneck_forward.5} parent=27 // pred_check
        %p687 = pneg %p101
      $region42: #{bottleneck_forward.5} parent=27 // pred_check_branch
        %689 = sbr.rel (%p687) target = $region44
      $region43: #{bottleneck_forward.5} parent=27 // pred_region
        _
      $region44: #{bottleneck_forward.5} parent=27 // pred_fallthru
        _
    $region28: #{bottleneck_forward.5} parent=5 // pred_fallthru
      _
    %p690 = scmp.le.s32.totalorder 2, %s10
    // Predicated region
    $region45: #{bottleneck_forward.5} parent=5 // pred_check
      %p691 = pneg %p690
    $region46: #{bottleneck_forward.5} parent=5 // pred_check_branch
      %693 = sbr.rel (%p691) target = $region48
    $region47: #{bottleneck_forward.5} parent=5 // pred_region
      %s694 = ssub.s32 %s10, 2
      // Predicated region
      $region49: #{bottleneck_forward.5} parent=47 // pred_check
        %p695 = pneg %p86
      $region50: #{bottleneck_forward.5} parent=47 // pred_check_branch
        %697 = sbr.rel (%p695) target = $region52
      $region51: #{bottleneck_forward.5} parent=47 // pred_region
        %s698 = smul.u32 32, %s16
        %p699 = scmp.lt.s32.totalorder %s698, 63
        %s700 = scalar_select %p699, %s698, 63
        %s701 = smul.addr %s700, 8
        %s702 = scalar_lea.vmem %s2, %s701
      $region52: #{bottleneck_forward.5} parent=47 // pred_fallthru
        _
    $region48: #{bottleneck_forward.5} parent=5 // pred_fallthru
      _
  $region6: #{bottleneck_forward.5} parent=0 // loop_footer
    %s14 = sadd.s32 1, %s10
  $region7: #{bottleneck_forward.5} parent=0 // loop_footer_branch
    %9 = sbr.rel target = $region3
  $region8: #{bottleneck_forward.5} parent=0 // loop_exit
    _

// kernel: bottleneck_forward.9
$region0: #{bottleneck_forward.9}
  #allocation0 [shape = 'u32[]', space=smem, size = 0x4, offset = 0x4, fixed_abs, tag = 'smem constant byte address 0x4 - core index']
  #allocation1 [shape = 'u32[144,128]{1,0:T(1,128)}', space=vmem, size = 0x12000, scoped, tag = 'internal scratch']
  %s0 = inlined_call_operand.vmem [shape: f32[512,128], index: 0, kind: input, shape index: {}]
  %s1 = inlined_call_operand.vmem [shape: f32[1,128], index: 1, kind: input, shape index: {}]
  %s2 = inlined_call_operand.vmem [shape: f32[1,128], index: 2, kind: input, shape index: {}]
  %s3 = inlined_call_operand.vmem [shape: f32[512,128], index: 3, kind: input, shape index: {}]
  %s4 = inlined_call_operand.vmem [shape: f32[512,128], index: 4, kind: output, shape index: {}]
  %s5 = sld [smem:[#allocation0]]
  $region49: #{bottleneck_forward.9} parent=0
    _
  %s7 = ssub.s32 1, %s5
  %s8 = scalar_select 0, %s7, %s5
  loop: start=0, step=1, limit=4
  $region2: #{bottleneck_forward.9} parent=0 // loop_pre_header
    _
  $region3: #{bottleneck_forward.9} parent=0 // loop_header
    %s10 = sphi 0, %s14
    %p11 = scmp.ge.s32.totalorder %s10, 4
    %s20 = sphi 0, %s22
    %s23 = sphi 0, %s20
    %s24 = sphi 0, %s23
    %s40 = sphi 0, %s24
    %s44 = sphi 0, %s44
    %s46 = sphi 0, %s44
    %s47 = sphi 0, %s46
    %s61 = sphi 0, %s47
    %s65 = sphi 0, %s65
    %s67 = sphi 0, %s65
    %s68 = sphi 0, %s67
    %s82 = sphi 0, %s68
    %s88 = sphi 0, %s90
    %s91 = sphi 0, %s88
    %s92 = sphi 0, %s91
    %s108 = sphi 0, %s92
    %s114 = sphi 0, %s116
    %s117 = sphi 0, %s114
    %s118 = sphi 0, %s117
    %s134 = sphi 0, %s118
  $region4: #{bottleneck_forward.9} parent=0 // loop_header_branch
    %13 = sbr.rel (%p11) target = $region8
  $region5: #{bottleneck_forward.9} parent=0 // loop_body
    %s15 = ssub.s32 %s10, 1
    %s16 = ssub.s32 %s10, 2
    %s17 = sadd.s32 %s10, 1
    %s18 = ssub.s32 %s10, %s17
    %p19 = scmp.eq.s32.totalorder %s18, 0
    %s21 = sadd.s32 %s20, 1
    %s22 = scalar_select %p19, %s20, %s21
    %p25 = pneg %p19
    %p26 = scmp.eq.s32.totalorder %s10, 1
    %p27 = por %p25, %p26
    %p28 = scmp.ne.s32.totalorder %s20, %s23
    %p29 = scmp.eq.s32.totalorder %s10, 0
    %p30 = por %p28, %p29
    %p31 = scmp.ne.s32.totalorder %s20, %s23
    %p32 = scmp.eq.s32.totalorder %s15, 1
    %p33 = por %p31, %p32
    %p34 = scmp.ne.s32.totalorder %s23, %s24
    %p35 = scmp.eq.s32.totalorder %s15, 0
    %p36 = por %p34, %p35
    %p37 = scmp.ne.s32.totalorder %s23, %s24
    %p38 = scmp.eq.s32.totalorder %s16, 1
    %p39 = por %p37, %p38
    %p41 = scmp.ne.s32.totalorder %s24, %s40
    %p42 = scmp.eq.s32.totalorder %s16, 0
    %p43 = por %p41, %p42
    %s45 = sadd.s32 %s44, 1
    %p48 = scmp.eq.s32.totalorder %s10, 1
    %p49 = scmp.ne.s32.totalorder %s44, %s46
    %p50 = scmp.eq.s32.totalorder %s10, 0
    %p51 = por %p49, %p50
    %p52 = scmp.ne.s32.totalorder %s44, %s46
    %p53 = scmp.eq.s32.totalorder %s15, 1
    %p54 = por %p52, %p53
    %p55 = scmp.ne.s32.totalorder %s46, %s47
    %p56 = scmp.eq.s32.totalorder %s15, 0
    %p57 = por %p55, %p56
    %p58 = scmp.ne.s32.totalorder %s46, %s47
    %p59 = scmp.eq.s32.totalorder %s16, 1
    %p60 = por %p58, %p59
    %p62 = scmp.ne.s32.totalorder %s47, %s61
    %p63 = scmp.eq.s32.totalorder %s16, 0
    %p64 = por %p62, %p63
    %s66 = sadd.s32 %s65, 1
    %p69 = scmp.eq.s32.totalorder %s10, 1
    %p70 = scmp.ne.s32.totalorder %s65, %s67
    %p71 = scmp.eq.s32.totalorder %s10, 0
    %p72 = por %p70, %p71
    %p73 = scmp.ne.s32.totalorder %s65, %s67
    %p74 = scmp.eq.s32.totalorder %s15, 1
    %p75 = por %p73, %p74
    %p76 = scmp.ne.s32.totalorder %s67, %s68
    %p77 = scmp.eq.s32.totalorder %s15, 0
    %p78 = por %p76, %p77
    %p79 = scmp.ne.s32.totalorder %s67, %s68
    %p80 = scmp.eq.s32.totalorder %s16, 1
    %p81 = por %p79, %p80
    %p83 = scmp.ne.s32.totalorder %s68, %s82
    %p84 = scmp.eq.s32.totalorder %s16, 0
    %p85 = por %p83, %p84
    %s86 = ssub.s32 %s10, %s17
    %p87 = scmp.eq.s32.totalorder %s86, 0
    %s89 = sadd.s32 %s88, 1
    %s90 = scalar_select %p87, %s88, %s89
    %p93 = pneg %p87
    %p94 = scmp.eq.s32.totalorder %s10, 1
    %p95 = por %p93, %p94
    %p96 = scmp.ne.s32.totalorder %s88, %s91
    %p97 = scmp.eq.s32.totalorder %s10, 0
    %p98 = por %p96, %p97
    %p99 = scmp.ne.s32.totalorder %s88, %s91
    %p100 = scmp.eq.s32.totalorder %s15, 1
    %p101 = por %p99, %p100
    %p102 = scmp.ne.s32.totalorder %s91, %s92
    %p103 = scmp.eq.s32.totalorder %s15, 0
    %p104 = por %p102, %p103
    %p105 = scmp.ne.s32.totalorder %s91, %s92
    %p106 = scmp.eq.s32.totalorder %s16, 1
    %p107 = por %p105, %p106
    %p109 = scmp.ne.s32.totalorder %s92, %s108
    %p110 = scmp.eq.s32.totalorder %s16, 0
    %p111 = por %p109, %p110
    %s112 = ssub.s32 %s10, %s17
    %p113 = scmp.eq.s32.totalorder %s112, 0
    %s115 = sadd.s32 %s114, 1
    %s116 = scalar_select %p113, %s114, %s115
    %p119 = pneg %p113
    %p120 = scmp.eq.s32.totalorder %s10, 1
    %p121 = por %p119, %p120
    %p122 = scmp.ne.s32.totalorder %s114, %s117
    %p123 = scmp.eq.s32.totalorder %s10, 0
    %p124 = por %p122, %p123
    %p125 = scmp.ne.s32.totalorder %s114, %s117
    %p126 = scmp.eq.s32.totalorder %s15, 1
    %p127 = por %p125, %p126
    %p128 = scmp.ne.s32.totalorder %s117, %s118
    %p129 = scmp.eq.s32.totalorder %s15, 0
    %p130 = por %p128, %p129
    %p131 = scmp.ne.s32.totalorder %s117, %s118
    %p132 = scmp.eq.s32.totalorder %s16, 1
    %p133 = por %p131, %p132
    %p135 = scmp.ne.s32.totalorder %s118, %s134
    %p136 = scmp.eq.s32.totalorder %s16, 0
    %p137 = por %p135, %p136
    %p138 = scmp.le.s32.totalorder 1, %s10
    %p139 = scmp.lt.s32.totalorder %s10, 3
    %p140 = pnand %p138, %p139
    %p141 = pneg %p140
    // Predicated region
    $region9: #{bottleneck_forward.9} parent=5 // pred_check
      _
    $region10: #{bottleneck_forward.9} parent=5 // pred_check_branch
      %143 = sbr.rel (%p140) target = $region12
    $region11: #{bottleneck_forward.9} parent=5 // pred_region
      %s144 = ssub.s32 %s10, 1
      // Predicated region
      $region13: #{bottleneck_forward.9} parent=11 // pred_check
        %p145 = pneg %p57
      $region14: #{bottleneck_forward.9} parent=11 // pred_check_branch
        %147 = sbr.rel (%p145) target = $region16
      $region15: #{bottleneck_forward.9} parent=11 // pred_region
        _
      $region16: #{bottleneck_forward.9} parent=11 // pred_fallthru
        _
      // Predicated region
      $region17: #{bottleneck_forward.9} parent=11 // pred_check
        %p148 = pneg %p78
      $region18: #{bottleneck_forward.9} parent=11 // pred_check_branch
        %150 = sbr.rel (%p148) target = $region20
      $region19: #{bottleneck_forward.9} parent=11 // pred_region
        _
      $region20: #{bottleneck_forward.9} parent=11 // pred_fallthru
        _
    $region12: #{bottleneck_forward.9} parent=5 // pred_fallthru
      _
    %p151 = scmp.lt.s32.totalorder %s10, 2
    // Predicated region
    $region21: #{bottleneck_forward.9} parent=5 // pred_check
      %p152 = pneg %p151
    $region22: #{bottleneck_forward.9} parent=5 // pred_check_branch
      %154 = sbr.rel (%p152) target = $region24
    $region23: #{bottleneck_forward.9} parent=5 // pred_region
      // Predicated region
      $region25: #{bottleneck_forward.9} parent=23 // pred_check
        %p155 = pneg %p30
      $region26: #{bottleneck_forward.9} parent=23 // pred_check_branch
        %157 = sbr.rel (%p155) target = $region28
      $region27: #{bottleneck_forward.9} parent=23 // pred_region
        %s158 = smul.u32 32, %s10
        %p159 = scmp.lt.s32.totalorder %s158, 63
        %s160 = scalar_select %p159, %s158, 63
        %s161 = smul.addr %s160, 8
        %s162 = scalar_lea.vmem %s0, %s161
        %s163 = smul.u32 32, %s10
      $region28: #{bottleneck_forward.9} parent=23 // pred_fallthru
        _
      // Predicated region
      $region29: #{bottleneck_forward.9} parent=23 // pred_check
        %p164 = pneg %p98
      $region30: #{bottleneck_forward.9} parent=23 // pred_check_branch
        %166 = sbr.rel (%p164) target = $region32
      $region31: #{bottleneck_forward.9} parent=23 // pred_region
        %s167 = smul.u32 32, %s10
        %p168 = scmp.lt.s32.totalorder %s167, 63
        %s169 = scalar_select %p168, %s167, 63
        %s170 = smul.addr %s169, 8
        %s171 = scalar_lea.vmem %s3, %s170
        %s172 = smul.u32 32, %s10
      $region32: #{bottleneck_forward.9} parent=23 // pred_fallthru
        _
    $region24: #{bottleneck_forward.9} parent=5 // pred_fallthru
      _
    %p173 = scmp.le.s32.totalorder 1, %s10
    %p174 = scmp.lt.s32.totalorder %s10, 3
    %p175 = pnand %p173, %p174
    %p176 = pneg %p175
    // Predicated region
    $region33: #{bottleneck_forward.9} parent=5 // pred_check
      _
    $region34: #{bottleneck_forward.9} parent=5 // pred_check_branch
      %178 = sbr.rel (%p175) target = $region36
    $region35: #{bottleneck_forward.9} parent=5 // pred_region
      %s179 = ssub.s32 %s10, 1
      %s180 = smul.u32 32, %s15
      %p181 = scmp.lt.s32.totalorder %s180, 63
      %s182 = scalar_select %p181, %s180, 63
      %s183 = smul.addr %s182, 8
      %s184 = scalar_lea.vmem %s0, %s183
      %p185 = pneg %p36
      %p186 = pneg %p33
      %p187 = pneg %p57
      %p188 = pneg %p54
      %p189 = pneg %p78
      %p190 = pneg %p75
      %s191 = smul.u32 32, %s15
      %p192 = scmp.lt.s32.totalorder %s191, 63
      %s193 = scalar_select %p192, %s191, 63
      %s194 = smul.addr %s193, 8
      %s195 = scalar_lea.vmem %s3, %s194
      %p196 = pneg %p104
      %p197 = pneg %p101
      %p198 = pneg %p130
      %p199 = pneg %p127
      %s200 = smul.u32 32, %s15
      %p201 = scmp.lt.s32.totalorder %s200, 63
      %s202 = scalar_select %p201, %s200, 63
      %s203 = smul.addr %s202, 8
      %s204 = scalar_lea.vmem %s4, %s203
      %s205 = smul.u32 32, %s15
      %p206 = scmp.lt.s32.totalorder %s205, 63
      %s207 = scalar_select %p206, %s205, 63
      %s208 = smul.addr %s207, 8
      %s209 = scalar_lea.vmem %s0, %s208
      %s210 = smul.u32 32, %s15
      %s211 = smul.u32 32, %s15
      %p212 = scmp.lt.s32.totalorder %s211, 63
      %s213 = scalar_select %p212, %s211, 63
      %s214 = smul.addr %s213, 8
      %s215 = scalar_lea.vmem %s3, %s214
      %s216 = smul.u32 32, %s15
      %s217 = smul.u32 32, %s15
      %p218 = scmp.lt.s32.totalorder %s217, 63
      %s219 = scalar_select %p218, %s217, 63
      %s220 = smul.addr %s219, 8
      %s221 = scalar_lea.vmem %s4, %s220
      %s222 = smul.u32 32, %s15
      %v223 = vld [vmem:[%s209] sm:$0xff]
      %v224 = vld [vmem:[%s209 + $0x8] sm:$0xff]
      %v225 = vld [vmem:[%s209 + $0x10] sm:$0xff]
      %v226 = vld [vmem:[%s209 + $0x18] sm:$0xff]
      %v227 = vld [vmem:[%s209 + $0x20] sm:$0xff]
      %v228 = vld [vmem:[%s209 + $0x28] sm:$0xff]
      %v229 = vld [vmem:[%s209 + $0x30] sm:$0xff]
      %v230 = vld [vmem:[%s209 + $0x38] sm:$0xff]
      %v231 = vld [vmem:[%s209 + $0x40] sm:$0xff]
      %v232 = vld [vmem:[%s209 + $0x48] sm:$0xff]
      %v233 = vld [vmem:[%s209 + $0x50] sm:$0xff]
      %v234 = vld [vmem:[%s209 + $0x58] sm:$0xff]
      %v235 = vld [vmem:[%s209 + $0x60] sm:$0xff]
      %v236 = vld [vmem:[%s209 + $0x68] sm:$0xff]
      %v237 = vld [vmem:[%s209 + $0x70] sm:$0xff]
      %v238 = vld [vmem:[%s209 + $0x78] sm:$0xff]
      %v239 = vld [vmem:[%s209 + $0x80] sm:$0xff]
      %v240 = vld [vmem:[%s209 + $0x88] sm:$0xff]
      %v241 = vld [vmem:[%s209 + $0x90] sm:$0xff]
      %v242 = vld [vmem:[%s209 + $0x98] sm:$0xff]
      %v243 = vld [vmem:[%s209 + $0xa0] sm:$0xff]
      %v244 = vld [vmem:[%s209 + $0xa8] sm:$0xff]
      %v245 = vld [vmem:[%s209 + $0xb0] sm:$0xff]
      %v246 = vld [vmem:[%s209 + $0xb8] sm:$0xff]
      %v247 = vld [vmem:[%s209 + $0xc0] sm:$0xff]
      %v248 = vld [vmem:[%s209 + $0xc8] sm:$0xff]
      %v249 = vld [vmem:[%s209 + $0xd0] sm:$0xff]
      %v250 = vld [vmem:[%s209 + $0xd8] sm:$0xff]
      %v251 = vld [vmem:[%s209 + $0xe0] sm:$0xff]
      %v252 = vld [vmem:[%s209 + $0xe8] sm:$0xff]
      %v253 = vld [vmem:[%s209 + $0xf0] sm:$0xff]
      %v254 = vld [vmem:[%s209 + $0xf8] sm:$0xff]
      %v255 = vld [vmem:[%s1] sm:$0x1]
      %v257 = vlaneseq
      %v258 = vshrl.u32 %v257, 7
      %v259 = vsub.s32 0, %v258
      %v260 = vrot.slane %v255, %v259
      %v262 = vmul.f32 %v223, %v260
      %v263 = vmul.f32 %v224, %v260
      %v264 = vmul.f32 %v225, %v260
      %v265 = vmul.f32 %v226, %v260
      %v266 = vmul.f32 %v227, %v260
      %v267 = vmul.f32 %v228, %v260
      %v268 = vmul.f32 %v229, %v260
      %v269 = vmul.f32 %v230, %v260
      %v270 = vmul.f32 %v231, %v260
      %v271 = vmul.f32 %v232, %v260
      %v272 = vmul.f32 %v233, %v260
      %v273 = vmul.f32 %v234, %v260
      %v274 = vmul.f32 %v235, %v260
      %v275 = vmul.f32 %v236, %v260
      %v276 = vmul.f32 %v237, %v260
      %v277 = vmul.f32 %v238, %v260
      %v278 = vmul.f32 %v239, %v260
      %v279 = vmul.f32 %v240, %v260
      %v280 = vmul.f32 %v241, %v260
      %v281 = vmul.f32 %v242, %v260
      %v282 = vmul.f32 %v243, %v260
      %v283 = vmul.f32 %v244, %v260
      %v284 = vmul.f32 %v245, %v260
      %v285 = vmul.f32 %v246, %v260
      %v286 = vmul.f32 %v247, %v260
      %v287 = vmul.f32 %v248, %v260
      %v288 = vmul.f32 %v249, %v260
      %v289 = vmul.f32 %v250, %v260
      %v290 = vmul.f32 %v251, %v260
      %v291 = vmul.f32 %v252, %v260
      %v292 = vmul.f32 %v253, %v260
      %v293 = vmul.f32 %v254, %v260
      %v294 = vld [vmem:[%s2] sm:$0x1]
      %v296 = vlaneseq
      %v297 = vshrl.u32 %v296, 7
      %v298 = vsub.s32 0, %v297
      %v299 = vrot.slane %v294, %v298
      %v301 = vadd.f32 %v262, %v299
      %v302 = vadd.f32 %v263, %v299
      %v303 = vadd.f32 %v264, %v299
      %v304 = vadd.f32 %v265, %v299
      %v305 = vadd.f32 %v266, %v299
      %v306 = vadd.f32 %v267, %v299
      %v307 = vadd.f32 %v268, %v299
      %v308 = vadd.f32 %v269, %v299
      %v309 = vadd.f32 %v270, %v299
      %v310 = vadd.f32 %v271, %v299
      %v311 = vadd.f32 %v272, %v299
      %v312 = vadd.f32 %v273, %v299
      %v313 = vadd.f32 %v274, %v299
      %v314 = vadd.f32 %v275, %v299
      %v315 = vadd.f32 %v276, %v299
      %v316 = vadd.f32 %v277, %v299
      %v317 = vadd.f32 %v278, %v299
      %v318 = vadd.f32 %v279, %v299
      %v319 = vadd.f32 %v280, %v299
      %v320 = vadd.f32 %v281, %v299
      %v321 = vadd.f32 %v282, %v299
      %v322 = vadd.f32 %v283, %v299
      %v323 = vadd.f32 %v284, %v299
      %v324 = vadd.f32 %v285, %v299
      %v325 = vadd.f32 %v286, %v299
      %v326 = vadd.f32 %v287, %v299
      %v327 = vadd.f32 %v288, %v299
      %v328 = vadd.f32 %v289, %v299
      %v329 = vadd.f32 %v290, %v299
      %v330 = vadd.f32 %v291, %v299
      %v331 = vadd.f32 %v292, %v299
      %v332 = vadd.f32 %v293, %v299
      %v333 = vld [vmem:[%s215] sm:$0xff]
      %v334 = vld [vmem:[%s215 + $0x8] sm:$0xff]
      %v335 = vld [vmem:[%s215 + $0x10] sm:$0xff]
      %v336 = vld [vmem:[%s215 + $0x18] sm:$0xff]
      %v337 = vld [vmem:[%s215 + $0x20] sm:$0xff]
      %v338 = vld [vmem:[%s215 + $0x28] sm:$0xff]
      %v339 = vld [vmem:[%s215 + $0x30] sm:$0xff]
      %v340 = vld [vmem:[%s215 + $0x38] sm:$0xff]
      %v341 = vld [vmem:[%s215 + $0x40] sm:$0xff]
      %v342 = vld [vmem:[%s215 + $0x48] sm:$0xff]
      %v343 = vld [vmem:[%s215 + $0x50] sm:$0xff]
      %v344 = vld [vmem:[%s215 + $0x58] sm:$0xff]
      %v345 = vld [vmem:[%s215 + $0x60] sm:$0xff]
      %v346 = vld [vmem:[%s215 + $0x68] sm:$0xff]
      %v347 = vld [vmem:[%s215 + $0x70] sm:$0xff]
      %v348 = vld [vmem:[%s215 + $0x78] sm:$0xff]
      %v349 = vld [vmem:[%s215 + $0x80] sm:$0xff]
      %v350 = vld [vmem:[%s215 + $0x88] sm:$0xff]
      %v351 = vld [vmem:[%s215 + $0x90] sm:$0xff]
      %v352 = vld [vmem:[%s215 + $0x98] sm:$0xff]
      %v353 = vld [vmem:[%s215 + $0xa0] sm:$0xff]
      %v354 = vld [vmem:[%s215 + $0xa8] sm:$0xff]
      %v355 = vld [vmem:[%s215 + $0xb0] sm:$0xff]
      %v356 = vld [vmem:[%s215 + $0xb8] sm:$0xff]
      %v357 = vld [vmem:[%s215 + $0xc0] sm:$0xff]
      %v358 = vld [vmem:[%s215 + $0xc8] sm:$0xff]
      %v359 = vld [vmem:[%s215 + $0xd0] sm:$0xff]
      %v360 = vld [vmem:[%s215 + $0xd8] sm:$0xff]
      %v361 = vld [vmem:[%s215 + $0xe0] sm:$0xff]
      %v362 = vld [vmem:[%s215 + $0xe8] sm:$0xff]
      %v363 = vld [vmem:[%s215 + $0xf0] sm:$0xff]
      %v364 = vld [vmem:[%s215 + $0xf8] sm:$0xff]
      %v365 = vadd.f32 %v301, %v333
      %v366 = vadd.f32 %v302, %v334
      %v367 = vadd.f32 %v303, %v335
      %v368 = vadd.f32 %v304, %v336
      %v369 = vadd.f32 %v305, %v337
      %v370 = vadd.f32 %v306, %v338
      %v371 = vadd.f32 %v307, %v339
      %v372 = vadd.f32 %v308, %v340
      %v373 = vadd.f32 %v309, %v341
      %v374 = vadd.f32 %v310, %v342
      %v375 = vadd.f32 %v311, %v343
      %v376 = vadd.f32 %v312, %v344
      %v377 = vadd.f32 %v313, %v345
      %v378 = vadd.f32 %v314, %v346
      %v379 = vadd.f32 %v315, %v347
      %v380 = vadd.f32 %v316, %v348
      %v381 = vadd.f32 %v317, %v349
      %v382 = vadd.f32 %v318, %v350
      %v383 = vadd.f32 %v319, %v351
      %v384 = vadd.f32 %v320, %v352
      %v385 = vadd.f32 %v321, %v353
      %v386 = vadd.f32 %v322, %v354
      %v387 = vadd.f32 %v323, %v355
      %v388 = vadd.f32 %v324, %v356
      %v389 = vadd.f32 %v325, %v357
      %v390 = vadd.f32 %v326, %v358
      %v391 = vadd.f32 %v327, %v359
      %v392 = vadd.f32 %v328, %v360
      %v393 = vadd.f32 %v329, %v361
      %v394 = vadd.f32 %v330, %v362
      %v395 = vadd.f32 %v331, %v363
      %v396 = vadd.f32 %v332, %v364
      %397 = vst [vmem:[%s221] sm:$0xff] %v365
      %398 = vst [vmem:[%s221 + $0x8] sm:$0xff] %v366
      %399 = vst [vmem:[%s221 + $0x10] sm:$0xff] %v367
      %400 = vst [vmem:[%s221 + $0x18] sm:$0xff] %v368
      %401 = vst [vmem:[%s221 + $0x20] sm:$0xff] %v369
      %402 = vst [vmem:[%s221 + $0x28] sm:$0xff] %v370
      %403 = vst [vmem:[%s221 + $0x30] sm:$0xff] %v371
      %404 = vst [vmem:[%s221 + $0x38] sm:$0xff] %v372
      %405 = vst [vmem:[%s221 + $0x40] sm:$0xff] %v373
      %406 = vst [vmem:[%s221 + $0x48] sm:$0xff] %v374
      %407 = vst [vmem:[%s221 + $0x50] sm:$0xff] %v375
      %408 = vst [vmem:[%s221 + $0x58] sm:$0xff] %v376
      %409 = vst [vmem:[%s221 + $0x60] sm:$0xff] %v377
      %410 = vst [vmem:[%s221 + $0x68] sm:$0xff] %v378
      %411 = vst [vmem:[%s221 + $0x70] sm:$0xff] %v379
      %412 = vst [vmem:[%s221 + $0x78] sm:$0xff] %v380
      %413 = vst [vmem:[%s221 + $0x80] sm:$0xff] %v381
      %414 = vst [vmem:[%s221 + $0x88] sm:$0xff] %v382
      %415 = vst [vmem:[%s221 + $0x90] sm:$0xff] %v383
      %416 = vst [vmem:[%s221 + $0x98] sm:$0xff] %v384
      %417 = vst [vmem:[%s221 + $0xa0] sm:$0xff] %v385
      %418 = vst [vmem:[%s221 + $0xa8] sm:$0xff] %v386
      %419 = vst [vmem:[%s221 + $0xb0] sm:$0xff] %v387
      %420 = vst [vmem:[%s221 + $0xb8] sm:$0xff] %v388
      %421 = vst [vmem:[%s221 + $0xc0] sm:$0xff] %v389
      %422 = vst [vmem:[%s221 + $0xc8] sm:$0xff] %v390
      %423 = vst [vmem:[%s221 + $0xd0] sm:$0xff] %v391
      %424 = vst [vmem:[%s221 + $0xd8] sm:$0xff] %v392
      %425 = vst [vmem:[%s221 + $0xe0] sm:$0xff] %v393
      %426 = vst [vmem:[%s221 + $0xe8] sm:$0xff] %v394
      %427 = vst [vmem:[%s221 + $0xf0] sm:$0xff] %v395
      %428 = vst [vmem:[%s221 + $0xf8] sm:$0xff] %v396
      %s429 = smul.u32 32, %s15
      %p430 = scmp.lt.s32.totalorder %s429, 63
      %s431 = scalar_select %p430, %s429, 63
      %s432 = smul.addr %s431, 8
      %s433 = scalar_lea.vmem %s4, %s432
      // Predicated region
      $region37: #{bottleneck_forward.9} parent=35 // pred_check
        %p434 = pneg %p127
      $region38: #{bottleneck_forward.9} parent=35 // pred_check_branch
        %436 = sbr.rel (%p434) target = $region40
      $region39: #{bottleneck_forward.9} parent=35 // pred_region
        %s437 = smul.u32 32, %s15
      $region40: #{bottleneck_forward.9} parent=35 // pred_fallthru
        _
    $region36: #{bottleneck_forward.9} parent=5 // pred_fallthru
      _
    %p438 = scmp.le.s32.totalorder 2, %s10
    // Predicated region
    $region41: #{bottleneck_forward.9} parent=5 // pred_check
      %p439 = pneg %p438
    $region42: #{bottleneck_forward.9} parent=5 // pred_check_branch
      %441 = sbr.rel (%p439) target = $region44
    $region43: #{bottleneck_forward.9} parent=5 // pred_region
      %s442 = ssub.s32 %s10, 2
      // Predicated region
      $region45: #{bottleneck_forward.9} parent=43 // pred_check
        %p443 = pneg %p133
      $region46: #{bottleneck_forward.9} parent=43 // pred_check_branch
        %445 = sbr.rel (%p443) target = $region48
      $region47: #{bottleneck_forward.9} parent=43 // pred_region
        %s446 = smul.u32 32, %s16
        %p447 = scmp.lt.s32.totalorder %s446, 63
        %s448 = scalar_select %p447, %s446, 63
        %s449 = smul.addr %s448, 8
        %s450 = scalar_lea.vmem %s4, %s449
      $region48: #{bottleneck_forward.9} parent=43 // pred_fallthru
        _
    $region44: #{bottleneck_forward.9} parent=5 // pred_fallthru
      _
  $region6: #{bottleneck_forward.9} parent=0 // loop_footer
    %s14 = sadd.s32 1, %s10
  $region7: #{bottleneck_forward.9} parent=0 // loop_footer_branch
    %9 = sbr.rel target = $region3
  $region8: #{bottleneck_forward.9} parent=0 // loop_exit
    _

// kernel: bottleneck_forward.8
$region0: #{bottleneck_forward.8}
  #allocation0 [shape = 'u32[]', space=smem, size = 0x4, offset = 0x4, fixed_abs, tag = 'smem constant byte address 0x4 - core index']
  #allocation1 [shape = 'u32[144,128]{1,0:T(1,128)}', space=vmem, size = 0x12000, scoped, tag = 'internal scratch']
  %s0 = inlined_call_operand.vmem [shape: f32[512,128], index: 0, kind: input, shape index: {}]
  %s1 = inlined_call_operand.vmem [shape: f32[1,128], index: 1, kind: input, shape index: {}]
  %s2 = inlined_call_operand.vmem [shape: f32[1,128], index: 2, kind: input, shape index: {}]
  %s3 = inlined_call_operand.vmem [shape: bf16[128,128], index: 3, kind: input, shape index: {}]
  %s4 = inlined_call_operand.vmem [shape: f32[512,128], index: 4, kind: output, shape index: {0}]
  %s5 = inlined_call_operand.vmem [shape: f32[8,128], index: 5, kind: output, shape index: {1}]
  %6 = xla_tuple %s4, %s5
  %s7 = sld [smem:[#allocation0]]
  $region61: #{bottleneck_forward.8} parent=0
    _
  %s9 = ssub.s32 1, %s7
  %s10 = scalar_select 0, %s9, %s7
  loop: start=0, step=1, limit=4
  $region2: #{bottleneck_forward.8} parent=0 // loop_pre_header
    _
  $region3: #{bottleneck_forward.8} parent=0 // loop_header
    %s12 = sphi 0, %s16
    %p13 = scmp.ge.s32.totalorder %s12, 4
    %s22 = sphi 0, %s24
    %s25 = sphi 0, %s22
    %s26 = sphi 0, %s25
    %s42 = sphi 0, %s26
    %s46 = sphi 0, %s46
    %s48 = sphi 0, %s46
    %s49 = sphi 0, %s48
    %s63 = sphi 0, %s49
    %s67 = sphi 0, %s67
    %s69 = sphi 0, %s67
    %s70 = sphi 0, %s69
    %s84 = sphi 0, %s70
    %s88 = sphi 0, %s88
    %s90 = sphi 0, %s88
    %s91 = sphi 0, %s90
    %s105 = sphi 0, %s91
    %s111 = sphi 0, %s113
    %s114 = sphi 0, %s111
    %s115 = sphi 0, %s114
    %s131 = sphi 0, %s115
    %s135 = sphi 0, %s135
    %s137 = sphi 0, %s135
    %s138 = sphi 0, %s137
    %s152 = sphi 0, %s138
  $region4: #{bottleneck_forward.8} parent=0 // loop_header_branch
    %15 = sbr.rel (%p13) target = $region8
  $region5: #{bottleneck_forward.8} parent=0 // loop_body
    %s17 = ssub.s32 %s12, 1
    %s18 = ssub.s32 %s12, 2
    %s19 = sadd.s32 %s12, 1
    %s20 = ssub.s32 %s12, %s19
    %p21 = scmp.eq.s32.totalorder %s20, 0
    %s23 = sadd.s32 %s22, 1
    %s24 = scalar_select %p21, %s22, %s23
    %p27 = pneg %p21
    %p28 = scmp.eq.s32.totalorder %s12, 1
    %p29 = por %p27, %p28
    %p30 = scmp.ne.s32.totalorder %s22, %s25
    %p31 = scmp.eq.s32.totalorder %s12, 0
    %p32 = por %p30, %p31
    %p33 = scmp.ne.s32.totalorder %s22, %s25
    %p34 = scmp.eq.s32.totalorder %s17, 1
    %p35 = por %p33, %p34
    %p36 = scmp.ne.s32.totalorder %s25, %s26
    %p37 = scmp.eq.s32.totalorder %s17, 0
    %p38 = por %p36, %p37
    %p39 = scmp.ne.s32.totalorder %s25, %s26
    %p40 = scmp.eq.s32.totalorder %s18, 1
    %p41 = por %p39, %p40
    %p43 = scmp.ne.s32.totalorder %s26, %s42
    %p44 = scmp.eq.s32.totalorder %s18, 0
    %p45 = por %p43, %p44
    %s47 = sadd.s32 %s46, 1
    %p50 = scmp.eq.s32.totalorder %s12, 1
    %p51 = scmp.ne.s32.totalorder %s46, %s48
    %p52 = scmp.eq.s32.totalorder %s12, 0
    %p53 = por %p51, %p52
    %p54 = scmp.ne.s32.totalorder %s46, %s48
    %p55 = scmp.eq.s32.totalorder %s17, 1
    %p56 = por %p54, %p55
    %p57 = scmp.ne.s32.totalorder %s48, %s49
    %p58 = scmp.eq.s32.totalorder %s17, 0
    %p59 = por %p57, %p58
    %p60 = scmp.ne.s32.totalorder %s48, %s49
    %p61 = scmp.eq.s32.totalorder %s18, 1
    %p62 = por %p60, %p61
    %p64 = scmp.ne.s32.totalorder %s49, %s63
    %p65 = scmp.eq.s32.totalorder %s18, 0
    %p66 = por %p64, %p65
    %s68 = sadd.s32 %s67, 1
    %p71 = scmp.eq.s32.totalorder %s12, 1
    %p72 = scmp.ne.s32.totalorder %s67, %s69
    %p73 = scmp.eq.s32.totalorder %s12, 0
    %p74 = por %p72, %p73
    %p75 = scmp.ne.s32.totalorder %s67, %s69
    %p76 = scmp.eq.s32.totalorder %s17, 1
    %p77 = por %p75, %p76
    %p78 = scmp.ne.s32.totalorder %s69, %s70
    %p79 = scmp.eq.s32.totalorder %s17, 0
    %p80 = por %p78, %p79
    %p81 = scmp.ne.s32.totalorder %s69, %s70
    %p82 = scmp.eq.s32.totalorder %s18, 1
    %p83 = por %p81, %p82
    %p85 = scmp.ne.s32.totalorder %s70, %s84
    %p86 = scmp.eq.s32.totalorder %s18, 0
    %p87 = por %p85, %p86
    %s89 = sadd.s32 %s88, 1
    %p92 = scmp.eq.s32.totalorder %s12, 1
    %p93 = scmp.ne.s32.totalorder %s88, %s90
    %p94 = scmp.eq.s32.totalorder %s12, 0
    %p95 = por %p93, %p94
    %p96 = scmp.ne.s32.totalorder %s88, %s90
    %p97 = scmp.eq.s32.totalorder %s17, 1
    %p98 = por %p96, %p97
    %p99 = scmp.ne.s32.totalorder %s90, %s91
    %p100 = scmp.eq.s32.totalorder %s17, 0
    %p101 = por %p99, %p100
    %p102 = scmp.ne.s32.totalorder %s90, %s91
    %p103 = scmp.eq.s32.totalorder %s18, 1
    %p104 = por %p102, %p103
    %p106 = scmp.ne.s32.totalorder %s91, %s105
    %p107 = scmp.eq.s32.totalorder %s18, 0
    %p108 = por %p106, %p107
    %s109 = ssub.s32 %s12, %s19
    %p110 = scmp.eq.s32.totalorder %s109, 0
    %s112 = sadd.s32 %s111, 1
    %s113 = scalar_select %p110, %s111, %s112
    %p116 = pneg %p110
    %p117 = scmp.eq.s32.totalorder %s12, 1
    %p118 = por %p116, %p117
    %p119 = scmp.ne.s32.totalorder %s111, %s114
    %p120 = scmp.eq.s32.totalorder %s12, 0
    %p121 = por %p119, %p120
    %p122 = scmp.ne.s32.totalorder %s111, %s114
    %p123 = scmp.eq.s32.totalorder %s17, 1
    %p124 = por %p122, %p123
    %p125 = scmp.ne.s32.totalorder %s114, %s115
    %p126 = scmp.eq.s32.totalorder %s17, 0
    %p127 = por %p125, %p126
    %p128 = scmp.ne.s32.totalorder %s114, %s115
    %p129 = scmp.eq.s32.totalorder %s18, 1
    %p130 = por %p128, %p129
    %p132 = scmp.ne.s32.totalorder %s115, %s131
    %p133 = scmp.eq.s32.totalorder %s18, 0
    %p134 = por %p132, %p133
    %s136 = sadd.s32 %s135, 1
    %p139 = scmp.eq.s32.totalorder %s12, 1
    %p140 = scmp.ne.s32.totalorder %s135, %s137
    %p141 = scmp.eq.s32.totalorder %s12, 0
    %p142 = por %p140, %p141
    %p143 = scmp.ne.s32.totalorder %s135, %s137
    %p144 = scmp.eq.s32.totalorder %s17, 1
    %p145 = por %p143, %p144
    %p146 = scmp.ne.s32.totalorder %s137, %s138
    %p147 = scmp.eq.s32.totalorder %s17, 0
    %p148 = por %p146, %p147
    %p149 = scmp.ne.s32.totalorder %s137, %s138
    %p150 = scmp.eq.s32.totalorder %s18, 1
    %p151 = por %p149, %p150
    %p153 = scmp.ne.s32.totalorder %s138, %s152
    %p154 = scmp.eq.s32.totalorder %s18, 0
    %p155 = por %p153, %p154
    %p156 = scmp.le.s32.totalorder 1, %s12
    %p157 = scmp.lt.s32.totalorder %s12, 3
    %p158 = pnand %p156, %p157
    %p159 = pneg %p158
    // Predicated region
    $region9: #{bottleneck_forward.8} parent=5 // pred_check
      _
    $region10: #{bottleneck_forward.8} parent=5 // pred_check_branch
      %161 = sbr.rel (%p158) target = $region12
    $region11: #{bottleneck_forward.8} parent=5 // pred_region
      %s162 = ssub.s32 %s12, 1
      // Predicated region
      $region13: #{bottleneck_forward.8} parent=11 // pred_check
        %p163 = pneg %p59
      $region14: #{bottleneck_forward.8} parent=11 // pred_check_branch
        %165 = sbr.rel (%p163) target = $region16
      $region15: #{bottleneck_forward.8} parent=11 // pred_region
        _
      $region16: #{bottleneck_forward.8} parent=11 // pred_fallthru
        _
      // Predicated region
      $region17: #{bottleneck_forward.8} parent=11 // pred_check
        %p166 = pneg %p80
      $region18: #{bottleneck_forward.8} parent=11 // pred_check_branch
        %168 = sbr.rel (%p166) target = $region20
      $region19: #{bottleneck_forward.8} parent=11 // pred_region
        _
      $region20: #{bottleneck_forward.8} parent=11 // pred_fallthru
        _
      // Predicated region
      $region21: #{bottleneck_forward.8} parent=11 // pred_check
        %p169 = pneg %p101
      $region22: #{bottleneck_forward.8} parent=11 // pred_check_branch
        %171 = sbr.rel (%p169) target = $region24
      $region23: #{bottleneck_forward.8} parent=11 // pred_region
        _
      $region24: #{bottleneck_forward.8} parent=11 // pred_fallthru
        _
    $region12: #{bottleneck_forward.8} parent=5 // pred_fallthru
      _
    %p172 = scmp.lt.s32.totalorder %s12, 2
    // Predicated region
    $region25: #{bottleneck_forward.8} parent=5 // pred_check
      %p173 = pneg %p172
    $region26: #{bottleneck_forward.8} parent=5 // pred_check_branch
      %175 = sbr.rel (%p173) target = $region28
    $region27: #{bottleneck_forward.8} parent=5 // pred_region
      // Predicated region
      $region29: #{bottleneck_forward.8} parent=27 // pred_check
        %p176 = pneg %p32
      $region30: #{bottleneck_forward.8} parent=27 // pred_check_branch
        %178 = sbr.rel (%p176) target = $region32
      $region31: #{bottleneck_forward.8} parent=27 // pred_region
        %s179 = smul.u32 32, %s12
        %p180 = scmp.lt.s32.totalorder %s179, 63
        %s181 = scalar_select %p180, %s179, 63
        %s182 = smul.addr %s181, 8
        %s183 = scalar_lea.vmem %s0, %s182
        %s184 = smul.u32 32, %s12
      $region32: #{bottleneck_forward.8} parent=27 // pred_fallthru
        _
    $region28: #{bottleneck_forward.8} parent=5 // pred_fallthru
      _
    %p185 = scmp.le.s32.totalorder 1, %s12
    %p186 = scmp.lt.s32.totalorder %s12, 3
    %p187 = pnand %p185, %p186
    %p188 = pneg %p187
    // Predicated region
    $region33: #{bottleneck_forward.8} parent=5 // pred_check
      _
    $region34: #{bottleneck_forward.8} parent=5 // pred_check_branch
      %190 = sbr.rel (%p187) target = $region36
    $region35: #{bottleneck_forward.8} parent=5 // pred_region
      %s191 = ssub.s32 %s12, 1
      %s192 = smul.u32 32, %s17
      %p193 = scmp.lt.s32.totalorder %s192, 63
      %s194 = scalar_select %p193, %s192, 63
      %s195 = smul.addr %s194, 8
      %s196 = scalar_lea.vmem %s0, %s195
      %p197 = pneg %p38
      %p198 = pneg %p35
      %p199 = pneg %p59
      %p200 = pneg %p56
      %p201 = pneg %p80
      %p202 = pneg %p77
      %p203 = pneg %p101
      %p204 = pneg %p98
      %p205 = pneg %p127
      %p206 = pneg %p124
      %s207 = smul.u32 32, %s17
      %p208 = scmp.lt.s32.totalorder %s207, 63
      %s209 = scalar_select %p208, %s207, 63
      %s210 = smul.addr %s209, 8
      %s211 = scalar_lea.vmem %s4, %s210
      %p212 = pneg %p148
      %p213 = pneg %p145
      %s214 = smul.u32 32, %s17
      %p215 = scmp.lt.s32.totalorder %s214, 63
      %s216 = scalar_select %p215, %s214, 63
      %s217 = smul.addr %s216, 8
      %s218 = scalar_lea.vmem %s0, %s217
      %s219 = smul.u32 32, %s17
      %s220 = smul.u32 32, %s17
      %p221 = scmp.lt.s32.totalorder %s220, 63
      %s222 = scalar_select %p221, %s220, 63
      %s223 = smul.addr %s222, 8
      %s224 = scalar_lea.vmem %s4, %s223
      %s225 = smul.u32 32, %s17
      %p227 = scmp.eq.s32.totalorder %s17, 0
      // Predicated region
      $region37: #{bottleneck_forward.8} parent=35 // pred_check
        %p228 = pneg %p227
      $region38: #{bottleneck_forward.8} parent=35 // pred_check_branch
        %230 = sbr.rel (%p228) target = $region40
      $region39: #{bottleneck_forward.8} parent=35 // pred_region
        %231 = vst [vmem:[%s5] sm:$0xff] 0.0
      $region40: #{bottleneck_forward.8} parent=35 // pred_fallthru
        _
      %v232 = vld [vmem:[%s218] sm:$0xff]
      %v233 = vld [vmem:[%s218 + $0x8] sm:$0xff]
      %v234 = vld [vmem:[%s218 + $0x10] sm:$0xff]
      %v235 = vld [vmem:[%s218 + $0x18] sm:$0xff]
      %v236 = vld [vmem:[%s218 + $0x20] sm:$0xff]
      %v237 = vld [vmem:[%s218 + $0x28] sm:$0xff]
      %v238 = vld [vmem:[%s218 + $0x30] sm:$0xff]
      %v239 = vld [vmem:[%s218 + $0x38] sm:$0xff]
      %v240 = vld [vmem:[%s218 + $0x40] sm:$0xff]
      %v241 = vld [vmem:[%s218 + $0x48] sm:$0xff]
      %v242 = vld [vmem:[%s218 + $0x50] sm:$0xff]
      %v243 = vld [vmem:[%s218 + $0x58] sm:$0xff]
      %v244 = vld [vmem:[%s218 + $0x60] sm:$0xff]
      %v245 = vld [vmem:[%s218 + $0x68] sm:$0xff]
      %v246 = vld [vmem:[%s218 + $0x70] sm:$0xff]
      %v247 = vld [vmem:[%s218 + $0x78] sm:$0xff]
      %v248 = vld [vmem:[%s218 + $0x80] sm:$0xff]
      %v249 = vld [vmem:[%s218 + $0x88] sm:$0xff]
      %v250 = vld [vmem:[%s218 + $0x90] sm:$0xff]
      %v251 = vld [vmem:[%s218 + $0x98] sm:$0xff]
      %v252 = vld [vmem:[%s218 + $0xa0] sm:$0xff]
      %v253 = vld [vmem:[%s218 + $0xa8] sm:$0xff]
      %v254 = vld [vmem:[%s218 + $0xb0] sm:$0xff]
      %v255 = vld [vmem:[%s218 + $0xb8] sm:$0xff]
      %v256 = vld [vmem:[%s218 + $0xc0] sm:$0xff]
      %v257 = vld [vmem:[%s218 + $0xc8] sm:$0xff]
      %v258 = vld [vmem:[%s218 + $0xd0] sm:$0xff]
      %v259 = vld [vmem:[%s218 + $0xd8] sm:$0xff]
      %v260 = vld [vmem:[%s218 + $0xe0] sm:$0xff]
      %v261 = vld [vmem:[%s218 + $0xe8] sm:$0xff]
      %v262 = vld [vmem:[%s218 + $0xf0] sm:$0xff]
      %v263 = vld [vmem:[%s218 + $0xf8] sm:$0xff]
      %v264 = vld [vmem:[%s1] sm:$0x1]
      %v266 = vlaneseq
      %v267 = vshrl.u32 %v266, 7
      %v268 = vsub.s32 0, %v267
      %v269 = vrot.slane %v264, %v268
      %v271 = vmul.f32 %v232, %v269
      %v272 = vmul.f32 %v233, %v269
      %v273 = vmul.f32 %v234, %v269
      %v274 = vmul.f32 %v235, %v269
      %v275 = vmul.f32 %v236, %v269
      %v276 = vmul.f32 %v237, %v269
      %v277 = vmul.f32 %v238, %v269
      %v278 = vmul.f32 %v239, %v269
      %v279 = vmul.f32 %v240, %v269
      %v280 = vmul.f32 %v241, %v269
      %v281 = vmul.f32 %v242, %v269
      %v282 = vmul.f32 %v243, %v269
      %v283 = vmul.f32 %v244, %v269
      %v284 = vmul.f32 %v245, %v269
      %v285 = vmul.f32 %v246, %v269
      %v286 = vmul.f32 %v247, %v269
      %v287 = vmul.f32 %v248, %v269
      %v288 = vmul.f32 %v249, %v269
      %v289 = vmul.f32 %v250, %v269
      %v290 = vmul.f32 %v251, %v269
      %v291 = vmul.f32 %v252, %v269
      %v292 = vmul.f32 %v253, %v269
      %v293 = vmul.f32 %v254, %v269
      %v294 = vmul.f32 %v255, %v269
      %v295 = vmul.f32 %v256, %v269
      %v296 = vmul.f32 %v257, %v269
      %v297 = vmul.f32 %v258, %v269
      %v298 = vmul.f32 %v259, %v269
      %v299 = vmul.f32 %v260, %v269
      %v300 = vmul.f32 %v261, %v269
      %v301 = vmul.f32 %v262, %v269
      %v302 = vmul.f32 %v263, %v269
      %v303 = vld [vmem:[%s2] sm:$0x1]
      %v305 = vlaneseq
      %v306 = vshrl.u32 %v305, 7
      %v307 = vsub.s32 0, %v306
      %v308 = vrot.slane %v303, %v307
      %v310 = vadd.f32 %v271, %v308
      %v311 = vadd.f32 %v272, %v308
      %v312 = vadd.f32 %v273, %v308
      %v313 = vadd.f32 %v274, %v308
      %v314 = vadd.f32 %v275, %v308
      %v315 = vadd.f32 %v276, %v308
      %v316 = vadd.f32 %v277, %v308
      %v317 = vadd.f32 %v278, %v308
      %v318 = vadd.f32 %v279, %v308
      %v319 = vadd.f32 %v280, %v308
      %v320 = vadd.f32 %v281, %v308
      %v321 = vadd.f32 %v282, %v308
      %v322 = vadd.f32 %v283, %v308
      %v323 = vadd.f32 %v284, %v308
      %v324 = vadd.f32 %v285, %v308
      %v325 = vadd.f32 %v286, %v308
      %v326 = vadd.f32 %v287, %v308
      %v327 = vadd.f32 %v288, %v308
      %v328 = vadd.f32 %v289, %v308
      %v329 = vadd.f32 %v290, %v308
      %v330 = vadd.f32 %v291, %v308
      %v331 = vadd.f32 %v292, %v308
      %v332 = vadd.f32 %v293, %v308
      %v333 = vadd.f32 %v294, %v308
      %v334 = vadd.f32 %v295, %v308
      %v335 = vadd.f32 %v296, %v308
      %v336 = vadd.f32 %v297, %v308
      %v337 = vadd.f32 %v298, %v308
      %v338 = vadd.f32 %v299, %v308
      %v339 = vadd.f32 %v300, %v308
      %v340 = vadd.f32 %v301, %v308
      %v341 = vadd.f32 %v302, %v308
      %v342 = vmax.f32 %v310, 0.0
      %v343 = vmax.f32 %v311, 0.0
      %v344 = vmax.f32 %v312, 0.0
      %v345 = vmax.f32 %v313, 0.0
      %v346 = vmax.f32 %v314, 0.0
      %v347 = vmax.f32 %v315, 0.0
      %v348 = vmax.f32 %v316, 0.0
      %v349 = vmax.f32 %v317, 0.0
      %v350 = vmax.f32 %v318, 0.0
      %v351 = vmax.f32 %v319, 0.0
      %v352 = vmax.f32 %v320, 0.0
      %v353 = vmax.f32 %v321, 0.0
      %v354 = vmax.f32 %v322, 0.0
      %v355 = vmax.f32 %v323, 0.0
      %v356 = vmax.f32 %v324, 0.0
      %v357 = vmax.f32 %v325, 0.0
      %v358 = vmax.f32 %v326, 0.0
      %v359 = vmax.f32 %v327, 0.0
      %v360 = vmax.f32 %v328, 0.0
      %v361 = vmax.f32 %v329, 0.0
      %v362 = vmax.f32 %v330, 0.0
      %v363 = vmax.f32 %v331, 0.0
      %v364 = vmax.f32 %v332, 0.0
      %v365 = vmax.f32 %v333, 0.0
      %v366 = vmax.f32 %v334, 0.0
      %v367 = vmax.f32 %v335, 0.0
      %v368 = vmax.f32 %v336, 0.0
      %v369 = vmax.f32 %v337, 0.0
      %v370 = vmax.f32 %v338, 0.0
      %v371 = vmax.f32 %v339, 0.0
      %v372 = vmax.f32 %v340, 0.0
      %v373 = vmax.f32 %v341, 0.0
      %v374 = vmin.f32 %v342, 6.0
      %v375 = vmin.f32 %v343, 6.0
      %v376 = vmin.f32 %v344, 6.0
      %v377 = vmin.f32 %v345, 6.0
      %v378 = vmin.f32 %v346, 6.0
      %v379 = vmin.f32 %v347, 6.0
      %v380 = vmin.f32 %v348, 6.0
      %v381 = vmin.f32 %v349, 6.0
      %v382 = vmin.f32 %v350, 6.0
      %v383 = vmin.f32 %v351, 6.0
      %v384 = vmin.f32 %v352, 6.0
      %v385 = vmin.f32 %v353, 6.0
      %v386 = vmin.f32 %v354, 6.0
      %v387 = vmin.f32 %v355, 6.0
      %v388 = vmin.f32 %v356, 6.0
      %v389 = vmin.f32 %v357, 6.0
      %v390 = vmin.f32 %v358, 6.0
      %v391 = vmin.f32 %v359, 6.0
      %v392 = vmin.f32 %v360, 6.0
      %v393 = vmin.f32 %v361, 6.0
      %v394 = vmin.f32 %v362, 6.0
      %v395 = vmin.f32 %v363, 6.0
      %v396 = vmin.f32 %v364, 6.0
      %v397 = vmin.f32 %v365, 6.0
      %v398 = vmin.f32 %v366, 6.0
      %v399 = vmin.f32 %v367, 6.0
      %v400 = vmin.f32 %v368, 6.0
      %v401 = vmin.f32 %v369, 6.0
      %v402 = vmin.f32 %v370, 6.0
      %v403 = vmin.f32 %v371, 6.0
      %v404 = vmin.f32 %v372, 6.0
      %v405 = vmin.f32 %v373, 6.0
      %v406 = vpack.c.bf16 %v375, %v374
      %v407 = vpack.c.bf16 %v377, %v376
      %v408 = vpack.c.bf16 %v379, %v378
      %v409 = vpack.c.bf16 %v381, %v380
      %v410 = vpack.c.bf16 %v383, %v382
      %v411 = vpack.c.bf16 %v385, %v384
      %v412 = vpack.c.bf16 %v387, %v386
      %v413 = vpack.c.bf16 %v389, %v388
      %v414 = vpack.c.bf16 %v391, %v390
      %v415 = vpack.c.bf16 %v393, %v392
      %v416 = vpack.c.bf16 %v395, %v394
      %v417 = vpack.c.bf16 %v397, %v396
      %v418 = vpack.c.bf16 %v399, %v398
      %v419 = vpack.c.bf16 %v401, %v400
      %v420 = vpack.c.bf16 %v403, %v402
      %v421 = vpack.c.bf16 %v405, %v404
      %v422 = vld [vmem:[%s3] sm:$0xf]
      %v423 = vld [vmem:[%s3 + $0x4] sm:$0xf]
      %v424 = vld [vmem:[%s3 + $0x8] sm:$0xf]
      %v425 = vld [vmem:[%s3 + $0xc] sm:$0xf]
      %v426 = vld [vmem:[%s3 + $0x10] sm:$0xf]
      %v427 = vld [vmem:[%s3 + $0x14] sm:$0xf]
      %v428 = vld [vmem:[%s3 + $0x18] sm:$0xf]
      %v429 = vld [vmem:[%s3 + $0x1c] sm:$0xf]
      %v430 = vld [vmem:[%s3 + $0x20] sm:$0xf]
      %v431 = vld [vmem:[%s3 + $0x24] sm:$0xf]
      %v432 = vld [vmem:[%s3 + $0x28] sm:$0xf]
      %v433 = vld [vmem:[%s3 + $0x2c] sm:$0xf]
      %v434 = vld [vmem:[%s3 + $0x30] sm:$0xf]
      %v435 = vld [vmem:[%s3 + $0x34] sm:$0xf]
      %v436 = vld [vmem:[%s3 + $0x38] sm:$0xf]
      %v437 = vld [vmem:[%s3 + $0x3c] sm:$0xf]
      %v454 = vunpack.c.l.b16 %v422
      %v455 = vunpack.c.l.b16 %v423
      %v456 = vunpack.c.l.b16 %v424
      %v457 = vunpack.c.l.b16 %v425
      %v458 = vunpack.c.l.b16 %v426
      %v459 = vunpack.c.l.b16 %v427
      %v460 = vunpack.c.l.b16 %v428
      %v461 = vunpack.c.l.b16 %v429
      %v462 = vunpack.c.l.b16 %v430
      %v463 = vunpack.c.l.b16 %v431
      %v464 = vunpack.c.l.b16 %v432
      %v465 = vunpack.c.l.b16 %v433
      %v466 = vunpack.c.l.b16 %v434
      %v467 = vunpack.c.l.b16 %v435
      %v468 = vunpack.c.l.b16 %v436
      %v469 = vunpack.c.l.b16 %v437
      %v470 = vpack.c.b16 %v455, %v454
      %v471 = vpack.c.b16 %v457, %v456
      %v472 = vpack.c.b16 %v459, %v458
      %v473 = vpack.c.b16 %v461, %v460
      %v474 = vpack.c.b16 %v463, %v462
      %v475 = vpack.c.b16 %v465, %v464
      %v476 = vpack.c.b16 %v467, %v466
      %v477 = vpack.c.b16 %v469, %v468
      %486 = vmatprep.subr.bf16.mxu0 0
      %487 = vmatpush1.bf16.msra.mxu0 %v477
      %488 = vmatprep.subr.bf16.mxu0 0
      %489 = vmatpush1.bf16.msra.mxu0 %v476
      %490 = vmatprep.subr.bf16.mxu0 0
      %491 = vmatpush1.bf16.msra.mxu0 %v475
      %492 = vmatprep.subr.bf16.mxu0 0
      %493 = vmatpush1.bf16.msra.mxu0 %v474
      %494 = vmatprep.subr.bf16.mxu0 0
      %495 = vmatpush1.bf16.msra.mxu0 %v473
      %496 = vmatprep.subr.bf16.mxu0 0
      %497 = vmatpush1.bf16.msra.mxu0 %v472
      %498 = vmatprep.subr.bf16.mxu0 0
      %499 = vmatpush1.bf16.msra.mxu0 %v471
      %500 = vmatprep.subr.bf16.mxu0 0
      %501 = vmatpush1.bf16.msra.mxu0 %v470
      %502 = vmatprep.subr.bf16.mxu0 0
      %503 = vmatpush2.bf16.msra.mxu0 0
      %504 = vmatprep.subr.bf16.mxu0 0
      %505 = vmatpush2.bf16.msra.mxu0 0
      %506 = vmatprep.subr.bf16.mxu0 0
      %507 = vmatpush2.bf16.msra.mxu0 0
      %508 = vmatprep.subr.bf16.mxu0 0
      %509 = vmatpush2.bf16.msra.mxu0 0
      %510 = vmatprep.subr.bf16.mxu0 0
      %511 = vmatpush2.bf16.msra.mxu0 0
      %512 = vmatprep.subr.bf16.mxu0 0
      %513 = vmatpush2.bf16.msra.mxu0 0
      %514 = vmatprep.subr.bf16.mxu0 0
      %515 = vmatpush2.bf16.msra.mxu0 0
      %516 = vmatprep.subr.bf16.mxu0 0
      %517 = vmatpush2.bf16.msra.mxu0 0
      %518 = vmatprep.mubr.bf16.mxu0 0
      %519 = vmatmul.mubr.bf16.gmra.mxu0 %v406
      %v520 = vpop.f32.mrf.mxu0
      %v521 = vadd.f32 0.0, %v520
      %v522 = vpop.f32.mrf.mxu0
      %v523 = vpop.f32.mrf.mxu0
      %v524 = vadd.f32 0.0, %v523
      %v525 = vpop.f32.mrf.mxu0
      %526 = vmatprep.mubr.bf16.mxu0 0
      %527 = vmatmul.mubr.bf16.gmra.mxu0 %v407
      %v528 = vpop.f32.mrf.mxu0
      %v529 = vadd.f32 0.0, %v528
      %v530 = vpop.f32.mrf.mxu0
      %v531 = vpop.f32.mrf.mxu0
      %v532 = vadd.f32 0.0, %v531
      %v533 = vpop.f32.mrf.mxu0
      %534 = vmatprep.mubr.bf16.mxu0 0
      %535 = vmatmul.mubr.bf16.gmra.mxu0 %v408
      %v536 = vpop.f32.mrf.mxu0
      %v537 = vadd.f32 0.0, %v536
      %v538 = vpop.f32.mrf.mxu0
      %v539 = vpop.f32.mrf.mxu0
      %v540 = vadd.f32 0.0, %v539
      %v541 = vpop.f32.mrf.mxu0
      %542 = vmatprep.mubr.bf16.mxu0 0
      %543 = vmatmul.mubr.bf16.gmra.mxu0 %v409
      %v544 = vpop.f32.mrf.mxu0
      %v545 = vadd.f32 0.0, %v544
      %v546 = vpop.f32.mrf.mxu0
      %v547 = vpop.f32.mrf.mxu0
      %v548 = vadd.f32 0.0, %v547
      %v549 = vpop.f32.mrf.mxu0
      %550 = vmatprep.mubr.bf16.mxu0 0
      %551 = vmatmul.mubr.bf16.gmra.mxu0 %v410
      %v552 = vpop.f32.mrf.mxu0
      %v553 = vadd.f32 0.0, %v552
      %v554 = vpop.f32.mrf.mxu0
      %v555 = vpop.f32.mrf.mxu0
      %v556 = vadd.f32 0.0, %v555
      %v557 = vpop.f32.mrf.mxu0
      %558 = vmatprep.mubr.bf16.mxu0 0
      %559 = vmatmul.mubr.bf16.gmra.mxu0 %v411
      %v560 = vpop.f32.mrf.mxu0
      %v561 = vadd.f32 0.0, %v560
      %v562 = vpop.f32.mrf.mxu0
      %v563 = vpop.f32.mrf.mxu0
      %v564 = vadd.f32 0.0, %v563
      %v565 = vpop.f32.mrf.mxu0
      %566 = vmatprep.mubr.bf16.mxu0 0
      %567 = vmatmul.mubr.bf16.gmra.mxu0 %v412
      %v568 = vpop.f32.mrf.mxu0
      %v569 = vadd.f32 0.0, %v568
      %v570 = vpop.f32.mrf.mxu0
      %v571 = vpop.f32.mrf.mxu0
      %v572 = vadd.f32 0.0, %v571
      %v573 = vpop.f32.mrf.mxu0
      %574 = vmatprep.mubr.bf16.mxu0 0
      %575 = vmatmul.mubr.bf16.gmra.mxu0 %v413
      %v576 = vpop.f32.mrf.mxu0
      %v577 = vadd.f32 0.0, %v576
      %v578 = vpop.f32.mrf.mxu0
      %v579 = vpop.f32.mrf.mxu0
      %v580 = vadd.f32 0.0, %v579
      %v581 = vpop.f32.mrf.mxu0
      %582 = vmatprep.mubr.bf16.mxu0 0
      %583 = vmatmul.mubr.bf16.gmra.mxu0 %v414
      %v584 = vpop.f32.mrf.mxu0
      %v585 = vadd.f32 0.0, %v584
      %v586 = vpop.f32.mrf.mxu0
      %v587 = vpop.f32.mrf.mxu0
      %v588 = vadd.f32 0.0, %v587
      %v589 = vpop.f32.mrf.mxu0
      %590 = vmatprep.mubr.bf16.mxu0 0
      %591 = vmatmul.mubr.bf16.gmra.mxu0 %v415
      %v592 = vpop.f32.mrf.mxu0
      %v593 = vadd.f32 0.0, %v592
      %v594 = vpop.f32.mrf.mxu0
      %v595 = vpop.f32.mrf.mxu0
      %v596 = vadd.f32 0.0, %v595
      %v597 = vpop.f32.mrf.mxu0
      %598 = vmatprep.mubr.bf16.mxu0 0
      %599 = vmatmul.mubr.bf16.gmra.mxu0 %v416
      %v600 = vpop.f32.mrf.mxu0
      %v601 = vadd.f32 0.0, %v600
      %v602 = vpop.f32.mrf.mxu0
      %v603 = vpop.f32.mrf.mxu0
      %v604 = vadd.f32 0.0, %v603
      %v605 = vpop.f32.mrf.mxu0
      %606 = vmatprep.mubr.bf16.mxu0 0
      %607 = vmatmul.mubr.bf16.gmra.mxu0 %v417
      %v608 = vpop.f32.mrf.mxu0
      %v609 = vadd.f32 0.0, %v608
      %v610 = vpop.f32.mrf.mxu0
      %v611 = vpop.f32.mrf.mxu0
      %v612 = vadd.f32 0.0, %v611
      %v613 = vpop.f32.mrf.mxu0
      %614 = vmatprep.mubr.bf16.mxu0 0
      %615 = vmatmul.mubr.bf16.gmra.mxu0 %v418
      %v616 = vpop.f32.mrf.mxu0
      %v617 = vadd.f32 0.0, %v616
      %v618 = vpop.f32.mrf.mxu0
      %v619 = vpop.f32.mrf.mxu0
      %v620 = vadd.f32 0.0, %v619
      %v621 = vpop.f32.mrf.mxu0
      %622 = vmatprep.mubr.bf16.mxu0 0
      %623 = vmatmul.mubr.bf16.gmra.mxu0 %v419
      %v624 = vpop.f32.mrf.mxu0
      %v625 = vadd.f32 0.0, %v624
      %v626 = vpop.f32.mrf.mxu0
      %v627 = vpop.f32.mrf.mxu0
      %v628 = vadd.f32 0.0, %v627
      %v629 = vpop.f32.mrf.mxu0
      %630 = vmatprep.mubr.bf16.mxu0 0
      %631 = vmatmul.mubr.bf16.gmra.mxu0 %v420
      %v632 = vpop.f32.mrf.mxu0
      %v633 = vadd.f32 0.0, %v632
      %v634 = vpop.f32.mrf.mxu0
      %v635 = vpop.f32.mrf.mxu0
      %v636 = vadd.f32 0.0, %v635
      %v637 = vpop.f32.mrf.mxu0
      %638 = vmatprep.mubr.bf16.mxu0 0
      %639 = vmatmul.mubr.bf16.gmra.mxu0 %v421
      %v640 = vpop.f32.mrf.mxu0
      %v641 = vadd.f32 0.0, %v640
      %v642 = vpop.f32.mrf.mxu0
      %v643 = vpop.f32.mrf.mxu0
      %v644 = vadd.f32 0.0, %v643
      %v645 = vpop.f32.mrf.mxu0
      %646 = vdwg.mxu0
      %647 = vst [vmem:[%s224] sm:$0xff] %v521
      %648 = vst [vmem:[%s224 + $0x8] sm:$0xff] %v524
      %649 = vst [vmem:[%s224 + $0x10] sm:$0xff] %v529
      %650 = vst [vmem:[%s224 + $0x18] sm:$0xff] %v532
      %651 = vst [vmem:[%s224 + $0x20] sm:$0xff] %v537
      %652 = vst [vmem:[%s224 + $0x28] sm:$0xff] %v540
      %653 = vst [vmem:[%s224 + $0x30] sm:$0xff] %v545
      %654 = vst [vmem:[%s224 + $0x38] sm:$0xff] %v548
      %655 = vst [vmem:[%s224 + $0x40] sm:$0xff] %v553
      %656 = vst [vmem:[%s224 + $0x48] sm:$0xff] %v556
      %657 = vst [vmem:[%s224 + $0x50] sm:$0xff] %v561
      %658 = vst [vmem:[%s224 + $0x58] sm:$0xff] %v564
      %659 = vst [vmem:[%s224 + $0x60] sm:$0xff] %v569
      %660 = vst [vmem:[%s224 + $0x68] sm:$0xff] %v572
      %661 = vst [vmem:[%s224 + $0x70] sm:$0xff] %v577
      %662 = vst [vmem:[%s224 + $0x78] sm:$0xff] %v580
      %663 = vst [vmem:[%s224 + $0x80] sm:$0xff] %v585
      %664 = vst [vmem:[%s224 + $0x88] sm:$0xff] %v588
      %665 = vst [vmem:[%s224 + $0x90] sm:$0xff] %v593
      %666 = vst [vmem:[%s224 + $0x98] sm:$0xff] %v596
      %667 = vst [vmem:[%s224 + $0xa0] sm:$0xff] %v601
      %668 = vst [vmem:[%s224 + $0xa8] sm:$0xff] %v604
      %669 = vst [vmem:[%s224 + $0xb0] sm:$0xff] %v609
      %670 = vst [vmem:[%s224 + $0xb8] sm:$0xff] %v612
      %671 = vst [vmem:[%s224 + $0xc0] sm:$0xff] %v617
      %672 = vst [vmem:[%s224 + $0xc8] sm:$0xff] %v620
      %673 = vst [vmem:[%s224 + $0xd0] sm:$0xff] %v625
      %674 = vst [vmem:[%s224 + $0xd8] sm:$0xff] %v628
      %675 = vst [vmem:[%s224 + $0xe0] sm:$0xff] %v633
      %676 = vst [vmem:[%s224 + $0xe8] sm:$0xff] %v636
      %677 = vst [vmem:[%s224 + $0xf0] sm:$0xff] %v641
      %678 = vst [vmem:[%s224 + $0xf8] sm:$0xff] %v644
      %v679 = vld [vmem:[%s5] sm:$0x1]
      %v680 = vadd.f32 %v521, %v524
      %v681 = vadd.f32 %v680, %v529
      %v682 = vadd.f32 %v681, %v532
      %v683 = vadd.f32 %v682, %v537
      %v684 = vadd.f32 %v683, %v540
      %v685 = vadd.f32 %v684, %v545
      %v686 = vadd.f32 %v685, %v548
      %v687 = vadd.f32 %v686, %v553
      %v688 = vadd.f32 %v687, %v556
      %v689 = vadd.f32 %v688, %v561
      %v690 = vadd.f32 %v689, %v564
      %v691 = vadd.f32 %v690, %v569
      %v692 = vadd.f32 %v691, %v572
      %v693 = vadd.f32 %v692, %v577
      %v694 = vadd.f32 %v693, %v580
      %v695 = vadd.f32 %v694, %v585
      %v696 = vadd.f32 %v695, %v588
      %v697 = vadd.f32 %v696, %v593
      %v698 = vadd.f32 %v697, %v596
      %v699 = vadd.f32 %v698, %v601
      %v700 = vadd.f32 %v699, %v604
      %v701 = vadd.f32 %v700, %v609
      %v702 = vadd.f32 %v701, %v612
      %v703 = vadd.f32 %v702, %v617
      %v704 = vadd.f32 %v703, %v620
      %v705 = vadd.f32 %v704, %v625
      %v706 = vadd.f32 %v705, %v628
      %v707 = vadd.f32 %v706, %v633
      %v708 = vadd.f32 %v707, %v636
      %v709 = vadd.f32 %v708, %v641
      %v710 = vadd.f32 %v709, %v644
      %v711 = vrot.slane %v710, 4
      %v712 = vadd.f32 %v710, %v711
      %v713 = vrot.slane %v712, 2
      %v714 = vadd.f32 %v712, %v713
      %v715 = vrot.slane %v714, 1
      %v716 = vadd.f32 %v714, %v715
      %v717 = vadd.f32 %v679, %v716
      %718 = vst [vmem:[%s5] sm:$0x1] %v717
      %v719 = vld [vmem:[%s5 + $0x1] sm:$0x1]
      %v720 = vmul.f32 %v521, %v521
      %v721 = vmul.f32 %v524, %v524
      %v722 = vmul.f32 %v529, %v529
      %v723 = vmul.f32 %v532, %v532
      %v724 = vmul.f32 %v537, %v537
      %v725 = vmul.f32 %v540, %v540
      %v726 = vmul.f32 %v545, %v545
      %v727 = vmul.f32 %v548, %v548
      %v728 = vmul.f32 %v553, %v553
      %v729 = vmul.f32 %v556, %v556
      %v730 = vmul.f32 %v561, %v561
      %v731 = vmul.f32 %v564, %v564
      %v732 = vmul.f32 %v569, %v569
      %v733 = vmul.f32 %v572, %v572
      %v734 = vmul.f32 %v577, %v577
      %v735 = vmul.f32 %v580, %v580
      %v736 = vmul.f32 %v585, %v585
      %v737 = vmul.f32 %v588, %v588
      %v738 = vmul.f32 %v593, %v593
      %v739 = vmul.f32 %v596, %v596
      %v740 = vmul.f32 %v601, %v601
      %v741 = vmul.f32 %v604, %v604
      %v742 = vmul.f32 %v609, %v609
      %v743 = vmul.f32 %v612, %v612
      %v744 = vmul.f32 %v617, %v617
      %v745 = vmul.f32 %v620, %v620
      %v746 = vmul.f32 %v625, %v625
      %v747 = vmul.f32 %v628, %v628
      %v748 = vmul.f32 %v633, %v633
      %v749 = vmul.f32 %v636, %v636
      %v750 = vmul.f32 %v641, %v641
      %v751 = vmul.f32 %v644, %v644
      %v752 = vadd.f32 %v720, %v721
      %v753 = vadd.f32 %v752, %v722
      %v754 = vadd.f32 %v753, %v723
      %v755 = vadd.f32 %v754, %v724
      %v756 = vadd.f32 %v755, %v725
      %v757 = vadd.f32 %v756, %v726
      %v758 = vadd.f32 %v757, %v727
      %v759 = vadd.f32 %v758, %v728
      %v760 = vadd.f32 %v759, %v729
      %v761 = vadd.f32 %v760, %v730
      %v762 = vadd.f32 %v761, %v731
      %v763 = vadd.f32 %v762, %v732
      %v764 = vadd.f32 %v763, %v733
      %v765 = vadd.f32 %v764, %v734
      %v766 = vadd.f32 %v765, %v735
      %v767 = vadd.f32 %v766, %v736
      %v768 = vadd.f32 %v767, %v737
      %v769 = vadd.f32 %v768, %v738
      %v770 = vadd.f32 %v769, %v739
      %v771 = vadd.f32 %v770, %v740
      %v772 = vadd.f32 %v771, %v741
      %v773 = vadd.f32 %v772, %v742
      %v774 = vadd.f32 %v773, %v743
      %v775 = vadd.f32 %v774, %v744
      %v776 = vadd.f32 %v775, %v745
      %v777 = vadd.f32 %v776, %v746
      %v778 = vadd.f32 %v777, %v747
      %v779 = vadd.f32 %v778, %v748
      %v780 = vadd.f32 %v779, %v749
      %v781 = vadd.f32 %v780, %v750
      %v782 = vadd.f32 %v781, %v751
      %v783 = vrot.slane %v782, 4
      %v784 = vadd.f32 %v782, %v783
      %v785 = vrot.slane %v784, 2
      %v786 = vadd.f32 %v784, %v785
      %v787 = vrot.slane %v786, 1
      %v788 = vadd.f32 %v786, %v787
      %v789 = vadd.f32 %v719, %v788
      %790 = vst [vmem:[%s5 + $0x1] sm:$0x1] %v789
      %s791 = smul.u32 32, %s17
      %p792 = scmp.lt.s32.totalorder %s791, 63
      %s793 = scalar_select %p792, %s791, 63
      %s794 = smul.addr %s793, 8
      %s795 = scalar_lea.vmem %s4, %s794
      // Predicated region
      $region41: #{bottleneck_forward.8} parent=35 // pred_check
        %p796 = pneg %p124
      $region42: #{bottleneck_forward.8} parent=35 // pred_check_branch
        %798 = sbr.rel (%p796) target = $region44
      $region43: #{bottleneck_forward.8} parent=35 // pred_region
        %s799 = smul.u32 32, %s17
      $region44: #{bottleneck_forward.8} parent=35 // pred_fallthru
        _
      // Predicated region
      $region45: #{bottleneck_forward.8} parent=35 // pred_check
        %p800 = pneg %p145
      $region46: #{bottleneck_forward.8} parent=35 // pred_check_branch
        %802 = sbr.rel (%p800) target = $region48
      $region47: #{bottleneck_forward.8} parent=35 // pred_region
        _
      $region48: #{bottleneck_forward.8} parent=35 // pred_fallthru
        _
      // Predicated region
      $region49: #{bottleneck_forward.8} parent=35 // pred_check
        %p803 = pneg %p145
      $region50: #{bottleneck_forward.8} parent=35 // pred_check_branch
        %805 = sbr.rel (%p803) target = $region52
      $region51: #{bottleneck_forward.8} parent=35 // pred_region
        _
      $region52: #{bottleneck_forward.8} parent=35 // pred_fallthru
        _
    $region36: #{bottleneck_forward.8} parent=5 // pred_fallthru
      _
    %p806 = scmp.le.s32.totalorder 2, %s12
    // Predicated region
    $region53: #{bottleneck_forward.8} parent=5 // pred_check
      %p807 = pneg %p806
    $region54: #{bottleneck_forward.8} parent=5 // pred_check_branch
      %809 = sbr.rel (%p807) target = $region56
    $region55: #{bottleneck_forward.8} parent=5 // pred_region
      %s810 = ssub.s32 %s12, 2
      // Predicated region
      $region57: #{bottleneck_forward.8} parent=55 // pred_check
        %p811 = pneg %p130
      $region58: #{bottleneck_forward.8} parent=55 // pred_check_branch
        %813 = sbr.rel (%p811) target = $region60
      $region59: #{bottleneck_forward.8} parent=55 // pred_region
        %s814 = smul.u32 32, %s18
        %p815 = scmp.lt.s32.totalorder %s814, 63
        %s816 = scalar_select %p815, %s814, 63
        %s817 = smul.addr %s816, 8
        %s818 = scalar_lea.vmem %s4, %s817
      $region60: #{bottleneck_forward.8} parent=55 // pred_fallthru
        _
    $region56: #{bottleneck_forward.8} parent=5 // pred_fallthru
      _
  $region6: #{bottleneck_forward.8} parent=0 // loop_footer
    %s16 = sadd.s32 1, %s12
  $region7: #{bottleneck_forward.8} parent=0 // loop_footer_branch
    %11 = sbr.rel target = $region3
  $region8: #{bottleneck_forward.8} parent=0 // loop_exit
    _

// kernel: bottleneck_forward.7
$region0: #{bottleneck_forward.7}
  #allocation0 [shape = 'u32[]', space=smem, size = 0x4, offset = 0x4, fixed_abs, tag = 'smem constant byte address 0x4 - core index']
  #allocation1 [shape = 'u32[144,128]{1,0:T(1,128)}', space=vmem, size = 0x12000, scoped, tag = 'internal scratch']
  %s0 = inlined_call_operand.vmem [shape: f32[9,512,128], index: 0, kind: input, shape index: {}]
  %s1 = inlined_call_operand.vmem [shape: f32[9,1,128], index: 1, kind: input, shape index: {}]
  %s2 = inlined_call_operand.vmem [shape: f32[512,128], index: 2, kind: output, shape index: {0}]
  %s3 = inlined_call_operand.vmem [shape: f32[8,128], index: 3, kind: output, shape index: {1}]
  %4 = xla_tuple %s2, %s3
  %s5 = sld [smem:[#allocation0]]
  $region91: #{bottleneck_forward.7} parent=0
    _
  %s7 = ssub.s32 1, %s5
  %s8 = scalar_select 0, %s7, %s5
  $region1: #{bottleneck_forward.7} parent=0
    #allocation2 [shape = 'u8[2359296]{0}', space=vmem, size = 0x240000, scoped, tag = 'input window, operand 0']
    loop: start=0, step=1, limit=4
    $region2: #{bottleneck_forward.7} parent=1 // loop_pre_header
      _
    $region3: #{bottleneck_forward.7} parent=1 // loop_header
      %s10 = sphi 0, %s14
      %p11 = scmp.ge.s32.totalorder %s10, 4
      %s20 = sphi 0, %s22
      %s23 = sphi 0, %s20
      %s24 = sphi 0, %s23
      %s40 = sphi 0, %s24
      %s44 = sphi 0, %s44
      %s46 = sphi 0, %s44
      %s47 = sphi 0, %s46
      %s61 = sphi 0, %s47
      %s67 = sphi 0, %s69
      %s70 = sphi 0, %s67
      %s71 = sphi 0, %s70
      %s87 = sphi 0, %s71
      %s91 = sphi 0, %s91
      %s93 = sphi 0, %s91
      %s94 = sphi 0, %s93
      %s108 = sphi 0, %s94
    $region4: #{bottleneck_forward.7} parent=1 // loop_header_branch
      %13 = sbr.rel (%p11) target = $region8
    $region5: #{bottleneck_forward.7} parent=1 // loop_body
      %s15 = ssub.s32 %s10, 1
      %s16 = ssub.s32 %s10, 2
      %s17 = sadd.s32 %s10, 1
      %s18 = ssub.s32 %s10, %s17
      %p19 = scmp.eq.s32.totalorder %s18, 0
      %s21 = sadd.s32 %s20, 1
      %s22 = scalar_select %p19, %s20, %s21
      %p25 = pneg %p19
      %p26 = scmp.eq.s32.totalorder %s10, 1
      %p27 = por %p25, %p26
      %p28 = scmp.ne.s32.totalorder %s20, %s23
      %p29 = scmp.eq.s32.totalorder %s10, 0
      %p30 = por %p28, %p29
      %p31 = scmp.ne.s32.totalorder %s20, %s23
      %p32 = scmp.eq.s32.totalorder %s15, 1
      %p33 = por %p31, %p32
      %p34 = scmp.ne.s32.totalorder %s23, %s24
      %p35 = scmp.eq.s32.totalorder %s15, 0
      %p36 = por %p34, %p35
      %p37 = scmp.ne.s32.totalorder %s23, %s24
      %p38 = scmp.eq.s32.totalorder %s16, 1
      %p39 = por %p37, %p38
      %p41 = scmp.ne.s32.totalorder %s24, %s40
      %p42 = scmp.eq.s32.totalorder %s16, 0
      %p43 = por %p41, %p42
      %s45 = sadd.s32 %s44, 1
      %p48 = scmp.eq.s32.totalorder %s10, 1
      %p49 = scmp.ne.s32.totalorder %s44, %s46
      %p50 = scmp.eq.s32.totalorder %s10, 0
      %p51 = por %p49, %p50
      %p52 = scmp.ne.s32.totalorder %s44, %s46
      %p53 = scmp.eq.s32.totalorder %s15, 1
      %p54 = por %p52, %p53
      %p55 = scmp.ne.s32.totalorder %s46, %s47
      %p56 = scmp.eq.s32.totalorder %s15, 0
      %p57 = por %p55, %p56
      %p58 = scmp.ne.s32.totalorder %s46, %s47
      %p59 = scmp.eq.s32.totalorder %s16, 1
      %p60 = por %p58, %p59
      %p62 = scmp.ne.s32.totalorder %s47, %s61
      %p63 = scmp.eq.s32.totalorder %s16, 0
      %p64 = por %p62, %p63
      %s65 = ssub.s32 %s10, %s17
      %p66 = scmp.eq.s32.totalorder %s65, 0
      %s68 = sadd.s32 %s67, 1
      %s69 = scalar_select %p66, %s67, %s68
      %p72 = pneg %p66
      %p73 = scmp.eq.s32.totalorder %s10, 1
      %p74 = por %p72, %p73
      %p75 = scmp.ne.s32.totalorder %s67, %s70
      %p76 = scmp.eq.s32.totalorder %s10, 0
      %p77 = por %p75, %p76
      %p78 = scmp.ne.s32.totalorder %s67, %s70
      %p79 = scmp.eq.s32.totalorder %s15, 1
      %p80 = por %p78, %p79
      %p81 = scmp.ne.s32.totalorder %s70, %s71
      %p82 = scmp.eq.s32.totalorder %s15, 0
      %p83 = por %p81, %p82
      %p84 = scmp.ne.s32.totalorder %s70, %s71
      %p85 = scmp.eq.s32.totalorder %s16, 1
      %p86 = por %p84, %p85
      %p88 = scmp.ne.s32.totalorder %s71, %s87
      %p89 = scmp.eq.s32.totalorder %s16, 0
      %p90 = por %p88, %p89
      %s92 = sadd.s32 %s91, 1
      %p95 = scmp.eq.s32.totalorder %s10, 1
      %p96 = scmp.ne.s32.totalorder %s91, %s93
      %p97 = scmp.eq.s32.totalorder %s10, 0
      %p98 = por %p96, %p97
      %p99 = scmp.ne.s32.totalorder %s91, %s93
      %p100 = scmp.eq.s32.totalorder %s15, 1
      %p101 = por %p99, %p100
      %p102 = scmp.ne.s32.totalorder %s93, %s94
      %p103 = scmp.eq.s32.totalorder %s15, 0
      %p104 = por %p102, %p103
      %p105 = scmp.ne.s32.totalorder %s93, %s94
      %p106 = scmp.eq.s32.totalorder %s16, 1
      %p107 = por %p105, %p106
      %p109 = scmp.ne.s32.totalorder %s94, %s108
      %p110 = scmp.eq.s32.totalorder %s16, 0
      %p111 = por %p109, %p110
      %p112 = scmp.le.s32.totalorder 1, %s10
      %p113 = scmp.lt.s32.totalorder %s10, 3
      %p114 = pnand %p112, %p113
      %p115 = pneg %p114
      // Predicated region
      $region9: #{bottleneck_forward.7} parent=5 // pred_check
        _
      $region10: #{bottleneck_forward.7} parent=5 // pred_check_branch
        %117 = sbr.rel (%p114) target = $region12
      $region11: #{bottleneck_forward.7} parent=5 // pred_region
        %s118 = ssub.s32 %s10, 1
        // Predicated region
        $region13: #{bottleneck_forward.7} parent=11 // pred_check
          %p119 = pneg %p57
        $region14: #{bottleneck_forward.7} parent=11 // pred_check_branch
          %121 = sbr.rel (%p119) target = $region16
        $region15: #{bottleneck_forward.7} parent=11 // pred_region
          _
        $region16: #{bottleneck_forward.7} parent=11 // pred_fallthru
          _
      $region12: #{bottleneck_forward.7} parent=5 // pred_fallthru
        _
      %p122 = scmp.lt.s32.totalorder %s10, 2
      // Predicated region
      $region17: #{bottleneck_forward.7} parent=5 // pred_check
        %p123 = pneg %p122
      $region18: #{bottleneck_forward.7} parent=5 // pred_check_branch
        %125 = sbr.rel (%p123) target = $region20
      $region19: #{bottleneck_forward.7} parent=5 // pred_region
        // Predicated region
        $region21: #{bottleneck_forward.7} parent=19 // pred_check
          %p126 = pneg %p30
        $region22: #{bottleneck_forward.7} parent=19 // pred_check_branch
          %128 = sbr.rel (%p126) target = $region24
        $region23: #{bottleneck_forward.7} parent=19 // pred_region
          %s129 = sand.u32 %s20, 1
          %s130 = sand.u32 %s20, 1
          %s131 = smul.addr %s130, 2304
          %s132 = scalar_lea.vmem [#allocation2], %s131
          %s133 = smul.u32 32, %s10
          %s134 = smul.addr %s133, 8
          %s135 = scalar_lea.vmem %s0, %s134
          // Predicated region
          $region25: #{bottleneck_forward.7} parent=23 // pred_check
            _
          $region26: #{bottleneck_forward.7} parent=23 // pred_check_branch
            %137 = sbr.rel (0) target = $region28
          $region27: #{bottleneck_forward.7} parent=23 // pred_region
            // Predicated region
            $region29: #{bottleneck_forward.7} parent=27 // pred_check
              _
            $region30: #{bottleneck_forward.7} parent=27 // pred_check_branch
              %139 = sbr.rel (0) target = $region32
            $region31: #{bottleneck_forward.7} parent=27 // pred_region
              // Predicated region
              $region44: #{bottleneck_forward.7} parent=31 // pred_check
                _
              $region45: #{bottleneck_forward.7} parent=31 // pred_check_branch
                %729 = sbr.rel (0) target = $region47
              $region46: #{bottleneck_forward.7} parent=31 // pred_region
                loop: start=0, step=1, limit=1
                $region48: #{bottleneck_forward.7} parent=46 // loop_pre_header
                  _
                $region49: #{bottleneck_forward.7} parent=46 // loop_header
                  %s731 = sphi 0, %s735
                  %p732 = scmp.ge.s32.totalorder %s731, 1
                  %s736 = sphi %s135, %s135
                  %s737 = sphi %s132, %s132
                $region50: #{bottleneck_forward.7} parent=46 // loop_header_branch
                  %734 = sbr.rel (%p732) target = $region54
                $region51: #{bottleneck_forward.7} parent=46 // loop_body
                  %v738 = vld [vmem:[%s736] sm:$0xff]
                  %739 = vst [vmem:[%s737] sm:$0xff] %v738
                  %v740 = vld [vmem:[%s736 + $0x8] sm:$0xff]
                  %741 = vst [vmem:[%s737 + $0x8] sm:$0xff] %v740
                  %v742 = vld [vmem:[%s736 + $0x10] sm:$0xff]
                  %743 = vst [vmem:[%s737 + $0x10] sm:$0xff] %v742
                  %v744 = vld [vmem:[%s736 + $0x18] sm:$0xff]
                  %745 = vst [vmem:[%s737 + $0x18] sm:$0xff] %v744
                  %v746 = vld [vmem:[%s736 + $0x20] sm:$0xff]
                  %747 = vst [vmem:[%s737 + $0x20] sm:$0xff] %v746
                  %v748 = vld [vmem:[%s736 + $0x28] sm:$0xff]
                  %749 = vst [vmem:[%s737 + $0x28] sm:$0xff] %v748
                  %v750 = vld [vmem:[%s736 + $0x30] sm:$0xff]
                  %751 = vst [vmem:[%s737 + $0x30] sm:$0xff] %v750
                  %v752 = vld [vmem:[%s736 + $0x38] sm:$0xff]
                  %753 = vst [vmem:[%s737 + $0x38] sm:$0xff] %v752
                  %v754 = vld [vmem:[%s736 + $0x40] sm:$0xff]
                  %755 = vst [vmem:[%s737 + $0x40] sm:$0xff] %v754
                  %v756 = vld [vmem:[%s736 + $0x48] sm:$0xff]
                  %757 = vst [vmem:[%s737 + $0x48] sm:$0xff] %v756
                  %v758 = vld [vmem:[%s736 + $0x50] sm:$0xff]
                  %759 = vst [vmem:[%s737 + $0x50] sm:$0xff] %v758
                  %v760 = vld [vmem:[%s736 + $0x58] sm:$0xff]
                  %761 = vst [vmem:[%s737 + $0x58] sm:$0xff] %v760
                  %v762 = vld [vmem:[%s736 + $0x60] sm:$0xff]
                  %763 = vst [vmem:[%s737 + $0x60] sm:$0xff] %v762
                  %v764 = vld [vmem:[%s736 + $0x68] sm:$0xff]
                  %765 = vst [vmem:[%s737 + $0x68] sm:$0xff] %v764
                  %v766 = vld [vmem:[%s736 + $0x70] sm:$0xff]
                  %767 = vst [vmem:[%s737 + $0x70] sm:$0xff] %v766
                  %v768 = vld [vmem:[%s736 + $0x78] sm:$0xff]
                  %769 = vst [vmem:[%s737 + $0x78] sm:$0xff] %v768
                  %v770 = vld [vmem:[%s736 + $0x80] sm:$0xff]
                  %771 = vst [vmem:[%s737 + $0x80] sm:$0xff] %v770
                  %v772 = vld [vmem:[%s736 + $0x88] sm:$0xff]
                  %773 = vst [vmem:[%s737 + $0x88] sm:$0xff] %v772
                  %v774 = vld [vmem:[%s736 + $0x90] sm:$0xff]
                  %775 = vst [vmem:[%s737 + $0x90] sm:$0xff] %v774
                  %v776 = vld [vmem:[%s736 + $0x98] sm:$0xff]
                  %777 = vst [vmem:[%s737 + $0x98] sm:$0xff] %v776
                  %v778 = vld [vmem:[%s736 + $0xa0] sm:$0xff]
                  %779 = vst [vmem:[%s737 + $0xa0] sm:$0xff] %v778
                  %v780 = vld [vmem:[%s736 + $0xa8] sm:$0xff]
                  %781 = vst [vmem:[%s737 + $0xa8] sm:$0xff] %v780
                  %v782 = vld [vmem:[%s736 + $0xb0] sm:$0xff]
                  %783 = vst [vmem:[%s737 + $0xb0] sm:$0xff] %v782
                  %v784 = vld [vmem:[%s736 + $0xb8] sm:$0xff]
                  %785 = vst [vmem:[%s737 + $0xb8] sm:$0xff] %v784
                  %v786 = vld [vmem:[%s736 + $0xc0] sm:$0xff]
                  %787 = vst [vmem:[%s737 + $0xc0] sm:$0xff] %v786
                  %v788 = vld [vmem:[%s736 + $0xc8] sm:$0xff]
                  %789 = vst [vmem:[%s737 + $0xc8] sm:$0xff] %v788
                  %v790 = vld [vmem:[%s736 + $0xd0] sm:$0xff]
                  %791 = vst [vmem:[%s737 + $0xd0] sm:$0xff] %v790
                  %v792 = vld [vmem:[%s736 + $0xd8] sm:$0xff]
                  %793 = vst [vmem:[%s737 + $0xd8] sm:$0xff] %v792
                  %v794 = vld [vmem:[%s736 + $0xe0] sm:$0xff]
                  %795 = vst [vmem:[%s737 + $0xe0] sm:$0xff] %v794
                  %v796 = vld [vmem:[%s736 + $0xe8] sm:$0xff]
                  %797 = vst [vmem:[%s737 + $0xe8] sm:$0xff] %v796
                  %v798 = vld [vmem:[%s736 + $0xf0] sm:$0xff]
                  %799 = vst [vmem:[%s737 + $0xf0] sm:$0xff] %v798
                  %v800 = vld [vmem:[%s736 + $0xf8] sm:$0xff]
                  %801 = vst [vmem:[%s737 + $0xf8] sm:$0xff] %v800
                  %v802 = vld [vmem:[%s736 + $0x200] sm:$0xff]
                  %803 = vst [vmem:[%s737 + $0x100] sm:$0xff] %v802
                  %v804 = vld [vmem:[%s736 + $0x208] sm:$0xff]
                  %805 = vst [vmem:[%s737 + $0x108] sm:$0xff] %v804
                  %v806 = vld [vmem:[%s736 + $0x210] sm:$0xff]
                  %807 = vst [vmem:[%s737 + $0x110] sm:$0xff] %v806
                  %v808 = vld [vmem:[%s736 + $0x218] sm:$0xff]
                  %809 = vst [vmem:[%s737 + $0x118] sm:$0xff] %v808
                  %v810 = vld [vmem:[%s736 + $0x220] sm:$0xff]
                  %811 = vst [vmem:[%s737 + $0x120] sm:$0xff] %v810
                  %v812 = vld [vmem:[%s736 + $0x228] sm:$0xff]
                  %813 = vst [vmem:[%s737 + $0x128] sm:$0xff] %v812
                  %v814 = vld [vmem:[%s736 + $0x230] sm:$0xff]
                  %815 = vst [vmem:[%s737 + $0x130] sm:$0xff] %v814
                  %v816 = vld [vmem:[%s736 + $0x238] sm:$0xff]
                  %817 = vst [vmem:[%s737 + $0x138] sm:$0xff] %v816
                  %v818 = vld [vmem:[%s736 + $0x240] sm:$0xff]
                  %819 = vst [vmem:[%s737 + $0x140] sm:$0xff] %v818
                  %v820 = vld [vmem:[%s736 + $0x248] sm:$0xff]
                  %821 = vst [vmem:[%s737 + $0x148] sm:$0xff] %v820
                  %v822 = vld [vmem:[%s736 + $0x250] sm:$0xff]
                  %823 = vst [vmem:[%s737 + $0x150] sm:$0xff] %v822
                  %v824 = vld [vmem:[%s736 + $0x258] sm:$0xff]
                  %825 = vst [vmem:[%s737 + $0x158] sm:$0xff] %v824
                  %v826 = vld [vmem:[%s736 + $0x260] sm:$0xff]
                  %827 = vst [vmem:[%s737 + $0x160] sm:$0xff] %v826
                  %v828 = vld [vmem:[%s736 + $0x268] sm:$0xff]
                  %829 = vst [vmem:[%s737 + $0x168] sm:$0xff] %v828
                  %v830 = vld [vmem:[%s736 + $0x270] sm:$0xff]
                  %831 = vst [vmem:[%s737 + $0x170] sm:$0xff] %v830
                  %v832 = vld [vmem:[%s736 + $0x278] sm:$0xff]
                  %833 = vst [vmem:[%s737 + $0x178] sm:$0xff] %v832
                  %v834 = vld [vmem:[%s736 + $0x280] sm:$0xff]
                  %835 = vst [vmem:[%s737 + $0x180] sm:$0xff] %v834
                  %v836 = vld [vmem:[%s736 + $0x288] sm:$0xff]
                  %837 = vst [vmem:[%s737 + $0x188] sm:$0xff] %v836
                  %v838 = vld [vmem:[%s736 + $0x290] sm:$0xff]
                  %839 = vst [vmem:[%s737 + $0x190] sm:$0xff] %v838
                  %v840 = vld [vmem:[%s736 + $0x298] sm:$0xff]
                  %841 = vst [vmem:[%s737 + $0x198] sm:$0xff] %v840
                  %v842 = vld [vmem:[%s736 + $0x2a0] sm:$0xff]
                  %843 = vst [vmem:[%s737 + $0x1a0] sm:$0xff] %v842
                  %v844 = vld [vmem:[%s736 + $0x2a8] sm:$0xff]
                  %845 = vst [vmem:[%s737 + $0x1a8] sm:$0xff] %v844
                  %v846 = vld [vmem:[%s736 + $0x2b0] sm:$0xff]
                  %847 = vst [vmem:[%s737 + $0x1b0] sm:$0xff] %v846
                  %v848 = vld [vmem:[%s736 + $0x2b8] sm:$0xff]
                  %849 = vst [vmem:[%s737 + $0x1b8] sm:$0xff] %v848
                  %v850 = vld [vmem:[%s736 + $0x2c0] sm:$0xff]
                  %851 = vst [vmem:[%s737 + $0x1c0] sm:$0xff] %v850
                  %v852 = vld [vmem:[%s736 + $0x2c8] sm:$0xff]
                  %853 = vst [vmem:[%s737 + $0x1c8] sm:$0xff] %v852
                  %v854 = vld [vmem:[%s736 + $0x2d0] sm:$0xff]
                  %855 = vst [vmem:[%s737 + $0x1d0] sm:$0xff] %v854
                  %v856 = vld [vmem:[%s736 + $0x2d8] sm:$0xff]
                  %857 = vst [vmem:[%s737 + $0x1d8] sm:$0xff] %v856
                  %v858 = vld [vmem:[%s736 + $0x2e0] sm:$0xff]
                  %859 = vst [vmem:[%s737 + $0x1e0] sm:$0xff] %v858
                  %v860 = vld [vmem:[%s736 + $0x2e8] sm:$0xff]
                  %861 = vst [vmem:[%s737 + $0x1e8] sm:$0xff] %v860
                  %v862 = vld [vmem:[%s736 + $0x2f0] sm:$0xff]
                  %863 = vst [vmem:[%s737 + $0x1f0] sm:$0xff] %v862
                  %v864 = vld [vmem:[%s736 + $0x2f8] sm:$0xff]
                  %865 = vst [vmem:[%s737 + $0x1f8] sm:$0xff] %v864
                  %v866 = vld [vmem:[%s736 + $0x400] sm:$0xff]
                  %867 = vst [vmem:[%s737 + $0x200] sm:$0xff] %v866
                  %v868 = vld [vmem:[%s736 + $0x408] sm:$0xff]
                  %869 = vst [vmem:[%s737 + $0x208] sm:$0xff] %v868
                  %v870 = vld [vmem:[%s736 + $0x410] sm:$0xff]
                  %871 = vst [vmem:[%s737 + $0x210] sm:$0xff] %v870
                  %v872 = vld [vmem:[%s736 + $0x418] sm:$0xff]
                  %873 = vst [vmem:[%s737 + $0x218] sm:$0xff] %v872
                  %v874 = vld [vmem:[%s736 + $0x420] sm:$0xff]
                  %875 = vst [vmem:[%s737 + $0x220] sm:$0xff] %v874
                  %v876 = vld [vmem:[%s736 + $0x428] sm:$0xff]
                  %877 = vst [vmem:[%s737 + $0x228] sm:$0xff] %v876
                  %v878 = vld [vmem:[%s736 + $0x430] sm:$0xff]
                  %879 = vst [vmem:[%s737 + $0x230] sm:$0xff] %v878
                  %v880 = vld [vmem:[%s736 + $0x438] sm:$0xff]
                  %881 = vst [vmem:[%s737 + $0x238] sm:$0xff] %v880
                  %v882 = vld [vmem:[%s736 + $0x440] sm:$0xff]
                  %883 = vst [vmem:[%s737 + $0x240] sm:$0xff] %v882
                  %v884 = vld [vmem:[%s736 + $0x448] sm:$0xff]
                  %885 = vst [vmem:[%s737 + $0x248] sm:$0xff] %v884
                  %v886 = vld [vmem:[%s736 + $0x450] sm:$0xff]
                  %887 = vst [vmem:[%s737 + $0x250] sm:$0xff] %v886
                  %v888 = vld [vmem:[%s736 + $0x458] sm:$0xff]
                  %889 = vst [vmem:[%s737 + $0x258] sm:$0xff] %v888
                  %v890 = vld [vmem:[%s736 + $0x460] sm:$0xff]
                  %891 = vst [vmem:[%s737 + $0x260] sm:$0xff] %v890
                  %v892 = vld [vmem:[%s736 + $0x468] sm:$0xff]
                  %893 = vst [vmem:[%s737 + $0x268] sm:$0xff] %v892
                  %v894 = vld [vmem:[%s736 + $0x470] sm:$0xff]
                  %895 = vst [vmem:[%s737 + $0x270] sm:$0xff] %v894
                  %v896 = vld [vmem:[%s736 + $0x478] sm:$0xff]
                  %897 = vst [vmem:[%s737 + $0x278] sm:$0xff] %v896
                  %v898 = vld [vmem:[%s736 + $0x480] sm:$0xff]
                  %899 = vst [vmem:[%s737 + $0x280] sm:$0xff] %v898
                  %v900 = vld [vmem:[%s736 + $0x488] sm:$0xff]
                  %901 = vst [vmem:[%s737 + $0x288] sm:$0xff] %v900
                  %v902 = vld [vmem:[%s736 + $0x490] sm:$0xff]
                  %903 = vst [vmem:[%s737 + $0x290] sm:$0xff] %v902
                  %v904 = vld [vmem:[%s736 + $0x498] sm:$0xff]
                  %905 = vst [vmem:[%s737 + $0x298] sm:$0xff] %v904
                  %v906 = vld [vmem:[%s736 + $0x4a0] sm:$0xff]
                  %907 = vst [vmem:[%s737 + $0x2a0] sm:$0xff] %v906
                  %v908 = vld [vmem:[%s736 + $0x4a8] sm:$0xff]
                  %909 = vst [vmem:[%s737 + $0x2a8] sm:$0xff] %v908
                  %v910 = vld [vmem:[%s736 + $0x4b0] sm:$0xff]
                  %911 = vst [vmem:[%s737 + $0x2b0] sm:$0xff] %v910
                  %v912 = vld [vmem:[%s736 + $0x4b8] sm:$0xff]
                  %913 = vst [vmem:[%s737 + $0x2b8] sm:$0xff] %v912
                  %v914 = vld [vmem:[%s736 + $0x4c0] sm:$0xff]
                  %915 = vst [vmem:[%s737 + $0x2c0] sm:$0xff] %v914
                  %v916 = vld [vmem:[%s736 + $0x4c8] sm:$0xff]
                  %917 = vst [vmem:[%s737 + $0x2c8] sm:$0xff] %v916
                  %v918 = vld [vmem:[%s736 + $0x4d0] sm:$0xff]
                  %919 = vst [vmem:[%s737 + $0x2d0] sm:$0xff] %v918
                  %v920 = vld [vmem:[%s736 + $0x4d8] sm:$0xff]
                  %921 = vst [vmem:[%s737 + $0x2d8] sm:$0xff] %v920
                  %v922 = vld [vmem:[%s736 + $0x4e0] sm:$0xff]
                  %923 = vst [vmem:[%s737 + $0x2e0] sm:$0xff] %v922
                  %v924 = vld [vmem:[%s736 + $0x4e8] sm:$0xff]
                  %925 = vst [vmem:[%s737 + $0x2e8] sm:$0xff] %v924
                  %v926 = vld [vmem:[%s736 + $0x4f0] sm:$0xff]
                  %927 = vst [vmem:[%s737 + $0x2f0] sm:$0xff] %v926
                  %v928 = vld [vmem:[%s736 + $0x4f8] sm:$0xff]
                  %929 = vst [vmem:[%s737 + $0x2f8] sm:$0xff] %v928
                  %v930 = vld [vmem:[%s736 + $0x600] sm:$0xff]
                  %931 = vst [vmem:[%s737 + $0x300] sm:$0xff] %v930
                  %v932 = vld [vmem:[%s736 + $0x608] sm:$0xff]
                  %933 = vst [vmem:[%s737 + $0x308] sm:$0xff] %v932
                  %v934 = vld [vmem:[%s736 + $0x610] sm:$0xff]
                  %935 = vst [vmem:[%s737 + $0x310] sm:$0xff] %v934
                  %v936 = vld [vmem:[%s736 + $0x618] sm:$0xff]
                  %937 = vst [vmem:[%s737 + $0x318] sm:$0xff] %v936
                  %v938 = vld [vmem:[%s736 + $0x620] sm:$0xff]
                  %939 = vst [vmem:[%s737 + $0x320] sm:$0xff] %v938
                  %v940 = vld [vmem:[%s736 + $0x628] sm:$0xff]
                  %941 = vst [vmem:[%s737 + $0x328] sm:$0xff] %v940
                  %v942 = vld [vmem:[%s736 + $0x630] sm:$0xff]
                  %943 = vst [vmem:[%s737 + $0x330] sm:$0xff] %v942
                  %v944 = vld [vmem:[%s736 + $0x638] sm:$0xff]
                  %945 = vst [vmem:[%s737 + $0x338] sm:$0xff] %v944
                  %v946 = vld [vmem:[%s736 + $0x640] sm:$0xff]
                  %947 = vst [vmem:[%s737 + $0x340] sm:$0xff] %v946
                  %v948 = vld [vmem:[%s736 + $0x648] sm:$0xff]
                  %949 = vst [vmem:[%s737 + $0x348] sm:$0xff] %v948
                  %v950 = vld [vmem:[%s736 + $0x650] sm:$0xff]
                  %951 = vst [vmem:[%s737 + $0x350] sm:$0xff] %v950
                  %v952 = vld [vmem:[%s736 + $0x658] sm:$0xff]
                  %953 = vst [vmem:[%s737 + $0x358] sm:$0xff] %v952
                  %v954 = vld [vmem:[%s736 + $0x660] sm:$0xff]
                  %955 = vst [vmem:[%s737 + $0x360] sm:$0xff] %v954
                  %v956 = vld [vmem:[%s736 + $0x668] sm:$0xff]
                  %957 = vst [vmem:[%s737 + $0x368] sm:$0xff] %v956
                  %v958 = vld [vmem:[%s736 + $0x670] sm:$0xff]
                  %959 = vst [vmem:[%s737 + $0x370] sm:$0xff] %v958
                  %v960 = vld [vmem:[%s736 + $0x678] sm:$0xff]
                  %961 = vst [vmem:[%s737 + $0x378] sm:$0xff] %v960
                  %v962 = vld [vmem:[%s736 + $0x680] sm:$0xff]
                  %963 = vst [vmem:[%s737 + $0x380] sm:$0xff] %v962
                  %v964 = vld [vmem:[%s736 + $0x688] sm:$0xff]
                  %965 = vst [vmem:[%s737 + $0x388] sm:$0xff] %v964
                  %v966 = vld [vmem:[%s736 + $0x690] sm:$0xff]
                  %967 = vst [vmem:[%s737 + $0x390] sm:$0xff] %v966
                  %v968 = vld [vmem:[%s736 + $0x698] sm:$0xff]
                  %969 = vst [vmem:[%s737 + $0x398] sm:$0xff] %v968
                  %v970 = vld [vmem:[%s736 + $0x6a0] sm:$0xff]
                  %971 = vst [vmem:[%s737 + $0x3a0] sm:$0xff] %v970
                  %v972 = vld [vmem:[%s736 + $0x6a8] sm:$0xff]
                  %973 = vst [vmem:[%s737 + $0x3a8] sm:$0xff] %v972
                  %v974 = vld [vmem:[%s736 + $0x6b0] sm:$0xff]
                  %975 = vst [vmem:[%s737 + $0x3b0] sm:$0xff] %v974
                  %v976 = vld [vmem:[%s736 + $0x6b8] sm:$0xff]
                  %977 = vst [vmem:[%s737 + $0x3b8] sm:$0xff] %v976
                  %v978 = vld [vmem:[%s736 + $0x6c0] sm:$0xff]
                  %979 = vst [vmem:[%s737 + $0x3c0] sm:$0xff] %v978
                  %v980 = vld [vmem:[%s736 + $0x6c8] sm:$0xff]
                  %981 = vst [vmem:[%s737 + $0x3c8] sm:$0xff] %v980
                  %v982 = vld [vmem:[%s736 + $0x6d0] sm:$0xff]
                  %983 = vst [vmem:[%s737 + $0x3d0] sm:$0xff] %v982
                  %v984 = vld [vmem:[%s736 + $0x6d8] sm:$0xff]
                  %985 = vst [vmem:[%s737 + $0x3d8] sm:$0xff] %v984
                  %v986 = vld [vmem:[%s736 + $0x6e0] sm:$0xff]
                  %987 = vst [vmem:[%s737 + $0x3e0] sm:$0xff] %v986
                  %v988 = vld [vmem:[%s736 + $0x6e8] sm:$0xff]
                  %989 = vst [vmem:[%s737 + $0x3e8] sm:$0xff] %v988
                  %v990 = vld [vmem:[%s736 + $0x6f0] sm:$0xff]
                  %991 = vst [vmem:[%s737 + $0x3f0] sm:$0xff] %v990
                  %v992 = vld [vmem:[%s736 + $0x6f8] sm:$0xff]
                  %993 = vst [vmem:[%s737 + $0x3f8] sm:$0xff] %v992
                  %v994 = vld [vmem:[%s736 + $0x800] sm:$0xff]
                  %995 = vst [vmem:[%s737 + $0x400] sm:$0xff] %v994
                  %v996 = vld [vmem:[%s736 + $0x808] sm:$0xff]
                  %997 = vst [vmem:[%s737 + $0x408] sm:$0xff] %v996
                  %v998 = vld [vmem:[%s736 + $0x810] sm:$0xff]
                  %999 = vst [vmem:[%s737 + $0x410] sm:$0xff] %v998
                  %v1000 = vld [vmem:[%s736 + $0x818] sm:$0xff]
                  %1001 = vst [vmem:[%s737 + $0x418] sm:$0xff] %v1000
                  %v1002 = vld [vmem:[%s736 + $0x820] sm:$0xff]
                  %1003 = vst [vmem:[%s737 + $0x420] sm:$0xff] %v1002
                  %v1004 = vld [vmem:[%s736 + $0x828] sm:$0xff]
                  %1005 = vst [vmem:[%s737 + $0x428] sm:$0xff] %v1004
                  %v1006 = vld [vmem:[%s736 + $0x830] sm:$0xff]
                  %1007 = vst [vmem:[%s737 + $0x430] sm:$0xff] %v1006
                  %v1008 = vld [vmem:[%s736 + $0x838] sm:$0xff]
                  %1009 = vst [vmem:[%s737 + $0x438] sm:$0xff] %v1008
                  %v1010 = vld [vmem:[%s736 + $0x840] sm:$0xff]
                  %1011 = vst [vmem:[%s737 + $0x440] sm:$0xff] %v1010
                  %v1012 = vld [vmem:[%s736 + $0x848] sm:$0xff]
                  %1013 = vst [vmem:[%s737 + $0x448] sm:$0xff] %v1012
                  %v1014 = vld [vmem:[%s736 + $0x850] sm:$0xff]
                  %1015 = vst [vmem:[%s737 + $0x450] sm:$0xff] %v1014
                  %v1016 = vld [vmem:[%s736 + $0x858] sm:$0xff]
                  %1017 = vst [vmem:[%s737 + $0x458] sm:$0xff] %v1016
                  %v1018 = vld [vmem:[%s736 + $0x860] sm:$0xff]
                  %1019 = vst [vmem:[%s737 + $0x460] sm:$0xff] %v1018
                  %v1020 = vld [vmem:[%s736 + $0x868] sm:$0xff]
                  %1021 = vst [vmem:[%s737 + $0x468] sm:$0xff] %v1020
                  %v1022 = vld [vmem:[%s736 + $0x870] sm:$0xff]
                  %1023 = vst [vmem:[%s737 + $0x470] sm:$0xff] %v1022
                  %v1024 = vld [vmem:[%s736 + $0x878] sm:$0xff]
                  %1025 = vst [vmem:[%s737 + $0x478] sm:$0xff] %v1024
                  %v1026 = vld [vmem:[%s736 + $0x880] sm:$0xff]
                  %1027 = vst [vmem:[%s737 + $0x480] sm:$0xff] %v1026
                  %v1028 = vld [vmem:[%s736 + $0x888] sm:$0xff]
                  %1029 = vst [vmem:[%s737 + $0x488] sm:$0xff] %v1028
                  %v1030 = vld [vmem:[%s736 + $0x890] sm:$0xff]
                  %1031 = vst [vmem:[%s737 + $0x490] sm:$0xff] %v1030
                  %v1032 = vld [vmem:[%s736 + $0x898] sm:$0xff]
                  %1033 = vst [vmem:[%s737 + $0x498] sm:$0xff] %v1032
                  %v1034 = vld [vmem:[%s736 + $0x8a0] sm:$0xff]
                  %1035 = vst [vmem:[%s737 + $0x4a0] sm:$0xff] %v1034
                  %v1036 = vld [vmem:[%s736 + $0x8a8] sm:$0xff]
                  %1037 = vst [vmem:[%s737 + $0x4a8] sm:$0xff] %v1036
                  %v1038 = vld [vmem:[%s736 + $0x8b0] sm:$0xff]
                  %1039 = vst [vmem:[%s737 + $0x4b0] sm:$0xff] %v1038
                  %v1040 = vld [vmem:[%s736 + $0x8b8] sm:$0xff]
                  %1041 = vst [vmem:[%s737 + $0x4b8] sm:$0xff] %v1040
                  %v1042 = vld [vmem:[%s736 + $0x8c0] sm:$0xff]
                  %1043 = vst [vmem:[%s737 + $0x4c0] sm:$0xff] %v1042
                  %v1044 = vld [vmem:[%s736 + $0x8c8] sm:$0xff]
                  %1045 = vst [vmem:[%s737 + $0x4c8] sm:$0xff] %v1044
                  %v1046 = vld [vmem:[%s736 + $0x8d0] sm:$0xff]
                  %1047 = vst [vmem:[%s737 + $0x4d0] sm:$0xff] %v1046
                  %v1048 = vld [vmem:[%s736 + $0x8d8] sm:$0xff]
                  %1049 = vst [vmem:[%s737 + $0x4d8] sm:$0xff] %v1048
                  %v1050 = vld [vmem:[%s736 + $0x8e0] sm:$0xff]
                  %1051 = vst [vmem:[%s737 + $0x4e0] sm:$0xff] %v1050
                  %v1052 = vld [vmem:[%s736 + $0x8e8] sm:$0xff]
                  %1053 = vst [vmem:[%s737 + $0x4e8] sm:$0xff] %v1052
                  %v1054 = vld [vmem:[%s736 + $0x8f0] sm:$0xff]
                  %1055 = vst [vmem:[%s737 + $0x4f0] sm:$0xff] %v1054
                  %v1056 = vld [vmem:[%s736 + $0x8f8] sm:$0xff]
                  %1057 = vst [vmem:[%s737 + $0x4f8] sm:$0xff] %v1056
                  %v1058 = vld [vmem:[%s736 + $0xa00] sm:$0xff]
                  %1059 = vst [vmem:[%s737 + $0x500] sm:$0xff] %v1058
                  %v1060 = vld [vmem:[%s736 + $0xa08] sm:$0xff]
                  %1061 = vst [vmem:[%s737 + $0x508] sm:$0xff] %v1060
                  %v1062 = vld [vmem:[%s736 + $0xa10] sm:$0xff]
                  %1063 = vst [vmem:[%s737 + $0x510] sm:$0xff] %v1062
                  %v1064 = vld [vmem:[%s736 + $0xa18] sm:$0xff]
                  %1065 = vst [vmem:[%s737 + $0x518] sm:$0xff] %v1064
                  %v1066 = vld [vmem:[%s736 + $0xa20] sm:$0xff]
                  %1067 = vst [vmem:[%s737 + $0x520] sm:$0xff] %v1066
                  %v1068 = vld [vmem:[%s736 + $0xa28] sm:$0xff]
                  %1069 = vst [vmem:[%s737 + $0x528] sm:$0xff] %v1068
                  %v1070 = vld [vmem:[%s736 + $0xa30] sm:$0xff]
                  %1071 = vst [vmem:[%s737 + $0x530] sm:$0xff] %v1070
                  %v1072 = vld [vmem:[%s736 + $0xa38] sm:$0xff]
                  %1073 = vst [vmem:[%s737 + $0x538] sm:$0xff] %v1072
                  %v1074 = vld [vmem:[%s736 + $0xa40] sm:$0xff]
                  %1075 = vst [vmem:[%s737 + $0x540] sm:$0xff] %v1074
                  %v1076 = vld [vmem:[%s736 + $0xa48] sm:$0xff]
                  %1077 = vst [vmem:[%s737 + $0x548] sm:$0xff] %v1076
                  %v1078 = vld [vmem:[%s736 + $0xa50] sm:$0xff]
                  %1079 = vst [vmem:[%s737 + $0x550] sm:$0xff] %v1078
                  %v1080 = vld [vmem:[%s736 + $0xa58] sm:$0xff]
                  %1081 = vst [vmem:[%s737 + $0x558] sm:$0xff] %v1080
                  %v1082 = vld [vmem:[%s736 + $0xa60] sm:$0xff]
                  %1083 = vst [vmem:[%s737 + $0x560] sm:$0xff] %v1082
                  %v1084 = vld [vmem:[%s736 + $0xa68] sm:$0xff]
                  %1085 = vst [vmem:[%s737 + $0x568] sm:$0xff] %v1084
                  %v1086 = vld [vmem:[%s736 + $0xa70] sm:$0xff]
                  %1087 = vst [vmem:[%s737 + $0x570] sm:$0xff] %v1086
                  %v1088 = vld [vmem:[%s736 + $0xa78] sm:$0xff]
                  %1089 = vst [vmem:[%s737 + $0x578] sm:$0xff] %v1088
                  %v1090 = vld [vmem:[%s736 + $0xa80] sm:$0xff]
                  %1091 = vst [vmem:[%s737 + $0x580] sm:$0xff] %v1090
                  %v1092 = vld [vmem:[%s736 + $0xa88] sm:$0xff]
                  %1093 = vst [vmem:[%s737 + $0x588] sm:$0xff] %v1092
                  %v1094 = vld [vmem:[%s736 + $0xa90] sm:$0xff]
                  %1095 = vst [vmem:[%s737 + $0x590] sm:$0xff] %v1094
                  %v1096 = vld [vmem:[%s736 + $0xa98] sm:$0xff]
                  %1097 = vst [vmem:[%s737 + $0x598] sm:$0xff] %v1096
                  %v1098 = vld [vmem:[%s736 + $0xaa0] sm:$0xff]
                  %1099 = vst [vmem:[%s737 + $0x5a0] sm:$0xff] %v1098
                  %v1100 = vld [vmem:[%s736 + $0xaa8] sm:$0xff]
                  %1101 = vst [vmem:[%s737 + $0x5a8] sm:$0xff] %v1100
                  %v1102 = vld [vmem:[%s736 + $0xab0] sm:$0xff]
                  %1103 = vst [vmem:[%s737 + $0x5b0] sm:$0xff] %v1102
                  %v1104 = vld [vmem:[%s736 + $0xab8] sm:$0xff]
                  %1105 = vst [vmem:[%s737 + $0x5b8] sm:$0xff] %v1104
                  %v1106 = vld [vmem:[%s736 + $0xac0] sm:$0xff]
                  %1107 = vst [vmem:[%s737 + $0x5c0] sm:$0xff] %v1106
                  %v1108 = vld [vmem:[%s736 + $0xac8] sm:$0xff]
                  %1109 = vst [vmem:[%s737 + $0x5c8] sm:$0xff] %v1108
                  %v1110 = vld [vmem:[%s736 + $0xad0] sm:$0xff]
                  %1111 = vst [vmem:[%s737 + $0x5d0] sm:$0xff] %v1110
                  %v1112 = vld [vmem:[%s736 + $0xad8] sm:$0xff]
                  %1113 = vst [vmem:[%s737 + $0x5d8] sm:$0xff] %v1112
                  %v1114 = vld [vmem:[%s736 + $0xae0] sm:$0xff]
                  %1115 = vst [vmem:[%s737 + $0x5e0] sm:$0xff] %v1114
                  %v1116 = vld [vmem:[%s736 + $0xae8] sm:$0xff]
                  %1117 = vst [vmem:[%s737 + $0x5e8] sm:$0xff] %v1116
                  %v1118 = vld [vmem:[%s736 + $0xaf0] sm:$0xff]
                  %1119 = vst [vmem:[%s737 + $0x5f0] sm:$0xff] %v1118
                  %v1120 = vld [vmem:[%s736 + $0xaf8] sm:$0xff]
                  %1121 = vst [vmem:[%s737 + $0x5f8] sm:$0xff] %v1120
                  %v1122 = vld [vmem:[%s736 + $0xc00] sm:$0xff]
                  %1123 = vst [vmem:[%s737 + $0x600] sm:$0xff] %v1122
                  %v1124 = vld [vmem:[%s736 + $0xc08] sm:$0xff]
                  %1125 = vst [vmem:[%s737 + $0x608] sm:$0xff] %v1124
                  %v1126 = vld [vmem:[%s736 + $0xc10] sm:$0xff]
                  %1127 = vst [vmem:[%s737 + $0x610] sm:$0xff] %v1126
                  %v1128 = vld [vmem:[%s736 + $0xc18] sm:$0xff]
                  %1129 = vst [vmem:[%s737 + $0x618] sm:$0xff] %v1128
                  %v1130 = vld [vmem:[%s736 + $0xc20] sm:$0xff]
                  %1131 = vst [vmem:[%s737 + $0x620] sm:$0xff] %v1130
                  %v1132 = vld [vmem:[%s736 + $0xc28] sm:$0xff]
                  %1133 = vst [vmem:[%s737 + $0x628] sm:$0xff] %v1132
                  %v1134 = vld [vmem:[%s736 + $0xc30] sm:$0xff]
                  %1135 = vst [vmem:[%s737 + $0x630] sm:$0xff] %v1134
                  %v1136 = vld [vmem:[%s736 + $0xc38] sm:$0xff]
                  %1137 = vst [vmem:[%s737 + $0x638] sm:$0xff] %v1136
                  %v1138 = vld [vmem:[%s736 + $0xc40] sm:$0xff]
                  %1139 = vst [vmem:[%s737 + $0x640] sm:$0xff] %v1138
                  %v1140 = vld [vmem:[%s736 + $0xc48] sm:$0xff]
                  %1141 = vst [vmem:[%s737 + $0x648] sm:$0xff] %v1140
                  %v1142 = vld [vmem:[%s736 + $0xc50] sm:$0xff]
                  %1143 = vst [vmem:[%s737 + $0x650] sm:$0xff] %v1142
                  %v1144 = vld [vmem:[%s736 + $0xc58] sm:$0xff]
                  %1145 = vst [vmem:[%s737 + $0x658] sm:$0xff] %v1144
                  %v1146 = vld [vmem:[%s736 + $0xc60] sm:$0xff]
                  %1147 = vst [vmem:[%s737 + $0x660] sm:$0xff] %v1146
                  %v1148 = vld [vmem:[%s736 + $0xc68] sm:$0xff]
                  %1149 = vst [vmem:[%s737 + $0x668] sm:$0xff] %v1148
                  %v1150 = vld [vmem:[%s736 + $0xc70] sm:$0xff]
                  %1151 = vst [vmem:[%s737 + $0x670] sm:$0xff] %v1150
                  %v1152 = vld [vmem:[%s736 + $0xc78] sm:$0xff]
                  %1153 = vst [vmem:[%s737 + $0x678] sm:$0xff] %v1152
                  %v1154 = vld [vmem:[%s736 + $0xc80] sm:$0xff]
                  %1155 = vst [vmem:[%s737 + $0x680] sm:$0xff] %v1154
                  %v1156 = vld [vmem:[%s736 + $0xc88] sm:$0xff]
                  %1157 = vst [vmem:[%s737 + $0x688] sm:$0xff] %v1156
                  %v1158 = vld [vmem:[%s736 + $0xc90] sm:$0xff]
                  %1159 = vst [vmem:[%s737 + $0x690] sm:$0xff] %v1158
                  %v1160 = vld [vmem:[%s736 + $0xc98] sm:$0xff]
                  %1161 = vst [vmem:[%s737 + $0x698] sm:$0xff] %v1160
                  %v1162 = vld [vmem:[%s736 + $0xca0] sm:$0xff]
                  %1163 = vst [vmem:[%s737 + $0x6a0] sm:$0xff] %v1162
                  %v1164 = vld [vmem:[%s736 + $0xca8] sm:$0xff]
                  %1165 = vst [vmem:[%s737 + $0x6a8] sm:$0xff] %v1164
                  %v1166 = vld [vmem:[%s736 + $0xcb0] sm:$0xff]
                  %1167 = vst [vmem:[%s737 + $0x6b0] sm:$0xff] %v1166
                  %v1168 = vld [vmem:[%s736 + $0xcb8] sm:$0xff]
                  %1169 = vst [vmem:[%s737 + $0x6b8] sm:$0xff] %v1168
                  %v1170 = vld [vmem:[%s736 + $0xcc0] sm:$0xff]
                  %1171 = vst [vmem:[%s737 + $0x6c0] sm:$0xff] %v1170
                  %v1172 = vld [vmem:[%s736 + $0xcc8] sm:$0xff]
                  %1173 = vst [vmem:[%s737 + $0x6c8] sm:$0xff] %v1172
                  %v1174 = vld [vmem:[%s736 + $0xcd0] sm:$0xff]
                  %1175 = vst [vmem:[%s737 + $0x6d0] sm:$0xff] %v1174
                  %v1176 = vld [vmem:[%s736 + $0xcd8] sm:$0xff]
                  %1177 = vst [vmem:[%s737 + $0x6d8] sm:$0xff] %v1176
                  %v1178 = vld [vmem:[%s736 + $0xce0] sm:$0xff]
                  %1179 = vst [vmem:[%s737 + $0x6e0] sm:$0xff] %v1178
                  %v1180 = vld [vmem:[%s736 + $0xce8] sm:$0xff]
                  %1181 = vst [vmem:[%s737 + $0x6e8] sm:$0xff] %v1180
                  %v1182 = vld [vmem:[%s736 + $0xcf0] sm:$0xff]
                  %1183 = vst [vmem:[%s737 + $0x6f0] sm:$0xff] %v1182
                  %v1184 = vld [vmem:[%s736 + $0xcf8] sm:$0xff]
                  %1185 = vst [vmem:[%s737 + $0x6f8] sm:$0xff] %v1184
                  %v1186 = vld [vmem:[%s736 + $0xe00] sm:$0xff]
                  %1187 = vst [vmem:[%s737 + $0x700] sm:$0xff] %v1186
                  %v1188 = vld [vmem:[%s736 + $0xe08] sm:$0xff]
                  %1189 = vst [vmem:[%s737 + $0x708] sm:$0xff] %v1188
                  %v1190 = vld [vmem:[%s736 + $0xe10] sm:$0xff]
                  %1191 = vst [vmem:[%s737 + $0x710] sm:$0xff] %v1190
                  %v1192 = vld [vmem:[%s736 + $0xe18] sm:$0xff]
                  %1193 = vst [vmem:[%s737 + $0x718] sm:$0xff] %v1192
                  %v1194 = vld [vmem:[%s736 + $0xe20] sm:$0xff]
                  %1195 = vst [vmem:[%s737 + $0x720] sm:$0xff] %v1194
                  %v1196 = vld [vmem:[%s736 + $0xe28] sm:$0xff]
                  %1197 = vst [vmem:[%s737 + $0x728] sm:$0xff] %v1196
                  %v1198 = vld [vmem:[%s736 + $0xe30] sm:$0xff]
                  %1199 = vst [vmem:[%s737 + $0x730] sm:$0xff] %v1198
                  %v1200 = vld [vmem:[%s736 + $0xe38] sm:$0xff]
                  %1201 = vst [vmem:[%s737 + $0x738] sm:$0xff] %v1200
                  %v1202 = vld [vmem:[%s736 + $0xe40] sm:$0xff]
                  %1203 = vst [vmem:[%s737 + $0x740] sm:$0xff] %v1202
                  %v1204 = vld [vmem:[%s736 + $0xe48] sm:$0xff]
                  %1205 = vst [vmem:[%s737 + $0x748] sm:$0xff] %v1204
                  %v1206 = vld [vmem:[%s736 + $0xe50] sm:$0xff]
                  %1207 = vst [vmem:[%s737 + $0x750] sm:$0xff] %v1206
                  %v1208 = vld [vmem:[%s736 + $0xe58] sm:$0xff]
                  %1209 = vst [vmem:[%s737 + $0x758] sm:$0xff] %v1208
                  %v1210 = vld [vmem:[%s736 + $0xe60] sm:$0xff]
                  %1211 = vst [vmem:[%s737 + $0x760] sm:$0xff] %v1210
                  %v1212 = vld [vmem:[%s736 + $0xe68] sm:$0xff]
                  %1213 = vst [vmem:[%s737 + $0x768] sm:$0xff] %v1212
                  %v1214 = vld [vmem:[%s736 + $0xe70] sm:$0xff]
                  %1215 = vst [vmem:[%s737 + $0x770] sm:$0xff] %v1214
                  %v1216 = vld [vmem:[%s736 + $0xe78] sm:$0xff]
                  %1217 = vst [vmem:[%s737 + $0x778] sm:$0xff] %v1216
                  %v1218 = vld [vmem:[%s736 + $0xe80] sm:$0xff]
                  %1219 = vst [vmem:[%s737 + $0x780] sm:$0xff] %v1218
                  %v1220 = vld [vmem:[%s736 + $0xe88] sm:$0xff]
                  %1221 = vst [vmem:[%s737 + $0x788] sm:$0xff] %v1220
                  %v1222 = vld [vmem:[%s736 + $0xe90] sm:$0xff]
                  %1223 = vst [vmem:[%s737 + $0x790] sm:$0xff] %v1222
                  %v1224 = vld [vmem:[%s736 + $0xe98] sm:$0xff]
                  %1225 = vst [vmem:[%s737 + $0x798] sm:$0xff] %v1224
                  %v1226 = vld [vmem:[%s736 + $0xea0] sm:$0xff]
                  %1227 = vst [vmem:[%s737 + $0x7a0] sm:$0xff] %v1226
                  %v1228 = vld [vmem:[%s736 + $0xea8] sm:$0xff]
                  %1229 = vst [vmem:[%s737 + $0x7a8] sm:$0xff] %v1228
                  %v1230 = vld [vmem:[%s736 + $0xeb0] sm:$0xff]
                  %1231 = vst [vmem:[%s737 + $0x7b0] sm:$0xff] %v1230
                  %v1232 = vld [vmem:[%s736 + $0xeb8] sm:$0xff]
                  %1233 = vst [vmem:[%s737 + $0x7b8] sm:$0xff] %v1232
                  %v1234 = vld [vmem:[%s736 + $0xec0] sm:$0xff]
                  %1235 = vst [vmem:[%s737 + $0x7c0] sm:$0xff] %v1234
                  %v1236 = vld [vmem:[%s736 + $0xec8] sm:$0xff]
                  %1237 = vst [vmem:[%s737 + $0x7c8] sm:$0xff] %v1236
                  %v1238 = vld [vmem:[%s736 + $0xed0] sm:$0xff]
                  %1239 = vst [vmem:[%s737 + $0x7d0] sm:$0xff] %v1238
                  %v1240 = vld [vmem:[%s736 + $0xed8] sm:$0xff]
                  %1241 = vst [vmem:[%s737 + $0x7d8] sm:$0xff] %v1240
                  %v1242 = vld [vmem:[%s736 + $0xee0] sm:$0xff]
                  %1243 = vst [vmem:[%s737 + $0x7e0] sm:$0xff] %v1242
                  %v1244 = vld [vmem:[%s736 + $0xee8] sm:$0xff]
                  %1245 = vst [vmem:[%s737 + $0x7e8] sm:$0xff] %v1244
                  %v1246 = vld [vmem:[%s736 + $0xef0] sm:$0xff]
                  %1247 = vst [vmem:[%s737 + $0x7f0] sm:$0xff] %v1246
                  %v1248 = vld [vmem:[%s736 + $0xef8] sm:$0xff]
                  %1249 = vst [vmem:[%s737 + $0x7f8] sm:$0xff] %v1248
                  %v1250 = vld [vmem:[%s736 + $0x1000] sm:$0xff]
                  %1251 = vst [vmem:[%s737 + $0x800] sm:$0xff] %v1250
                  %v1252 = vld [vmem:[%s736 + $0x1008] sm:$0xff]
                  %1253 = vst [vmem:[%s737 + $0x808] sm:$0xff] %v1252
                  %v1254 = vld [vmem:[%s736 + $0x1010] sm:$0xff]
                  %1255 = vst [vmem:[%s737 + $0x810] sm:$0xff] %v1254
                  %v1256 = vld [vmem:[%s736 + $0x1018] sm:$0xff]
                  %1257 = vst [vmem:[%s737 + $0x818] sm:$0xff] %v1256
                  %v1258 = vld [vmem:[%s736 + $0x1020] sm:$0xff]
                  %1259 = vst [vmem:[%s737 + $0x820] sm:$0xff] %v1258
                  %v1260 = vld [vmem:[%s736 + $0x1028] sm:$0xff]
                  %1261 = vst [vmem:[%s737 + $0x828] sm:$0xff] %v1260
                  %v1262 = vld [vmem:[%s736 + $0x1030] sm:$0xff]
                  %1263 = vst [vmem:[%s737 + $0x830] sm:$0xff] %v1262
                  %v1264 = vld [vmem:[%s736 + $0x1038] sm:$0xff]
                  %1265 = vst [vmem:[%s737 + $0x838] sm:$0xff] %v1264
                  %v1266 = vld [vmem:[%s736 + $0x1040] sm:$0xff]
                  %1267 = vst [vmem:[%s737 + $0x840] sm:$0xff] %v1266
                  %v1268 = vld [vmem:[%s736 + $0x1048] sm:$0xff]
                  %1269 = vst [vmem:[%s737 + $0x848] sm:$0xff] %v1268
                  %v1270 = vld [vmem:[%s736 + $0x1050] sm:$0xff]
                  %1271 = vst [vmem:[%s737 + $0x850] sm:$0xff] %v1270
                  %v1272 = vld [vmem:[%s736 + $0x1058] sm:$0xff]
                  %1273 = vst [vmem:[%s737 + $0x858] sm:$0xff] %v1272
                  %v1274 = vld [vmem:[%s736 + $0x1060] sm:$0xff]
                  %1275 = vst [vmem:[%s737 + $0x860] sm:$0xff] %v1274
                  %v1276 = vld [vmem:[%s736 + $0x1068] sm:$0xff]
                  %1277 = vst [vmem:[%s737 + $0x868] sm:$0xff] %v1276
                  %v1278 = vld [vmem:[%s736 + $0x1070] sm:$0xff]
                  %1279 = vst [vmem:[%s737 + $0x870] sm:$0xff] %v1278
                  %v1280 = vld [vmem:[%s736 + $0x1078] sm:$0xff]
                  %1281 = vst [vmem:[%s737 + $0x878] sm:$0xff] %v1280
                  %v1282 = vld [vmem:[%s736 + $0x1080] sm:$0xff]
                  %1283 = vst [vmem:[%s737 + $0x880] sm:$0xff] %v1282
                  %v1284 = vld [vmem:[%s736 + $0x1088] sm:$0xff]
                  %1285 = vst [vmem:[%s737 + $0x888] sm:$0xff] %v1284
                  %v1286 = vld [vmem:[%s736 + $0x1090] sm:$0xff]
                  %1287 = vst [vmem:[%s737 + $0x890] sm:$0xff] %v1286
                  %v1288 = vld [vmem:[%s736 + $0x1098] sm:$0xff]
                  %1289 = vst [vmem:[%s737 + $0x898] sm:$0xff] %v1288
                  %v1290 = vld [vmem:[%s736 + $0x10a0] sm:$0xff]
                  %1291 = vst [vmem:[%s737 + $0x8a0] sm:$0xff] %v1290
                  %v1292 = vld [vmem:[%s736 + $0x10a8] sm:$0xff]
                  %1293 = vst [vmem:[%s737 + $0x8a8] sm:$0xff] %v1292
                  %v1294 = vld [vmem:[%s736 + $0x10b0] sm:$0xff]
                  %1295 = vst [vmem:[%s737 + $0x8b0] sm:$0xff] %v1294
                  %v1296 = vld [vmem:[%s736 + $0x10b8] sm:$0xff]
                  %1297 = vst [vmem:[%s737 + $0x8b8] sm:$0xff] %v1296
                  %v1298 = vld [vmem:[%s736 + $0x10c0] sm:$0xff]
                  %1299 = vst [vmem:[%s737 + $0x8c0] sm:$0xff] %v1298
                  %v1300 = vld [vmem:[%s736 + $0x10c8] sm:$0xff]
                  %1301 = vst [vmem:[%s737 + $0x8c8] sm:$0xff] %v1300
                  %v1302 = vld [vmem:[%s736 + $0x10d0] sm:$0xff]
                  %1303 = vst [vmem:[%s737 + $0x8d0] sm:$0xff] %v1302
                  %v1304 = vld [vmem:[%s736 + $0x10d8] sm:$0xff]
                  %1305 = vst [vmem:[%s737 + $0x8d8] sm:$0xff] %v1304
                  %v1306 = vld [vmem:[%s736 + $0x10e0] sm:$0xff]
                  %1307 = vst [vmem:[%s737 + $0x8e0] sm:$0xff] %v1306
                  %v1308 = vld [vmem:[%s736 + $0x10e8] sm:$0xff]
                  %1309 = vst [vmem:[%s737 + $0x8e8] sm:$0xff] %v1308
                  %v1310 = vld [vmem:[%s736 + $0x10f0] sm:$0xff]
                  %1311 = vst [vmem:[%s737 + $0x8f0] sm:$0xff] %v1310
                  %v1312 = vld [vmem:[%s736 + $0x10f8] sm:$0xff]
                  %1313 = vst [vmem:[%s737 + $0x8f8] sm:$0xff] %v1312
                $region52: #{bottleneck_forward.7} parent=46 // loop_footer
                  %s735 = sadd.s32 1, %s731
                $region53: #{bottleneck_forward.7} parent=46 // loop_footer_branch
                  %730 = sbr.rel target = $region49
                $region54: #{bottleneck_forward.7} parent=46 // loop_exit
                  _
              $region47: #{bottleneck_forward.7} parent=31 // pred_fallthru
                _
              // Predicated region
              $region55: #{bottleneck_forward.7} parent=31 // pred_check
                _
              $region56: #{bottleneck_forward.7} parent=31 // pred_check_branch
                %1315 = sbr.rel target = $region58
              $region57: #{bottleneck_forward.7} parent=31 // pred_region
                _
              $region58: #{bottleneck_forward.7} parent=31 // pred_fallthru
                _
            $region32: #{bottleneck_forward.7} parent=27 // pred_fallthru
              _
            // Predicated region
            $region33: #{bottleneck_forward.7} parent=27 // pred_check
              _
            $region34: #{bottleneck_forward.7} parent=27 // pred_check_branch
              %141 = sbr.rel target = $region36
            $region35: #{bottleneck_forward.7} parent=27 // pred_region
              %s143 = ssub.s32 256, 1
              loop: start=0, step=1, limit=1
              $region37: #{bottleneck_forward.7} parent=35 // loop_pre_header
                _
              $region38: #{bottleneck_forward.7} parent=35 // loop_header
                %s145 = sphi 0, %s149
                %p146 = scmp.ge.s32.totalorder %s145, 1
                %s150 = sphi %s135, %s135
                %s151 = sphi %s132, %s132
              $region39: #{bottleneck_forward.7} parent=35 // loop_header_branch
                %148 = sbr.rel (%p146) target = $region43
              $region40: #{bottleneck_forward.7} parent=35 // loop_body
                %v152 = vld [vmem:[%s150] sm:%s143]
                %153 = vst [vmem:[%s151] sm:%s143] %v152
                %v154 = vld [vmem:[%s150 + $0x8] sm:%s143]
                %155 = vst [vmem:[%s151 + $0x8] sm:%s143] %v154
                %v156 = vld [vmem:[%s150 + $0x10] sm:%s143]
                %157 = vst [vmem:[%s151 + $0x10] sm:%s143] %v156
                %v158 = vld [vmem:[%s150 + $0x18] sm:%s143]
                %159 = vst [vmem:[%s151 + $0x18] sm:%s143] %v158
                %v160 = vld [vmem:[%s150 + $0x20] sm:%s143]
                %161 = vst [vmem:[%s151 + $0x20] sm:%s143] %v160
                %v162 = vld [vmem:[%s150 + $0x28] sm:%s143]
                %163 = vst [vmem:[%s151 + $0x28] sm:%s143] %v162
                %v164 = vld [vmem:[%s150 + $0x30] sm:%s143]
                %165 = vst [vmem:[%s151 + $0x30] sm:%s143] %v164
                %v166 = vld [vmem:[%s150 + $0x38] sm:%s143]
                %167 = vst [vmem:[%s151 + $0x38] sm:%s143] %v166
                %v168 = vld [vmem:[%s150 + $0x40] sm:%s143]
                %169 = vst [vmem:[%s151 + $0x40] sm:%s143] %v168
                %v170 = vld [vmem:[%s150 + $0x48] sm:%s143]
                %171 = vst [vmem:[%s151 + $0x48] sm:%s143] %v170
                %v172 = vld [vmem:[%s150 + $0x50] sm:%s143]
                %173 = vst [vmem:[%s151 + $0x50] sm:%s143] %v172
                %v174 = vld [vmem:[%s150 + $0x58] sm:%s143]
                %175 = vst [vmem:[%s151 + $0x58] sm:%s143] %v174
                %v176 = vld [vmem:[%s150 + $0x60] sm:%s143]
                %177 = vst [vmem:[%s151 + $0x60] sm:%s143] %v176
                %v178 = vld [vmem:[%s150 + $0x68] sm:%s143]
                %179 = vst [vmem:[%s151 + $0x68] sm:%s143] %v178
                %v180 = vld [vmem:[%s150 + $0x70] sm:%s143]
                %181 = vst [vmem:[%s151 + $0x70] sm:%s143] %v180
                %v182 = vld [vmem:[%s150 + $0x78] sm:%s143]
                %183 = vst [vmem:[%s151 + $0x78] sm:%s143] %v182
                %v184 = vld [vmem:[%s150 + $0x80] sm:%s143]
                %185 = vst [vmem:[%s151 + $0x80] sm:%s143] %v184
                %v186 = vld [vmem:[%s150 + $0x88] sm:%s143]
                %187 = vst [vmem:[%s151 + $0x88] sm:%s143] %v186
                %v188 = vld [vmem:[%s150 + $0x90] sm:%s143]
                %189 = vst [vmem:[%s151 + $0x90] sm:%s143] %v188
                %v190 = vld [vmem:[%s150 + $0x98] sm:%s143]
                %191 = vst [vmem:[%s151 + $0x98] sm:%s143] %v190
                %v192 = vld [vmem:[%s150 + $0xa0] sm:%s143]
                %193 = vst [vmem:[%s151 + $0xa0] sm:%s143] %v192
                %v194 = vld [vmem:[%s150 + $0xa8] sm:%s143]
                %195 = vst [vmem:[%s151 + $0xa8] sm:%s143] %v194
                %v196 = vld [vmem:[%s150 + $0xb0] sm:%s143]
                %197 = vst [vmem:[%s151 + $0xb0] sm:%s143] %v196
                %v198 = vld [vmem:[%s150 + $0xb8] sm:%s143]
                %199 = vst [vmem:[%s151 + $0xb8] sm:%s143] %v198
                %v200 = vld [vmem:[%s150 + $0xc0] sm:%s143]
                %201 = vst [vmem:[%s151 + $0xc0] sm:%s143] %v200
                %v202 = vld [vmem:[%s150 + $0xc8] sm:%s143]
                %203 = vst [vmem:[%s151 + $0xc8] sm:%s143] %v202
                %v204 = vld [vmem:[%s150 + $0xd0] sm:%s143]
                %205 = vst [vmem:[%s151 + $0xd0] sm:%s143] %v204
                %v206 = vld [vmem:[%s150 + $0xd8] sm:%s143]
                %207 = vst [vmem:[%s151 + $0xd8] sm:%s143] %v206
                %v208 = vld [vmem:[%s150 + $0xe0] sm:%s143]
                %209 = vst [vmem:[%s151 + $0xe0] sm:%s143] %v208
                %v210 = vld [vmem:[%s150 + $0xe8] sm:%s143]
                %211 = vst [vmem:[%s151 + $0xe8] sm:%s143] %v210
                %v212 = vld [vmem:[%s150 + $0xf0] sm:%s143]
                %213 = vst [vmem:[%s151 + $0xf0] sm:%s143] %v212
                %v214 = vld [vmem:[%s150 + $0xf8] sm:%s143]
                %215 = vst [vmem:[%s151 + $0xf8] sm:%s143] %v214
                %v216 = vld [vmem:[%s150 + $0x200] sm:%s143]
                %217 = vst [vmem:[%s151 + $0x100] sm:%s143] %v216
                %v218 = vld [vmem:[%s150 + $0x208] sm:%s143]
                %219 = vst [vmem:[%s151 + $0x108] sm:%s143] %v218
                %v220 = vld [vmem:[%s150 + $0x210] sm:%s143]
                %221 = vst [vmem:[%s151 + $0x110] sm:%s143] %v220
                %v222 = vld [vmem:[%s150 + $0x218] sm:%s143]
                %223 = vst [vmem:[%s151 + $0x118] sm:%s143] %v222
                %v224 = vld [vmem:[%s150 + $0x220] sm:%s143]
                %225 = vst [vmem:[%s151 + $0x120] sm:%s143] %v224
                %v226 = vld [vmem:[%s150 + $0x228] sm:%s143]
                %227 = vst [vmem:[%s151 + $0x128] sm:%s143] %v226
                %v228 = vld [vmem:[%s150 + $0x230] sm:%s143]
                %229 = vst [vmem:[%s151 + $0x130] sm:%s143] %v228
                %v230 = vld [vmem:[%s150 + $0x238] sm:%s143]
                %231 = vst [vmem:[%s151 + $0x138] sm:%s143] %v230
                %v232 = vld [vmem:[%s150 + $0x240] sm:%s143]
                %233 = vst [vmem:[%s151 + $0x140] sm:%s143] %v232
                %v234 = vld [vmem:[%s150 + $0x248] sm:%s143]
                %235 = vst [vmem:[%s151 + $0x148] sm:%s143] %v234
                %v236 = vld [vmem:[%s150 + $0x250] sm:%s143]
                %237 = vst [vmem:[%s151 + $0x150] sm:%s143] %v236
                %v238 = vld [vmem:[%s150 + $0x258] sm:%s143]
                %239 = vst [vmem:[%s151 + $0x158] sm:%s143] %v238
                %v240 = vld [vmem:[%s150 + $0x260] sm:%s143]
                %241 = vst [vmem:[%s151 + $0x160] sm:%s143] %v240
                %v242 = vld [vmem:[%s150 + $0x268] sm:%s143]
                %243 = vst [vmem:[%s151 + $0x168] sm:%s143] %v242
                %v244 = vld [vmem:[%s150 + $0x270] sm:%s143]
                %245 = vst [vmem:[%s151 + $0x170] sm:%s143] %v244
                %v246 = vld [vmem:[%s150 + $0x278] sm:%s143]
                %247 = vst [vmem:[%s151 + $0x178] sm:%s143] %v246
                %v248 = vld [vmem:[%s150 + $0x280] sm:%s143]
                %249 = vst [vmem:[%s151 + $0x180] sm:%s143] %v248
                %v250 = vld [vmem:[%s150 + $0x288] sm:%s143]
                %251 = vst [vmem:[%s151 + $0x188] sm:%s143] %v250
                %v252 = vld [vmem:[%s150 + $0x290] sm:%s143]
                %253 = vst [vmem:[%s151 + $0x190] sm:%s143] %v252
                %v254 = vld [vmem:[%s150 + $0x298] sm:%s143]
                %255 = vst [vmem:[%s151 + $0x198] sm:%s143] %v254
                %v256 = vld [vmem:[%s150 + $0x2a0] sm:%s143]
                %257 = vst [vmem:[%s151 + $0x1a0] sm:%s143] %v256
                %v258 = vld [vmem:[%s150 + $0x2a8] sm:%s143]
                %259 = vst [vmem:[%s151 + $0x1a8] sm:%s143] %v258
                %v260 = vld [vmem:[%s150 + $0x2b0] sm:%s143]
                %261 = vst [vmem:[%s151 + $0x1b0] sm:%s143] %v260
                %v262 = vld [vmem:[%s150 + $0x2b8] sm:%s143]
                %263 = vst [vmem:[%s151 + $0x1b8] sm:%s143] %v262
                %v264 = vld [vmem:[%s150 + $0x2c0] sm:%s143]
                %265 = vst [vmem:[%s151 + $0x1c0] sm:%s143] %v264
                %v266 = vld [vmem:[%s150 + $0x2c8] sm:%s143]
                %267 = vst [vmem:[%s151 + $0x1c8] sm:%s143] %v266
                %v268 = vld [vmem:[%s150 + $0x2d0] sm:%s143]
                %269 = vst [vmem:[%s151 + $0x1d0] sm:%s143] %v268
                %v270 = vld [vmem:[%s150 + $0x2d8] sm:%s143]
                %271 = vst [vmem:[%s151 + $0x1d8] sm:%s143] %v270
                %v272 = vld [vmem:[%s150 + $0x2e0] sm:%s143]
                %273 = vst [vmem:[%s151 + $0x1e0] sm:%s143] %v272
                %v274 = vld [vmem:[%s150 + $0x2e8] sm:%s143]
                %275 = vst [vmem:[%s151 + $0x1e8] sm:%s143] %v274
                %v276 = vld [vmem:[%s150 + $0x2f0] sm:%s143]
                %277 = vst [vmem:[%s151 + $0x1f0] sm:%s143] %v276
                %v278 = vld [vmem:[%s150 + $0x2f8] sm:%s143]
                %279 = vst [vmem:[%s151 + $0x1f8] sm:%s143] %v278
                %v280 = vld [vmem:[%s150 + $0x400] sm:%s143]
                %281 = vst [vmem:[%s151 + $0x200] sm:%s143] %v280
                %v282 = vld [vmem:[%s150 + $0x408] sm:%s143]
                %283 = vst [vmem:[%s151 + $0x208] sm:%s143] %v282
                %v284 = vld [vmem:[%s150 + $0x410] sm:%s143]
                %285 = vst [vmem:[%s151 + $0x210] sm:%s143] %v284
                %v286 = vld [vmem:[%s150 + $0x418] sm:%s143]
                %287 = vst [vmem:[%s151 + $0x218] sm:%s143] %v286
                %v288 = vld [vmem:[%s150 + $0x420] sm:%s143]
                %289 = vst [vmem:[%s151 + $0x220] sm:%s143] %v288
                %v290 = vld [vmem:[%s150 + $0x428] sm:%s143]
                %291 = vst [vmem:[%s151 + $0x228] sm:%s143] %v290
                %v292 = vld [vmem:[%s150 + $0x430] sm:%s143]
                %293 = vst [vmem:[%s151 + $0x230] sm:%s143] %v292
                %v294 = vld [vmem:[%s150 + $0x438] sm:%s143]
                %295 = vst [vmem:[%s151 + $0x238] sm:%s143] %v294
                %v296 = vld [vmem:[%s150 + $0x440] sm:%s143]
                %297 = vst [vmem:[%s151 + $0x240] sm:%s143] %v296
                %v298 = vld [vmem:[%s150 + $0x448] sm:%s143]
                %299 = vst [vmem:[%s151 + $0x248] sm:%s143] %v298
                %v300 = vld [vmem:[%s150 + $0x450] sm:%s143]
                %301 = vst [vmem:[%s151 + $0x250] sm:%s143] %v300
                %v302 = vld [vmem:[%s150 + $0x458] sm:%s143]
                %303 = vst [vmem:[%s151 + $0x258] sm:%s143] %v302
                %v304 = vld [vmem:[%s150 + $0x460] sm:%s143]
                %305 = vst [vmem:[%s151 + $0x260] sm:%s143] %v304
                %v306 = vld [vmem:[%s150 + $0x468] sm:%s143]
                %307 = vst [vmem:[%s151 + $0x268] sm:%s143] %v306
                %v308 = vld [vmem:[%s150 + $0x470] sm:%s143]
                %309 = vst [vmem:[%s151 + $0x270] sm:%s143] %v308
                %v310 = vld [vmem:[%s150 + $0x478] sm:%s143]
                %311 = vst [vmem:[%s151 + $0x278] sm:%s143] %v310
                %v312 = vld [vmem:[%s150 + $0x480] sm:%s143]
                %313 = vst [vmem:[%s151 + $0x280] sm:%s143] %v312
                %v314 = vld [vmem:[%s150 + $0x488] sm:%s143]
                %315 = vst [vmem:[%s151 + $0x288] sm:%s143] %v314
                %v316 = vld [vmem:[%s150 + $0x490] sm:%s143]
                %317 = vst [vmem:[%s151 + $0x290] sm:%s143] %v316
                %v318 = vld [vmem:[%s150 + $0x498] sm:%s143]
                %319 = vst [vmem:[%s151 + $0x298] sm:%s143] %v318
                %v320 = vld [vmem:[%s150 + $0x4a0] sm:%s143]
                %321 = vst [vmem:[%s151 + $0x2a0] sm:%s143] %v320
                %v322 = vld [vmem:[%s150 + $0x4a8] sm:%s143]
                %323 = vst [vmem:[%s151 + $0x2a8] sm:%s143] %v322
                %v324 = vld [vmem:[%s150 + $0x4b0] sm:%s143]
                %325 = vst [vmem:[%s151 + $0x2b0] sm:%s143] %v324
                %v326 = vld [vmem:[%s150 + $0x4b8] sm:%s143]
                %327 = vst [vmem:[%s151 + $0x2b8] sm:%s143] %v326
                %v328 = vld [vmem:[%s150 + $0x4c0] sm:%s143]
                %329 = vst [vmem:[%s151 + $0x2c0] sm:%s143] %v328
                %v330 = vld [vmem:[%s150 + $0x4c8] sm:%s143]
                %331 = vst [vmem:[%s151 + $0x2c8] sm:%s143] %v330
                %v332 = vld [vmem:[%s150 + $0x4d0] sm:%s143]
                %333 = vst [vmem:[%s151 + $0x2d0] sm:%s143] %v332
                %v334 = vld [vmem:[%s150 + $0x4d8] sm:%s143]
                %335 = vst [vmem:[%s151 + $0x2d8] sm:%s143] %v334
                %v336 = vld [vmem:[%s150 + $0x4e0] sm:%s143]
                %337 = vst [vmem:[%s151 + $0x2e0] sm:%s143] %v336
                %v338 = vld [vmem:[%s150 + $0x4e8] sm:%s143]
                %339 = vst [vmem:[%s151 + $0x2e8] sm:%s143] %v338
                %v340 = vld [vmem:[%s150 + $0x4f0] sm:%s143]
                %341 = vst [vmem:[%s151 + $0x2f0] sm:%s143] %v340
                %v342 = vld [vmem:[%s150 + $0x4f8] sm:%s143]
                %343 = vst [vmem:[%s151 + $0x2f8] sm:%s143] %v342
                %v344 = vld [vmem:[%s150 + $0x600] sm:%s143]
                %345 = vst [vmem:[%s151 + $0x300] sm:%s143] %v344
                %v346 = vld [vmem:[%s150 + $0x608] sm:%s143]
                %347 = vst [vmem:[%s151 + $0x308] sm:%s143] %v346
                %v348 = vld [vmem:[%s150 + $0x610] sm:%s143]
                %349 = vst [vmem:[%s151 + $0x310] sm:%s143] %v348
                %v350 = vld [vmem:[%s150 + $0x618] sm:%s143]
                %351 = vst [vmem:[%s151 + $0x318] sm:%s143] %v350
                %v352 = vld [vmem:[%s150 + $0x620] sm:%s143]
                %353 = vst [vmem:[%s151 + $0x320] sm:%s143] %v352
                %v354 = vld [vmem:[%s150 + $0x628] sm:%s143]
                %355 = vst [vmem:[%s151 + $0x328] sm:%s143] %v354
                %v356 = vld [vmem:[%s150 + $0x630] sm:%s143]
                %357 = vst [vmem:[%s151 + $0x330] sm:%s143] %v356
                %v358 = vld [vmem:[%s150 + $0x638] sm:%s143]
                %359 = vst [vmem:[%s151 + $0x338] sm:%s143] %v358
                %v360 = vld [vmem:[%s150 + $0x640] sm:%s143]
                %361 = vst [vmem:[%s151 + $0x340] sm:%s143] %v360
                %v362 = vld [vmem:[%s150 + $0x648] sm:%s143]
                %363 = vst [vmem:[%s151 + $0x348] sm:%s143] %v362
                %v364 = vld [vmem:[%s150 + $0x650] sm:%s143]
                %365 = vst [vmem:[%s151 + $0x350] sm:%s143] %v364
                %v366 = vld [vmem:[%s150 + $0x658] sm:%s143]
                %367 = vst [vmem:[%s151 + $0x358] sm:%s143] %v366
                %v368 = vld [vmem:[%s150 + $0x660] sm:%s143]
                %369 = vst [vmem:[%s151 + $0x360] sm:%s143] %v368
                %v370 = vld [vmem:[%s150 + $0x668] sm:%s143]
                %371 = vst [vmem:[%s151 + $0x368] sm:%s143] %v370
                %v372 = vld [vmem:[%s150 + $0x670] sm:%s143]
                %373 = vst [vmem:[%s151 + $0x370] sm:%s143] %v372
                %v374 = vld [vmem:[%s150 + $0x678] sm:%s143]
                %375 = vst [vmem:[%s151 + $0x378] sm:%s143] %v374
                %v376 = vld [vmem:[%s150 + $0x680] sm:%s143]
                %377 = vst [vmem:[%s151 + $0x380] sm:%s143] %v376
                %v378 = vld [vmem:[%s150 + $0x688] sm:%s143]
                %379 = vst [vmem:[%s151 + $0x388] sm:%s143] %v378
                %v380 = vld [vmem:[%s150 + $0x690] sm:%s143]
                %381 = vst [vmem:[%s151 + $0x390] sm:%s143] %v380
                %v382 = vld [vmem:[%s150 + $0x698] sm:%s143]
                %383 = vst [vmem:[%s151 + $0x398] sm:%s143] %v382
                %v384 = vld [vmem:[%s150 + $0x6a0] sm:%s143]
                %385 = vst [vmem:[%s151 + $0x3a0] sm:%s143] %v384
                %v386 = vld [vmem:[%s150 + $0x6a8] sm:%s143]
                %387 = vst [vmem:[%s151 + $0x3a8] sm:%s143] %v386
                %v388 = vld [vmem:[%s150 + $0x6b0] sm:%s143]
                %389 = vst [vmem:[%s151 + $0x3b0] sm:%s143] %v388
                %v390 = vld [vmem:[%s150 + $0x6b8] sm:%s143]
                %391 = vst [vmem:[%s151 + $0x3b8] sm:%s143] %v390
                %v392 = vld [vmem:[%s150 + $0x6c0] sm:%s143]
                %393 = vst [vmem:[%s151 + $0x3c0] sm:%s143] %v392
                %v394 = vld [vmem:[%s150 + $0x6c8] sm:%s143]
                %395 = vst [vmem:[%s151 + $0x3c8] sm:%s143] %v394
                %v396 = vld [vmem:[%s150 + $0x6d0] sm:%s143]
                %397 = vst [vmem:[%s151 + $0x3d0] sm:%s143] %v396
                %v398 = vld [vmem:[%s150 + $0x6d8] sm:%s143]
                %399 = vst [vmem:[%s151 + $0x3d8] sm:%s143] %v398
                %v400 = vld [vmem:[%s150 + $0x6e0] sm:%s143]
                %401 = vst [vmem:[%s151 + $0x3e0] sm:%s143] %v400
                %v402 = vld [vmem:[%s150 + $0x6e8] sm:%s143]
                %403 = vst [vmem:[%s151 + $0x3e8] sm:%s143] %v402
                %v404 = vld [vmem:[%s150 + $0x6f0] sm:%s143]
                %405 = vst [vmem:[%s151 + $0x3f0] sm:%s143] %v404
                %v406 = vld [vmem:[%s150 + $0x6f8] sm:%s143]
                %407 = vst [vmem:[%s151 + $0x3f8] sm:%s143] %v406
                %v408 = vld [vmem:[%s150 + $0x800] sm:%s143]
                %409 = vst [vmem:[%s151 + $0x400] sm:%s143] %v408
                %v410 = vld [vmem:[%s150 + $0x808] sm:%s143]
                %411 = vst [vmem:[%s151 + $0x408] sm:%s143] %v410
                %v412 = vld [vmem:[%s150 + $0x810] sm:%s143]
                %413 = vst [vmem:[%s151 + $0x410] sm:%s143] %v412
                %v414 = vld [vmem:[%s150 + $0x818] sm:%s143]
                %415 = vst [vmem:[%s151 + $0x418] sm:%s143] %v414
                %v416 = vld [vmem:[%s150 + $0x820] sm:%s143]
                %417 = vst [vmem:[%s151 + $0x420] sm:%s143] %v416
                %v418 = vld [vmem:[%s150 + $0x828] sm:%s143]
                %419 = vst [vmem:[%s151 + $0x428] sm:%s143] %v418
                %v420 = vld [vmem:[%s150 + $0x830] sm:%s143]
                %421 = vst [vmem:[%s151 + $0x430] sm:%s143] %v420
                %v422 = vld [vmem:[%s150 + $0x838] sm:%s143]
                %423 = vst [vmem:[%s151 + $0x438] sm:%s143] %v422
                %v424 = vld [vmem:[%s150 + $0x840] sm:%s143]
                %425 = vst [vmem:[%s151 + $0x440] sm:%s143] %v424
                %v426 = vld [vmem:[%s150 + $0x848] sm:%s143]
                %427 = vst [vmem:[%s151 + $0x448] sm:%s143] %v426
                %v428 = vld [vmem:[%s150 + $0x850] sm:%s143]
                %429 = vst [vmem:[%s151 + $0x450] sm:%s143] %v428
                %v430 = vld [vmem:[%s150 + $0x858] sm:%s143]
                %431 = vst [vmem:[%s151 + $0x458] sm:%s143] %v430
                %v432 = vld [vmem:[%s150 + $0x860] sm:%s143]
                %433 = vst [vmem:[%s151 + $0x460] sm:%s143] %v432
                %v434 = vld [vmem:[%s150 + $0x868] sm:%s143]
                %435 = vst [vmem:[%s151 + $0x468] sm:%s143] %v434
                %v436 = vld [vmem:[%s150 + $0x870] sm:%s143]
                %437 = vst [vmem:[%s151 + $0x470] sm:%s143] %v436
                %v438 = vld [vmem:[%s150 + $0x878] sm:%s143]
                %439 = vst [vmem:[%s151 + $0x478] sm:%s143] %v438
                %v440 = vld [vmem:[%s150 + $0x880] sm:%s143]
                %441 = vst [vmem:[%s151 + $0x480] sm:%s143] %v440
                %v442 = vld [vmem:[%s150 + $0x888] sm:%s143]
                %443 = vst [vmem:[%s151 + $0x488] sm:%s143] %v442
                %v444 = vld [vmem:[%s150 + $0x890] sm:%s143]
                %445 = vst [vmem:[%s151 + $0x490] sm:%s143] %v444
                %v446 = vld [vmem:[%s150 + $0x898] sm:%s143]
                %447 = vst [vmem:[%s151 + $0x498] sm:%s143] %v446
                %v448 = vld [vmem:[%s150 + $0x8a0] sm:%s143]
                %449 = vst [vmem:[%s151 + $0x4a0] sm:%s143] %v448
                %v450 = vld [vmem:[%s150 + $0x8a8] sm:%s143]
                %451 = vst [vmem:[%s151 + $0x4a8] sm:%s143] %v450
                %v452 = vld [vmem:[%s150 + $0x8b0] sm:%s143]
                %453 = vst [vmem:[%s151 + $0x4b0] sm:%s143] %v452
                %v454 = vld [vmem:[%s150 + $0x8b8] sm:%s143]
                %455 = vst [vmem:[%s151 + $0x4b8] sm:%s143] %v454
                %v456 = vld [vmem:[%s150 + $0x8c0] sm:%s143]
                %457 = vst [vmem:[%s151 + $0x4c0] sm:%s143] %v456
                %v458 = vld [vmem:[%s150 + $0x8c8] sm:%s143]
                %459 = vst [vmem:[%s151 + $0x4c8] sm:%s143] %v458
                %v460 = vld [vmem:[%s150 + $0x8d0] sm:%s143]
                %461 = vst [vmem:[%s151 + $0x4d0] sm:%s143] %v460
                %v462 = vld [vmem:[%s150 + $0x8d8] sm:%s143]
                %463 = vst [vmem:[%s151 + $0x4d8] sm:%s143] %v462
                %v464 = vld [vmem:[%s150 + $0x8e0] sm:%s143]
                %465 = vst [vmem:[%s151 + $0x4e0] sm:%s143] %v464
                %v466 = vld [vmem:[%s150 + $0x8e8] sm:%s143]
                %467 = vst [vmem:[%s151 + $0x4e8] sm:%s143] %v466
                %v468 = vld [vmem:[%s150 + $0x8f0] sm:%s143]
                %469 = vst [vmem:[%s151 + $0x4f0] sm:%s143] %v468
                %v470 = vld [vmem:[%s150 + $0x8f8] sm:%s143]
                %471 = vst [vmem:[%s151 + $0x4f8] sm:%s143] %v470
                %v472 = vld [vmem:[%s150 + $0xa00] sm:%s143]
                %473 = vst [vmem:[%s151 + $0x500] sm:%s143] %v472
                %v474 = vld [vmem:[%s150 + $0xa08] sm:%s143]
                %475 = vst [vmem:[%s151 + $0x508] sm:%s143] %v474
                %v476 = vld [vmem:[%s150 + $0xa10] sm:%s143]
                %477 = vst [vmem:[%s151 + $0x510] sm:%s143] %v476
                %v478 = vld [vmem:[%s150 + $0xa18] sm:%s143]
                %479 = vst [vmem:[%s151 + $0x518] sm:%s143] %v478
                %v480 = vld [vmem:[%s150 + $0xa20] sm:%s143]
                %481 = vst [vmem:[%s151 + $0x520] sm:%s143] %v480
                %v482 = vld [vmem:[%s150 + $0xa28] sm:%s143]
                %483 = vst [vmem:[%s151 + $0x528] sm:%s143] %v482
                %v484 = vld [vmem:[%s150 + $0xa30] sm:%s143]
                %485 = vst [vmem:[%s151 + $0x530] sm:%s143] %v484
                %v486 = vld [vmem:[%s150 + $0xa38] sm:%s143]
                %487 = vst [vmem:[%s151 + $0x538] sm:%s143] %v486
                %v488 = vld [vmem:[%s150 + $0xa40] sm:%s143]
                %489 = vst [vmem:[%s151 + $0x540] sm:%s143] %v488
                %v490 = vld [vmem:[%s150 + $0xa48] sm:%s143]
                %491 = vst [vmem:[%s151 + $0x548] sm:%s143] %v490
                %v492 = vld [vmem:[%s150 + $0xa50] sm:%s143]
                %493 = vst [vmem:[%s151 + $0x550] sm:%s143] %v492
                %v494 = vld [vmem:[%s150 + $0xa58] sm:%s143]
                %495 = vst [vmem:[%s151 + $0x558] sm:%s143] %v494
                %v496 = vld [vmem:[%s150 + $0xa60] sm:%s143]
                %497 = vst [vmem:[%s151 + $0x560] sm:%s143] %v496
                %v498 = vld [vmem:[%s150 + $0xa68] sm:%s143]
                %499 = vst [vmem:[%s151 + $0x568] sm:%s143] %v498
                %v500 = vld [vmem:[%s150 + $0xa70] sm:%s143]
                %501 = vst [vmem:[%s151 + $0x570] sm:%s143] %v500
                %v502 = vld [vmem:[%s150 + $0xa78] sm:%s143]
                %503 = vst [vmem:[%s151 + $0x578] sm:%s143] %v502
                %v504 = vld [vmem:[%s150 + $0xa80] sm:%s143]
                %505 = vst [vmem:[%s151 + $0x580] sm:%s143] %v504
                %v506 = vld [vmem:[%s150 + $0xa88] sm:%s143]
                %507 = vst [vmem:[%s151 + $0x588] sm:%s143] %v506
                %v508 = vld [vmem:[%s150 + $0xa90] sm:%s143]
                %509 = vst [vmem:[%s151 + $0x590] sm:%s143] %v508
                %v510 = vld [vmem:[%s150 + $0xa98] sm:%s143]
                %511 = vst [vmem:[%s151 + $0x598] sm:%s143] %v510
                %v512 = vld [vmem:[%s150 + $0xaa0] sm:%s143]
                %513 = vst [vmem:[%s151 + $0x5a0] sm:%s143] %v512
                %v514 = vld [vmem:[%s150 + $0xaa8] sm:%s143]
                %515 = vst [vmem:[%s151 + $0x5a8] sm:%s143] %v514
                %v516 = vld [vmem:[%s150 + $0xab0] sm:%s143]
                %517 = vst [vmem:[%s151 + $0x5b0] sm:%s143] %v516
                %v518 = vld [vmem:[%s150 + $0xab8] sm:%s143]
                %519 = vst [vmem:[%s151 + $0x5b8] sm:%s143] %v518
                %v520 = vld [vmem:[%s150 + $0xac0] sm:%s143]
                %521 = vst [vmem:[%s151 + $0x5c0] sm:%s143] %v520
                %v522 = vld [vmem:[%s150 + $0xac8] sm:%s143]
                %523 = vst [vmem:[%s151 + $0x5c8] sm:%s143] %v522
                %v524 = vld [vmem:[%s150 + $0xad0] sm:%s143]
                %525 = vst [vmem:[%s151 + $0x5d0] sm:%s143] %v524
                %v526 = vld [vmem:[%s150 + $0xad8] sm:%s143]
                %527 = vst [vmem:[%s151 + $0x5d8] sm:%s143] %v526
                %v528 = vld [vmem:[%s150 + $0xae0] sm:%s143]
                %529 = vst [vmem:[%s151 + $0x5e0] sm:%s143] %v528
                %v530 = vld [vmem:[%s150 + $0xae8] sm:%s143]
                %531 = vst [vmem:[%s151 + $0x5e8] sm:%s143] %v530
                %v532 = vld [vmem:[%s150 + $0xaf0] sm:%s143]
                %533 = vst [vmem:[%s151 + $0x5f0] sm:%s143] %v532
                %v534 = vld [vmem:[%s150 + $0xaf8] sm:%s143]
                %535 = vst [vmem:[%s151 + $0x5f8] sm:%s143] %v534
                %v536 = vld [vmem:[%s150 + $0xc00] sm:%s143]
                %537 = vst [vmem:[%s151 + $0x600] sm:%s143] %v536
                %v538 = vld [vmem:[%s150 + $0xc08] sm:%s143]
                %539 = vst [vmem:[%s151 + $0x608] sm:%s143] %v538
                %v540 = vld [vmem:[%s150 + $0xc10] sm:%s143]
                %541 = vst [vmem:[%s151 + $0x610] sm:%s143] %v540
                %v542 = vld [vmem:[%s150 + $0xc18] sm:%s143]
                %543 = vst [vmem:[%s151 + $0x618] sm:%s143] %v542
                %v544 = vld [vmem:[%s150 + $0xc20] sm:%s143]
                %545 = vst [vmem:[%s151 + $0x620] sm:%s143] %v544
                %v546 = vld [vmem:[%s150 + $0xc28] sm:%s143]
                %547 = vst [vmem:[%s151 + $0x628] sm:%s143] %v546
                %v548 = vld [vmem:[%s150 + $0xc30] sm:%s143]
                %549 = vst [vmem:[%s151 + $0x630] sm:%s143] %v548
                %v550 = vld [vmem:[%s150 + $0xc38] sm:%s143]
                %551 = vst [vmem:[%s151 + $0x638] sm:%s143] %v550
                %v552 = vld [vmem:[%s150 + $0xc40] sm:%s143]
                %553 = vst [vmem:[%s151 + $0x640] sm:%s143] %v552
                %v554 = vld [vmem:[%s150 + $0xc48] sm:%s143]
                %555 = vst [vmem:[%s151 + $0x648] sm:%s143] %v554
                %v556 = vld [vmem:[%s150 + $0xc50] sm:%s143]
                %557 = vst [vmem:[%s151 + $0x650] sm:%s143] %v556
                %v558 = vld [vmem:[%s150 + $0xc58] sm:%s143]
                %559 = vst [vmem:[%s151 + $0x658] sm:%s143] %v558
                %v560 = vld [vmem:[%s150 + $0xc60] sm:%s143]
                %561 = vst [vmem:[%s151 + $0x660] sm:%s143] %v560
                %v562 = vld [vmem:[%s150 + $0xc68] sm:%s143]
                %563 = vst [vmem:[%s151 + $0x668] sm:%s143] %v562
                %v564 = vld [vmem:[%s150 + $0xc70] sm:%s143]
                %565 = vst [vmem:[%s151 + $0x670] sm:%s143] %v564
                %v566 = vld [vmem:[%s150 + $0xc78] sm:%s143]
                %567 = vst [vmem:[%s151 + $0x678] sm:%s143] %v566
                %v568 = vld [vmem:[%s150 + $0xc80] sm:%s143]
                %569 = vst [vmem:[%s151 + $0x680] sm:%s143] %v568
                %v570 = vld [vmem:[%s150 + $0xc88] sm:%s143]
                %571 = vst [vmem:[%s151 + $0x688] sm:%s143] %v570
                %v572 = vld [vmem:[%s150 + $0xc90] sm:%s143]
                %573 = vst [vmem:[%s151 + $0x690] sm:%s143] %v572
                %v574 = vld [vmem:[%s150 + $0xc98] sm:%s143]
                %575 = vst [vmem:[%s151 + $0x698] sm:%s143] %v574
                %v576 = vld [vmem:[%s150 + $0xca0] sm:%s143]
                %577 = vst [vmem:[%s151 + $0x6a0] sm:%s143] %v576
                %v578 = vld [vmem:[%s150 + $0xca8] sm:%s143]
                %579 = vst [vmem:[%s151 + $0x6a8] sm:%s143] %v578
                %v580 = vld [vmem:[%s150 + $0xcb0] sm:%s143]
                %581 = vst [vmem:[%s151 + $0x6b0] sm:%s143] %v580
                %v582 = vld [vmem:[%s150 + $0xcb8] sm:%s143]
                %583 = vst [vmem:[%s151 + $0x6b8] sm:%s143] %v582
                %v584 = vld [vmem:[%s150 + $0xcc0] sm:%s143]
                %585 = vst [vmem:[%s151 + $0x6c0] sm:%s143] %v584
                %v586 = vld [vmem:[%s150 + $0xcc8] sm:%s143]
                %587 = vst [vmem:[%s151 + $0x6c8] sm:%s143] %v586
                %v588 = vld [vmem:[%s150 + $0xcd0] sm:%s143]
                %589 = vst [vmem:[%s151 + $0x6d0] sm:%s143] %v588
                %v590 = vld [vmem:[%s150 + $0xcd8] sm:%s143]
                %591 = vst [vmem:[%s151 + $0x6d8] sm:%s143] %v590
                %v592 = vld [vmem:[%s150 + $0xce0] sm:%s143]
                %593 = vst [vmem:[%s151 + $0x6e0] sm:%s143] %v592
                %v594 = vld [vmem:[%s150 + $0xce8] sm:%s143]
                %595 = vst [vmem:[%s151 + $0x6e8] sm:%s143] %v594
                %v596 = vld [vmem:[%s150 + $0xcf0] sm:%s143]
                %597 = vst [vmem:[%s151 + $0x6f0] sm:%s143] %v596
                %v598 = vld [vmem:[%s150 + $0xcf8] sm:%s143]
                %599 = vst [vmem:[%s151 + $0x6f8] sm:%s143] %v598
                %v600 = vld [vmem:[%s150 + $0xe00] sm:%s143]
                %601 = vst [vmem:[%s151 + $0x700] sm:%s143] %v600
                %v602 = vld [vmem:[%s150 + $0xe08] sm:%s143]
                %603 = vst [vmem:[%s151 + $0x708] sm:%s143] %v602
                %v604 = vld [vmem:[%s150 + $0xe10] sm:%s143]
                %605 = vst [vmem:[%s151 + $0x710] sm:%s143] %v604
                %v606 = vld [vmem:[%s150 + $0xe18] sm:%s143]
                %607 = vst [vmem:[%s151 + $0x718] sm:%s143] %v606
                %v608 = vld [vmem:[%s150 + $0xe20] sm:%s143]
                %609 = vst [vmem:[%s151 + $0x720] sm:%s143] %v608
                %v610 = vld [vmem:[%s150 + $0xe28] sm:%s143]
                %611 = vst [vmem:[%s151 + $0x728] sm:%s143] %v610
                %v612 = vld [vmem:[%s150 + $0xe30] sm:%s143]
                %613 = vst [vmem:[%s151 + $0x730] sm:%s143] %v612
                %v614 = vld [vmem:[%s150 + $0xe38] sm:%s143]
                %615 = vst [vmem:[%s151 + $0x738] sm:%s143] %v614
                %v616 = vld [vmem:[%s150 + $0xe40] sm:%s143]
                %617 = vst [vmem:[%s151 + $0x740] sm:%s143] %v616
                %v618 = vld [vmem:[%s150 + $0xe48] sm:%s143]
                %619 = vst [vmem:[%s151 + $0x748] sm:%s143] %v618
                %v620 = vld [vmem:[%s150 + $0xe50] sm:%s143]
                %621 = vst [vmem:[%s151 + $0x750] sm:%s143] %v620
                %v622 = vld [vmem:[%s150 + $0xe58] sm:%s143]
                %623 = vst [vmem:[%s151 + $0x758] sm:%s143] %v622
                %v624 = vld [vmem:[%s150 + $0xe60] sm:%s143]
                %625 = vst [vmem:[%s151 + $0x760] sm:%s143] %v624
                %v626 = vld [vmem:[%s150 + $0xe68] sm:%s143]
                %627 = vst [vmem:[%s151 + $0x768] sm:%s143] %v626
                %v628 = vld [vmem:[%s150 + $0xe70] sm:%s143]
                %629 = vst [vmem:[%s151 + $0x770] sm:%s143] %v628
                %v630 = vld [vmem:[%s150 + $0xe78] sm:%s143]
                %631 = vst [vmem:[%s151 + $0x778] sm:%s143] %v630
                %v632 = vld [vmem:[%s150 + $0xe80] sm:%s143]
                %633 = vst [vmem:[%s151 + $0x780] sm:%s143] %v632
                %v634 = vld [vmem:[%s150 + $0xe88] sm:%s143]
                %635 = vst [vmem:[%s151 + $0x788] sm:%s143] %v634
                %v636 = vld [vmem:[%s150 + $0xe90] sm:%s143]
                %637 = vst [vmem:[%s151 + $0x790] sm:%s143] %v636
                %v638 = vld [vmem:[%s150 + $0xe98] sm:%s143]
                %639 = vst [vmem:[%s151 + $0x798] sm:%s143] %v638
                %v640 = vld [vmem:[%s150 + $0xea0] sm:%s143]
                %641 = vst [vmem:[%s151 + $0x7a0] sm:%s143] %v640
                %v642 = vld [vmem:[%s150 + $0xea8] sm:%s143]
                %643 = vst [vmem:[%s151 + $0x7a8] sm:%s143] %v642
                %v644 = vld [vmem:[%s150 + $0xeb0] sm:%s143]
                %645 = vst [vmem:[%s151 + $0x7b0] sm:%s143] %v644
                %v646 = vld [vmem:[%s150 + $0xeb8] sm:%s143]
                %647 = vst [vmem:[%s151 + $0x7b8] sm:%s143] %v646
                %v648 = vld [vmem:[%s150 + $0xec0] sm:%s143]
                %649 = vst [vmem:[%s151 + $0x7c0] sm:%s143] %v648
                %v650 = vld [vmem:[%s150 + $0xec8] sm:%s143]
                %651 = vst [vmem:[%s151 + $0x7c8] sm:%s143] %v650
                %v652 = vld [vmem:[%s150 + $0xed0] sm:%s143]
                %653 = vst [vmem:[%s151 + $0x7d0] sm:%s143] %v652
                %v654 = vld [vmem:[%s150 + $0xed8] sm:%s143]
                %655 = vst [vmem:[%s151 + $0x7d8] sm:%s143] %v654
                %v656 = vld [vmem:[%s150 + $0xee0] sm:%s143]
                %657 = vst [vmem:[%s151 + $0x7e0] sm:%s143] %v656
                %v658 = vld [vmem:[%s150 + $0xee8] sm:%s143]
                %659 = vst [vmem:[%s151 + $0x7e8] sm:%s143] %v658
                %v660 = vld [vmem:[%s150 + $0xef0] sm:%s143]
                %661 = vst [vmem:[%s151 + $0x7f0] sm:%s143] %v660
                %v662 = vld [vmem:[%s150 + $0xef8] sm:%s143]
                %663 = vst [vmem:[%s151 + $0x7f8] sm:%s143] %v662
                %v664 = vld [vmem:[%s150 + $0x1000] sm:%s143]
                %665 = vst [vmem:[%s151 + $0x800] sm:%s143] %v664
                %v666 = vld [vmem:[%s150 + $0x1008] sm:%s143]
                %667 = vst [vmem:[%s151 + $0x808] sm:%s143] %v666
                %v668 = vld [vmem:[%s150 + $0x1010] sm:%s143]
                %669 = vst [vmem:[%s151 + $0x810] sm:%s143] %v668
                %v670 = vld [vmem:[%s150 + $0x1018] sm:%s143]
                %671 = vst [vmem:[%s151 + $0x818] sm:%s143] %v670
                %v672 = vld [vmem:[%s150 + $0x1020] sm:%s143]
                %673 = vst [vmem:[%s151 + $0x820] sm:%s143] %v672
                %v674 = vld [vmem:[%s150 + $0x1028] sm:%s143]
                %675 = vst [vmem:[%s151 + $0x828] sm:%s143] %v674
                %v676 = vld [vmem:[%s150 + $0x1030] sm:%s143]
                %677 = vst [vmem:[%s151 + $0x830] sm:%s143] %v676
                %v678 = vld [vmem:[%s150 + $0x1038] sm:%s143]
                %679 = vst [vmem:[%s151 + $0x838] sm:%s143] %v678
                %v680 = vld [vmem:[%s150 + $0x1040] sm:%s143]
                %681 = vst [vmem:[%s151 + $0x840] sm:%s143] %v680
                %v682 = vld [vmem:[%s150 + $0x1048] sm:%s143]
                %683 = vst [vmem:[%s151 + $0x848] sm:%s143] %v682
                %v684 = vld [vmem:[%s150 + $0x1050] sm:%s143]
                %685 = vst [vmem:[%s151 + $0x850] sm:%s143] %v684
                %v686 = vld [vmem:[%s150 + $0x1058] sm:%s143]
                %687 = vst [vmem:[%s151 + $0x858] sm:%s143] %v686
                %v688 = vld [vmem:[%s150 + $0x1060] sm:%s143]
                %689 = vst [vmem:[%s151 + $0x860] sm:%s143] %v688
                %v690 = vld [vmem:[%s150 + $0x1068] sm:%s143]
                %691 = vst [vmem:[%s151 + $0x868] sm:%s143] %v690
                %v692 = vld [vmem:[%s150 + $0x1070] sm:%s143]
                %693 = vst [vmem:[%s151 + $0x870] sm:%s143] %v692
                %v694 = vld [vmem:[%s150 + $0x1078] sm:%s143]
                %695 = vst [vmem:[%s151 + $0x878] sm:%s143] %v694
                %v696 = vld [vmem:[%s150 + $0x1080] sm:%s143]
                %697 = vst [vmem:[%s151 + $0x880] sm:%s143] %v696
                %v698 = vld [vmem:[%s150 + $0x1088] sm:%s143]
                %699 = vst [vmem:[%s151 + $0x888] sm:%s143] %v698
                %v700 = vld [vmem:[%s150 + $0x1090] sm:%s143]
                %701 = vst [vmem:[%s151 + $0x890] sm:%s143] %v700
                %v702 = vld [vmem:[%s150 + $0x1098] sm:%s143]
                %703 = vst [vmem:[%s151 + $0x898] sm:%s143] %v702
                %v704 = vld [vmem:[%s150 + $0x10a0] sm:%s143]
                %705 = vst [vmem:[%s151 + $0x8a0] sm:%s143] %v704
                %v706 = vld [vmem:[%s150 + $0x10a8] sm:%s143]
                %707 = vst [vmem:[%s151 + $0x8a8] sm:%s143] %v706
                %v708 = vld [vmem:[%s150 + $0x10b0] sm:%s143]
                %709 = vst [vmem:[%s151 + $0x8b0] sm:%s143] %v708
                %v710 = vld [vmem:[%s150 + $0x10b8] sm:%s143]
                %711 = vst [vmem:[%s151 + $0x8b8] sm:%s143] %v710
                %v712 = vld [vmem:[%s150 + $0x10c0] sm:%s143]
                %713 = vst [vmem:[%s151 + $0x8c0] sm:%s143] %v712
                %v714 = vld [vmem:[%s150 + $0x10c8] sm:%s143]
                %715 = vst [vmem:[%s151 + $0x8c8] sm:%s143] %v714
                %v716 = vld [vmem:[%s150 + $0x10d0] sm:%s143]
                %717 = vst [vmem:[%s151 + $0x8d0] sm:%s143] %v716
                %v718 = vld [vmem:[%s150 + $0x10d8] sm:%s143]
                %719 = vst [vmem:[%s151 + $0x8d8] sm:%s143] %v718
                %v720 = vld [vmem:[%s150 + $0x10e0] sm:%s143]
                %721 = vst [vmem:[%s151 + $0x8e0] sm:%s143] %v720
                %v722 = vld [vmem:[%s150 + $0x10e8] sm:%s143]
                %723 = vst [vmem:[%s151 + $0x8e8] sm:%s143] %v722
                %v724 = vld [vmem:[%s150 + $0x10f0] sm:%s143]
                %725 = vst [vmem:[%s151 + $0x8f0] sm:%s143] %v724
                %v726 = vld [vmem:[%s150 + $0x10f8] sm:%s143]
                %727 = vst [vmem:[%s151 + $0x8f8] sm:%s143] %v726
              $region41: #{bottleneck_forward.7} parent=35 // loop_footer
                %s149 = sadd.s32 1, %s145
              $region42: #{bottleneck_forward.7} parent=35 // loop_footer_branch
                %144 = sbr.rel target = $region38
              $region43: #{bottleneck_forward.7} parent=35 // loop_exit
                _
            $region36: #{bottleneck_forward.7} parent=27 // pred_fallthru
              _
          $region28: #{bottleneck_forward.7} parent=23 // pred_fallthru
            _
          %1316 = vnop
        $region24: #{bottleneck_forward.7} parent=19 // pred_fallthru
          _
      $region20: #{bottleneck_forward.7} parent=5 // pred_fallthru
        _
      %p1317 = scmp.le.s32.totalorder 1, %s10
      %p1318 = scmp.lt.s32.totalorder %s10, 3
      %p1319 = pnand %p1317, %p1318
      %p1320 = pneg %p1319
      // Predicated region
      $region59: #{bottleneck_forward.7} parent=5 // pred_check
        _
      $region60: #{bottleneck_forward.7} parent=5 // pred_check_branch
        %1322 = sbr.rel (%p1319) target = $region62
      $region61: #{bottleneck_forward.7} parent=5 // pred_region
        %s1323 = ssub.s32 %s10, 1
        %s1324 = sand.u32 %s23, 1
        %s1325 = sand.u32 %s23, 1
        %s1326 = smul.addr %s1325, 2304
        %s1327 = scalar_lea.vmem [#allocation2], %s1326
        // Predicated region
        $region63: #{bottleneck_forward.7} parent=61 // pred_check
          %p1328 = pneg %p36
        $region64: #{bottleneck_forward.7} parent=61 // pred_check_branch
          %1330 = sbr.rel (%p1328) target = $region66
        $region65: #{bottleneck_forward.7} parent=61 // pred_region
          _
        $region66: #{bottleneck_forward.7} parent=61 // pred_fallthru
          _
        %s1331 = sand.u32 %s23, 1
        %s1332 = sand.u32 %s23, 1
        %s1333 = smul.addr %s1332, 2304
        %s1334 = scalar_lea.vmem [#allocation2], %s1333
        %p1335 = pneg %p36
        %p1336 = pneg %p33
        %p1337 = pneg %p57
        %p1338 = pneg %p54
        %p1339 = pneg %p83
        %p1340 = pneg %p80
        %s1341 = smul.u32 32, %s15
        %p1342 = scmp.lt.s32.totalorder %s1341, 63
        %s1343 = scalar_select %p1342, %s1341, 63
        %s1344 = smul.addr %s1343, 8
        %s1345 = scalar_lea.vmem %s2, %s1344
        %p1346 = pneg %p104
        %p1347 = pneg %p101
        %s1348 = smul.u32 32, %s15
        %s1349 = smul.u32 32, %s15
        %p1350 = scmp.lt.s32.totalorder %s1349, 63
        %s1351 = scalar_select %p1350, %s1349, 63
        %s1352 = smul.addr %s1351, 8
        %s1353 = scalar_lea.vmem %s2, %s1352
        %s1354 = smul.u32 32, %s15
        %p1355 = scmp.eq.s32.totalorder %s15, 0
        // Predicated region
        $region67: #{bottleneck_forward.7} parent=61 // pred_check
          %p1356 = pneg %p1355
        $region68: #{bottleneck_forward.7} parent=61 // pred_check_branch
          %1358 = sbr.rel (%p1356) target = $region70
        $region69: #{bottleneck_forward.7} parent=61 // pred_region
          %1359 = vst [vmem:[%s3] sm:$0xff] 0.0
        $region70: #{bottleneck_forward.7} parent=61 // pred_fallthru
          _
        %v1360 = vld [vmem:[%s1] sm:$0x1]
        %v1361 = vld [vmem:[%s1 + $0x1] sm:$0x1]
        %v1362 = vld [vmem:[%s1 + $0x2] sm:$0x1]
        %v1363 = vld [vmem:[%s1 + $0x3] sm:$0x1]
        %v1364 = vld [vmem:[%s1 + $0x4] sm:$0x1]
        %v1365 = vld [vmem:[%s1 + $0x5] sm:$0x1]
        %v1366 = vld [vmem:[%s1 + $0x6] sm:$0x1]
        %v1367 = vld [vmem:[%s1 + $0x7] sm:$0x1]
        %v1368 = vld [vmem:[%s1 + $0x8] sm:$0x1]
        %v1369 = vld [vmem:[%s1327] sm:$0xff]
        %v1370 = vld [vmem:[%s1327 + $0x8] sm:$0xff]
        %v1371 = vld [vmem:[%s1327 + $0x10] sm:$0xff]
        %v1372 = vld [vmem:[%s1327 + $0x18] sm:$0xff]
        %v1373 = vld [vmem:[%s1327 + $0x20] sm:$0xff]
        %v1374 = vld [vmem:[%s1327 + $0x28] sm:$0xff]
        %v1375 = vld [vmem:[%s1327 + $0x30] sm:$0xff]
        %v1376 = vld [vmem:[%s1327 + $0x38] sm:$0xff]
        %v1377 = vld [vmem:[%s1327 + $0x40] sm:$0xff]
        %v1378 = vld [vmem:[%s1327 + $0x48] sm:$0xff]
        %v1379 = vld [vmem:[%s1327 + $0x50] sm:$0xff]
        %v1380 = vld [vmem:[%s1327 + $0x58] sm:$0xff]
        %v1381 = vld [vmem:[%s1327 + $0x60] sm:$0xff]
        %v1382 = vld [vmem:[%s1327 + $0x68] sm:$0xff]
        %v1383 = vld [vmem:[%s1327 + $0x70] sm:$0xff]
        %v1384 = vld [vmem:[%s1327 + $0x78] sm:$0xff]
        %v1385 = vld [vmem:[%s1327 + $0x80] sm:$0xff]
        %v1386 = vld [vmem:[%s1327 + $0x88] sm:$0xff]
        %v1387 = vld [vmem:[%s1327 + $0x90] sm:$0xff]
        %v1388 = vld [vmem:[%s1327 + $0x98] sm:$0xff]
        %v1389 = vld [vmem:[%s1327 + $0xa0] sm:$0xff]
        %v1390 = vld [vmem:[%s1327 + $0xa8] sm:$0xff]
        %v1391 = vld [vmem:[%s1327 + $0xb0] sm:$0xff]
        %v1392 = vld [vmem:[%s1327 + $0xb8] sm:$0xff]
        %v1393 = vld [vmem:[%s1327 + $0xc0] sm:$0xff]
        %v1394 = vld [vmem:[%s1327 + $0xc8] sm:$0xff]
        %v1395 = vld [vmem:[%s1327 + $0xd0] sm:$0xff]
        %v1396 = vld [vmem:[%s1327 + $0xd8] sm:$0xff]
        %v1397 = vld [vmem:[%s1327 + $0xe0] sm:$0xff]
        %v1398 = vld [vmem:[%s1327 + $0xe8] sm:$0xff]
        %v1399 = vld [vmem:[%s1327 + $0xf0] sm:$0xff]
        %v1400 = vld [vmem:[%s1327 + $0xf8] sm:$0xff]
        %v1402 = vlaneseq
        %v1403 = vshrl.u32 %v1402, 7
        %v1404 = vsub.s32 0, %v1403
        %v1405 = vrot.slane %v1360, %v1404
        %v1407 = vmul.f32 %v1369, %v1405
        %v1408 = vmul.f32 %v1370, %v1405
        %v1409 = vmul.f32 %v1371, %v1405
        %v1410 = vmul.f32 %v1372, %v1405
        %v1411 = vmul.f32 %v1373, %v1405
        %v1412 = vmul.f32 %v1374, %v1405
        %v1413 = vmul.f32 %v1375, %v1405
        %v1414 = vmul.f32 %v1376, %v1405
        %v1415 = vmul.f32 %v1377, %v1405
        %v1416 = vmul.f32 %v1378, %v1405
        %v1417 = vmul.f32 %v1379, %v1405
        %v1418 = vmul.f32 %v1380, %v1405
        %v1419 = vmul.f32 %v1381, %v1405
        %v1420 = vmul.f32 %v1382, %v1405
        %v1421 = vmul.f32 %v1383, %v1405
        %v1422 = vmul.f32 %v1384, %v1405
        %v1423 = vmul.f32 %v1385, %v1405
        %v1424 = vmul.f32 %v1386, %v1405
        %v1425 = vmul.f32 %v1387, %v1405
        %v1426 = vmul.f32 %v1388, %v1405
        %v1427 = vmul.f32 %v1389, %v1405
        %v1428 = vmul.f32 %v1390, %v1405
        %v1429 = vmul.f32 %v1391, %v1405
        %v1430 = vmul.f32 %v1392, %v1405
        %v1431 = vmul.f32 %v1393, %v1405
        %v1432 = vmul.f32 %v1394, %v1405
        %v1433 = vmul.f32 %v1395, %v1405
        %v1434 = vmul.f32 %v1396, %v1405
        %v1435 = vmul.f32 %v1397, %v1405
        %v1436 = vmul.f32 %v1398, %v1405
        %v1437 = vmul.f32 %v1399, %v1405
        %v1438 = vmul.f32 %v1400, %v1405
        %s1439 = scalar_lea.vmem %s1327, 256 [#allocation2]
        %v1440 = vld [vmem:[%s1439] sm:$0xff]
        %v1441 = vld [vmem:[%s1439 + $0x8] sm:$0xff]
        %v1442 = vld [vmem:[%s1439 + $0x10] sm:$0xff]
        %v1443 = vld [vmem:[%s1439 + $0x18] sm:$0xff]
        %v1444 = vld [vmem:[%s1439 + $0x20] sm:$0xff]
        %v1445 = vld [vmem:[%s1439 + $0x28] sm:$0xff]
        %v1446 = vld [vmem:[%s1439 + $0x30] sm:$0xff]
        %v1447 = vld [vmem:[%s1439 + $0x38] sm:$0xff]
        %v1448 = vld [vmem:[%s1439 + $0x40] sm:$0xff]
        %v1449 = vld [vmem:[%s1439 + $0x48] sm:$0xff]
        %v1450 = vld [vmem:[%s1439 + $0x50] sm:$0xff]
        %v1451 = vld [vmem:[%s1439 + $0x58] sm:$0xff]
        %v1452 = vld [vmem:[%s1439 + $0x60] sm:$0xff]
        %v1453 = vld [vmem:[%s1439 + $0x68] sm:$0xff]
        %v1454 = vld [vmem:[%s1439 + $0x70] sm:$0xff]
        %v1455 = vld [vmem:[%s1439 + $0x78] sm:$0xff]
        %v1456 = vld [vmem:[%s1439 + $0x80] sm:$0xff]
        %v1457 = vld [vmem:[%s1439 + $0x88] sm:$0xff]
        %v1458 = vld [vmem:[%s1439 + $0x90] sm:$0xff]
        %v1459 = vld [vmem:[%s1439 + $0x98] sm:$0xff]
        %v1460 = vld [vmem:[%s1439 + $0xa0] sm:$0xff]
        %v1461 = vld [vmem:[%s1439 + $0xa8] sm:$0xff]
        %v1462 = vld [vmem:[%s1439 + $0xb0] sm:$0xff]
        %v1463 = vld [vmem:[%s1439 + $0xb8] sm:$0xff]
        %v1464 = vld [vmem:[%s1439 + $0xc0] sm:$0xff]
        %v1465 = vld [vmem:[%s1439 + $0xc8] sm:$0xff]
        %v1466 = vld [vmem:[%s1439 + $0xd0] sm:$0xff]
        %v1467 = vld [vmem:[%s1439 + $0xd8] sm:$0xff]
        %v1468 = vld [vmem:[%s1439 + $0xe0] sm:$0xff]
        %v1469 = vld [vmem:[%s1439 + $0xe8] sm:$0xff]
        %v1470 = vld [vmem:[%s1439 + $0xf0] sm:$0xff]
        %v1471 = vld [vmem:[%s1439 + $0xf8] sm:$0xff]
        %v1473 = vlaneseq
        %v1474 = vshrl.u32 %v1473, 7
        %v1475 = vsub.s32 0, %v1474
        %v1476 = vrot.slane %v1361, %v1475
        %v1478 = vmul.f32 %v1440, %v1476
        %v1479 = vmul.f32 %v1441, %v1476
        %v1480 = vmul.f32 %v1442, %v1476
        %v1481 = vmul.f32 %v1443, %v1476
        %v1482 = vmul.f32 %v1444, %v1476
        %v1483 = vmul.f32 %v1445, %v1476
        %v1484 = vmul.f32 %v1446, %v1476
        %v1485 = vmul.f32 %v1447, %v1476
        %v1486 = vmul.f32 %v1448, %v1476
        %v1487 = vmul.f32 %v1449, %v1476
        %v1488 = vmul.f32 %v1450, %v1476
        %v1489 = vmul.f32 %v1451, %v1476
        %v1490 = vmul.f32 %v1452, %v1476
        %v1491 = vmul.f32 %v1453, %v1476
        %v1492 = vmul.f32 %v1454, %v1476
        %v1493 = vmul.f32 %v1455, %v1476
        %v1494 = vmul.f32 %v1456, %v1476
        %v1495 = vmul.f32 %v1457, %v1476
        %v1496 = vmul.f32 %v1458, %v1476
        %v1497 = vmul.f32 %v1459, %v1476
        %v1498 = vmul.f32 %v1460, %v1476
        %v1499 = vmul.f32 %v1461, %v1476
        %v1500 = vmul.f32 %v1462, %v1476
        %v1501 = vmul.f32 %v1463, %v1476
        %v1502 = vmul.f32 %v1464, %v1476
        %v1503 = vmul.f32 %v1465, %v1476
        %v1504 = vmul.f32 %v1466, %v1476
        %v1505 = vmul.f32 %v1467, %v1476
        %v1506 = vmul.f32 %v1468, %v1476
        %v1507 = vmul.f32 %v1469, %v1476
        %v1508 = vmul.f32 %v1470, %v1476
        %v1509 = vmul.f32 %v1471, %v1476
        %v1510 = vadd.f32 %v1407, %v1478
        %v1511 = vadd.f32 %v1408, %v1479
        %v1512 = vadd.f32 %v1409, %v1480
        %v1513 = vadd.f32 %v1410, %v1481
        %v1514 = vadd.f32 %v1411, %v1482
        %v1515 = vadd.f32 %v1412, %v1483
        %v1516 = vadd.f32 %v1413, %v1484
        %v1517 = vadd.f32 %v1414, %v1485
        %v1518 = vadd.f32 %v1415, %v1486
        %v1519 = vadd.f32 %v1416, %v1487
        %v1520 = vadd.f32 %v1417, %v1488
        %v1521 = vadd.f32 %v1418, %v1489
        %v1522 = vadd.f32 %v1419, %v1490
        %v1523 = vadd.f32 %v1420, %v1491
        %v1524 = vadd.f32 %v1421, %v1492
        %v1525 = vadd.f32 %v1422, %v1493
        %v1526 = vadd.f32 %v1423, %v1494
        %v1527 = vadd.f32 %v1424, %v1495
        %v1528 = vadd.f32 %v1425, %v1496
        %v1529 = vadd.f32 %v1426, %v1497
        %v1530 = vadd.f32 %v1427, %v1498
        %v1531 = vadd.f32 %v1428, %v1499
        %v1532 = vadd.f32 %v1429, %v1500
        %v1533 = vadd.f32 %v1430, %v1501
        %v1534 = vadd.f32 %v1431, %v1502
        %v1535 = vadd.f32 %v1432, %v1503
        %v1536 = vadd.f32 %v1433, %v1504
        %v1537 = vadd.f32 %v1434, %v1505
        %v1538 = vadd.f32 %v1435, %v1506
        %v1539 = vadd.f32 %v1436, %v1507
        %v1540 = vadd.f32 %v1437, %v1508
        %v1541 = vadd.f32 %v1438, %v1509
        %s1542 = scalar_lea.vmem %s1327, 512 [#allocation2]
        %v1543 = vld [vmem:[%s1542] sm:$0xff]
        %v1544 = vld [vmem:[%s1542 + $0x8] sm:$0xff]
        %v1545 = vld [vmem:[%s1542 + $0x10] sm:$0xff]
        %v1546 = vld [vmem:[%s1542 + $0x18] sm:$0xff]
        %v1547 = vld [vmem:[%s1542 + $0x20] sm:$0xff]
        %v1548 = vld [vmem:[%s1542 + $0x28] sm:$0xff]
        %v1549 = vld [vmem:[%s1542 + $0x30] sm:$0xff]
        %v1550 = vld [vmem:[%s1542 + $0x38] sm:$0xff]
        %v1551 = vld [vmem:[%s1542 + $0x40] sm:$0xff]
        %v1552 = vld [vmem:[%s1542 + $0x48] sm:$0xff]
        %v1553 = vld [vmem:[%s1542 + $0x50] sm:$0xff]
        %v1554 = vld [vmem:[%s1542 + $0x58] sm:$0xff]
        %v1555 = vld [vmem:[%s1542 + $0x60] sm:$0xff]
        %v1556 = vld [vmem:[%s1542 + $0x68] sm:$0xff]
        %v1557 = vld [vmem:[%s1542 + $0x70] sm:$0xff]
        %v1558 = vld [vmem:[%s1542 + $0x78] sm:$0xff]
        %v1559 = vld [vmem:[%s1542 + $0x80] sm:$0xff]
        %v1560 = vld [vmem:[%s1542 + $0x88] sm:$0xff]
        %v1561 = vld [vmem:[%s1542 + $0x90] sm:$0xff]
        %v1562 = vld [vmem:[%s1542 + $0x98] sm:$0xff]
        %v1563 = vld [vmem:[%s1542 + $0xa0] sm:$0xff]
        %v1564 = vld [vmem:[%s1542 + $0xa8] sm:$0xff]
        %v1565 = vld [vmem:[%s1542 + $0xb0] sm:$0xff]
        %v1566 = vld [vmem:[%s1542 + $0xb8] sm:$0xff]
        %v1567 = vld [vmem:[%s1542 + $0xc0] sm:$0xff]
        %v1568 = vld [vmem:[%s1542 + $0xc8] sm:$0xff]
        %v1569 = vld [vmem:[%s1542 + $0xd0] sm:$0xff]
        %v1570 = vld [vmem:[%s1542 + $0xd8] sm:$0xff]
        %v1571 = vld [vmem:[%s1542 + $0xe0] sm:$0xff]
        %v1572 = vld [vmem:[%s1542 + $0xe8] sm:$0xff]
        %v1573 = vld [vmem:[%s1542 + $0xf0] sm:$0xff]
        %v1574 = vld [vmem:[%s1542 + $0xf8] sm:$0xff]
        %v1576 = vlaneseq
        %v1577 = vshrl.u32 %v1576, 7
        %v1578 = vsub.s32 0, %v1577
        %v1579 = vrot.slane %v1362, %v1578
        %v1581 = vmul.f32 %v1543, %v1579
        %v1582 = vmul.f32 %v1544, %v1579
        %v1583 = vmul.f32 %v1545, %v1579
        %v1584 = vmul.f32 %v1546, %v1579
        %v1585 = vmul.f32 %v1547, %v1579
        %v1586 = vmul.f32 %v1548, %v1579
        %v1587 = vmul.f32 %v1549, %v1579
        %v1588 = vmul.f32 %v1550, %v1579
        %v1589 = vmul.f32 %v1551, %v1579
        %v1590 = vmul.f32 %v1552, %v1579
        %v1591 = vmul.f32 %v1553, %v1579
        %v1592 = vmul.f32 %v1554, %v1579
        %v1593 = vmul.f32 %v1555, %v1579
        %v1594 = vmul.f32 %v1556, %v1579
        %v1595 = vmul.f32 %v1557, %v1579
        %v1596 = vmul.f32 %v1558, %v1579
        %v1597 = vmul.f32 %v1559, %v1579
        %v1598 = vmul.f32 %v1560, %v1579
        %v1599 = vmul.f32 %v1561, %v1579
        %v1600 = vmul.f32 %v1562, %v1579
        %v1601 = vmul.f32 %v1563, %v1579
        %v1602 = vmul.f32 %v1564, %v1579
        %v1603 = vmul.f32 %v1565, %v1579
        %v1604 = vmul.f32 %v1566, %v1579
        %v1605 = vmul.f32 %v1567, %v1579
        %v1606 = vmul.f32 %v1568, %v1579
        %v1607 = vmul.f32 %v1569, %v1579
        %v1608 = vmul.f32 %v1570, %v1579
        %v1609 = vmul.f32 %v1571, %v1579
        %v1610 = vmul.f32 %v1572, %v1579
        %v1611 = vmul.f32 %v1573, %v1579
        %v1612 = vmul.f32 %v1574, %v1579
        %v1613 = vadd.f32 %v1510, %v1581
        %v1614 = vadd.f32 %v1511, %v1582
        %v1615 = vadd.f32 %v1512, %v1583
        %v1616 = vadd.f32 %v1513, %v1584
        %v1617 = vadd.f32 %v1514, %v1585
        %v1618 = vadd.f32 %v1515, %v1586
        %v1619 = vadd.f32 %v1516, %v1587
        %v1620 = vadd.f32 %v1517, %v1588
        %v1621 = vadd.f32 %v1518, %v1589
        %v1622 = vadd.f32 %v1519, %v1590
        %v1623 = vadd.f32 %v1520, %v1591
        %v1624 = vadd.f32 %v1521, %v1592
        %v1625 = vadd.f32 %v1522, %v1593
        %v1626 = vadd.f32 %v1523, %v1594
        %v1627 = vadd.f32 %v1524, %v1595
        %v1628 = vadd.f32 %v1525, %v1596
        %v1629 = vadd.f32 %v1526, %v1597
        %v1630 = vadd.f32 %v1527, %v1598
        %v1631 = vadd.f32 %v1528, %v1599
        %v1632 = vadd.f32 %v1529, %v1600
        %v1633 = vadd.f32 %v1530, %v1601
        %v1634 = vadd.f32 %v1531, %v1602
        %v1635 = vadd.f32 %v1532, %v1603
        %v1636 = vadd.f32 %v1533, %v1604
        %v1637 = vadd.f32 %v1534, %v1605
        %v1638 = vadd.f32 %v1535, %v1606
        %v1639 = vadd.f32 %v1536, %v1607
        %v1640 = vadd.f32 %v1537, %v1608
        %v1641 = vadd.f32 %v1538, %v1609
        %v1642 = vadd.f32 %v1539, %v1610
        %v1643 = vadd.f32 %v1540, %v1611
        %v1644 = vadd.f32 %v1541, %v1612
        %s1645 = scalar_lea.vmem %s1327, 768 [#allocation2]
        %v1646 = vld [vmem:[%s1645] sm:$0xff]
        %v1647 = vld [vmem:[%s1645 + $0x8] sm:$0xff]
        %v1648 = vld [vmem:[%s1645 + $0x10] sm:$0xff]
        %v1649 = vld [vmem:[%s1645 + $0x18] sm:$0xff]
        %v1650 = vld [vmem:[%s1645 + $0x20] sm:$0xff]
        %v1651 = vld [vmem:[%s1645 + $0x28] sm:$0xff]
        %v1652 = vld [vmem:[%s1645 + $0x30] sm:$0xff]
        %v1653 = vld [vmem:[%s1645 + $0x38] sm:$0xff]
        %v1654 = vld [vmem:[%s1645 + $0x40] sm:$0xff]
        %v1655 = vld [vmem:[%s1645 + $0x48] sm:$0xff]
        %v1656 = vld [vmem:[%s1645 + $0x50] sm:$0xff]
        %v1657 = vld [vmem:[%s1645 + $0x58] sm:$0xff]
        %v1658 = vld [vmem:[%s1645 + $0x60] sm:$0xff]
        %v1659 = vld [vmem:[%s1645 + $0x68] sm:$0xff]
        %v1660 = vld [vmem:[%s1645 + $0x70] sm:$0xff]
        %v1661 = vld [vmem:[%s1645 + $0x78] sm:$0xff]
        %v1662 = vld [vmem:[%s1645 + $0x80] sm:$0xff]
        %v1663 = vld [vmem:[%s1645 + $0x88] sm:$0xff]
        %v1664 = vld [vmem:[%s1645 + $0x90] sm:$0xff]
        %v1665 = vld [vmem:[%s1645 + $0x98] sm:$0xff]
        %v1666 = vld [vmem:[%s1645 + $0xa0] sm:$0xff]
        %v1667 = vld [vmem:[%s1645 + $0xa8] sm:$0xff]
        %v1668 = vld [vmem:[%s1645 + $0xb0] sm:$0xff]
        %v1669 = vld [vmem:[%s1645 + $0xb8] sm:$0xff]
        %v1670 = vld [vmem:[%s1645 + $0xc0] sm:$0xff]
        %v1671 = vld [vmem:[%s1645 + $0xc8] sm:$0xff]
        %v1672 = vld [vmem:[%s1645 + $0xd0] sm:$0xff]
        %v1673 = vld [vmem:[%s1645 + $0xd8] sm:$0xff]
        %v1674 = vld [vmem:[%s1645 + $0xe0] sm:$0xff]
        %v1675 = vld [vmem:[%s1645 + $0xe8] sm:$0xff]
        %v1676 = vld [vmem:[%s1645 + $0xf0] sm:$0xff]
        %v1677 = vld [vmem:[%s1645 + $0xf8] sm:$0xff]
        %v1679 = vlaneseq
        %v1680 = vshrl.u32 %v1679, 7
        %v1681 = vsub.s32 0, %v1680
        %v1682 = vrot.slane %v1363, %v1681
        %v1684 = vmul.f32 %v1646, %v1682
        %v1685 = vmul.f32 %v1647, %v1682
        %v1686 = vmul.f32 %v1648, %v1682
        %v1687 = vmul.f32 %v1649, %v1682
        %v1688 = vmul.f32 %v1650, %v1682
        %v1689 = vmul.f32 %v1651, %v1682
        %v1690 = vmul.f32 %v1652, %v1682
        %v1691 = vmul.f32 %v1653, %v1682
        %v1692 = vmul.f32 %v1654, %v1682
        %v1693 = vmul.f32 %v1655, %v1682
        %v1694 = vmul.f32 %v1656, %v1682
        %v1695 = vmul.f32 %v1657, %v1682
        %v1696 = vmul.f32 %v1658, %v1682
        %v1697 = vmul.f32 %v1659, %v1682
        %v1698 = vmul.f32 %v1660, %v1682
        %v1699 = vmul.f32 %v1661, %v1682
        %v1700 = vmul.f32 %v1662, %v1682
        %v1701 = vmul.f32 %v1663, %v1682
        %v1702 = vmul.f32 %v1664, %v1682
        %v1703 = vmul.f32 %v1665, %v1682
        %v1704 = vmul.f32 %v1666, %v1682
        %v1705 = vmul.f32 %v1667, %v1682
        %v1706 = vmul.f32 %v1668, %v1682
        %v1707 = vmul.f32 %v1669, %v1682
        %v1708 = vmul.f32 %v1670, %v1682
        %v1709 = vmul.f32 %v1671, %v1682
        %v1710 = vmul.f32 %v1672, %v1682
        %v1711 = vmul.f32 %v1673, %v1682
        %v1712 = vmul.f32 %v1674, %v1682
        %v1713 = vmul.f32 %v1675, %v1682
        %v1714 = vmul.f32 %v1676, %v1682
        %v1715 = vmul.f32 %v1677, %v1682
        %v1716 = vadd.f32 %v1613, %v1684
        %v1717 = vadd.f32 %v1614, %v1685
        %v1718 = vadd.f32 %v1615, %v1686
        %v1719 = vadd.f32 %v1616, %v1687
        %v1720 = vadd.f32 %v1617, %v1688
        %v1721 = vadd.f32 %v1618, %v1689
        %v1722 = vadd.f32 %v1619, %v1690
        %v1723 = vadd.f32 %v1620, %v1691
        %v1724 = vadd.f32 %v1621, %v1692
        %v1725 = vadd.f32 %v1622, %v1693
        %v1726 = vadd.f32 %v1623, %v1694
        %v1727 = vadd.f32 %v1624, %v1695
        %v1728 = vadd.f32 %v1625, %v1696
        %v1729 = vadd.f32 %v1626, %v1697
        %v1730 = vadd.f32 %v1627, %v1698
        %v1731 = vadd.f32 %v1628, %v1699
        %v1732 = vadd.f32 %v1629, %v1700
        %v1733 = vadd.f32 %v1630, %v1701
        %v1734 = vadd.f32 %v1631, %v1702
        %v1735 = vadd.f32 %v1632, %v1703
        %v1736 = vadd.f32 %v1633, %v1704
        %v1737 = vadd.f32 %v1634, %v1705
        %v1738 = vadd.f32 %v1635, %v1706
        %v1739 = vadd.f32 %v1636, %v1707
        %v1740 = vadd.f32 %v1637, %v1708
        %v1741 = vadd.f32 %v1638, %v1709
        %v1742 = vadd.f32 %v1639, %v1710
        %v1743 = vadd.f32 %v1640, %v1711
        %v1744 = vadd.f32 %v1641, %v1712
        %v1745 = vadd.f32 %v1642, %v1713
        %v1746 = vadd.f32 %v1643, %v1714
        %v1747 = vadd.f32 %v1644, %v1715
        %s1748 = scalar_lea.vmem %s1327, 1024 [#allocation2]
        %v1749 = vld [vmem:[%s1748] sm:$0xff]
        %v1750 = vld [vmem:[%s1748 + $0x8] sm:$0xff]
        %v1751 = vld [vmem:[%s1748 + $0x10] sm:$0xff]
        %v1752 = vld [vmem:[%s1748 + $0x18] sm:$0xff]
        %v1753 = vld [vmem:[%s1748 + $0x20] sm:$0xff]
        %v1754 = vld [vmem:[%s1748 + $0x28] sm:$0xff]
        %v1755 = vld [vmem:[%s1748 + $0x30] sm:$0xff]
        %v1756 = vld [vmem:[%s1748 + $0x38] sm:$0xff]
        %v1757 = vld [vmem:[%s1748 + $0x40] sm:$0xff]
        %v1758 = vld [vmem:[%s1748 + $0x48] sm:$0xff]
        %v1759 = vld [vmem:[%s1748 + $0x50] sm:$0xff]
        %v1760 = vld [vmem:[%s1748 + $0x58] sm:$0xff]
        %v1761 = vld [vmem:[%s1748 + $0x60] sm:$0xff]
        %v1762 = vld [vmem:[%s1748 + $0x68] sm:$0xff]
        %v1763 = vld [vmem:[%s1748 + $0x70] sm:$0xff]
        %v1764 = vld [vmem:[%s1748 + $0x78] sm:$0xff]
        %v1765 = vld [vmem:[%s1748 + $0x80] sm:$0xff]
        %v1766 = vld [vmem:[%s1748 + $0x88] sm:$0xff]
        %v1767 = vld [vmem:[%s1748 + $0x90] sm:$0xff]
        %v1768 = vld [vmem:[%s1748 + $0x98] sm:$0xff]
        %v1769 = vld [vmem:[%s1748 + $0xa0] sm:$0xff]
        %v1770 = vld [vmem:[%s1748 + $0xa8] sm:$0xff]
        %v1771 = vld [vmem:[%s1748 + $0xb0] sm:$0xff]
        %v1772 = vld [vmem:[%s1748 + $0xb8] sm:$0xff]
        %v1773 = vld [vmem:[%s1748 + $0xc0] sm:$0xff]
        %v1774 = vld [vmem:[%s1748 + $0xc8] sm:$0xff]
        %v1775 = vld [vmem:[%s1748 + $0xd0] sm:$0xff]
        %v1776 = vld [vmem:[%s1748 + $0xd8] sm:$0xff]
        %v1777 = vld [vmem:[%s1748 + $0xe0] sm:$0xff]
        %v1778 = vld [vmem:[%s1748 + $0xe8] sm:$0xff]
        %v1779 = vld [vmem:[%s1748 + $0xf0] sm:$0xff]
        %v1780 = vld [vmem:[%s1748 + $0xf8] sm:$0xff]
        %v1782 = vlaneseq
        %v1783 = vshrl.u32 %v1782, 7
        %v1784 = vsub.s32 0, %v1783
        %v1785 = vrot.slane %v1364, %v1784
        %v1787 = vmul.f32 %v1749, %v1785
        %v1788 = vmul.f32 %v1750, %v1785
        %v1789 = vmul.f32 %v1751, %v1785
        %v1790 = vmul.f32 %v1752, %v1785
        %v1791 = vmul.f32 %v1753, %v1785
        %v1792 = vmul.f32 %v1754, %v1785
        %v1793 = vmul.f32 %v1755, %v1785
        %v1794 = vmul.f32 %v1756, %v1785
        %v1795 = vmul.f32 %v1757, %v1785
        %v1796 = vmul.f32 %v1758, %v1785
        %v1797 = vmul.f32 %v1759, %v1785
        %v1798 = vmul.f32 %v1760, %v1785
        %v1799 = vmul.f32 %v1761, %v1785
        %v1800 = vmul.f32 %v1762, %v1785
        %v1801 = vmul.f32 %v1763, %v1785
        %v1802 = vmul.f32 %v1764, %v1785
        %v1803 = vmul.f32 %v1765, %v1785
        %v1804 = vmul.f32 %v1766, %v1785
        %v1805 = vmul.f32 %v1767, %v1785
        %v1806 = vmul.f32 %v1768, %v1785
        %v1807 = vmul.f32 %v1769, %v1785
        %v1808 = vmul.f32 %v1770, %v1785
        %v1809 = vmul.f32 %v1771, %v1785
        %v1810 = vmul.f32 %v1772, %v1785
        %v1811 = vmul.f32 %v1773, %v1785
        %v1812 = vmul.f32 %v1774, %v1785
        %v1813 = vmul.f32 %v1775, %v1785
        %v1814 = vmul.f32 %v1776, %v1785
        %v1815 = vmul.f32 %v1777, %v1785
        %v1816 = vmul.f32 %v1778, %v1785
        %v1817 = vmul.f32 %v1779, %v1785
        %v1818 = vmul.f32 %v1780, %v1785
        %v1819 = vadd.f32 %v1716, %v1787
        %v1820 = vadd.f32 %v1717, %v1788
        %v1821 = vadd.f32 %v1718, %v1789
        %v1822 = vadd.f32 %v1719, %v1790
        %v1823 = vadd.f32 %v1720, %v1791
        %v1824 = vadd.f32 %v1721, %v1792
        %v1825 = vadd.f32 %v1722, %v1793
        %v1826 = vadd.f32 %v1723, %v1794
        %v1827 = vadd.f32 %v1724, %v1795
        %v1828 = vadd.f32 %v1725, %v1796
        %v1829 = vadd.f32 %v1726, %v1797
        %v1830 = vadd.f32 %v1727, %v1798
        %v1831 = vadd.f32 %v1728, %v1799
        %v1832 = vadd.f32 %v1729, %v1800
        %v1833 = vadd.f32 %v1730, %v1801
        %v1834 = vadd.f32 %v1731, %v1802
        %v1835 = vadd.f32 %v1732, %v1803
        %v1836 = vadd.f32 %v1733, %v1804
        %v1837 = vadd.f32 %v1734, %v1805
        %v1838 = vadd.f32 %v1735, %v1806
        %v1839 = vadd.f32 %v1736, %v1807
        %v1840 = vadd.f32 %v1737, %v1808
        %v1841 = vadd.f32 %v1738, %v1809
        %v1842 = vadd.f32 %v1739, %v1810
        %v1843 = vadd.f32 %v1740, %v1811
        %v1844 = vadd.f32 %v1741, %v1812
        %v1845 = vadd.f32 %v1742, %v1813
        %v1846 = vadd.f32 %v1743, %v1814
        %v1847 = vadd.f32 %v1744, %v1815
        %v1848 = vadd.f32 %v1745, %v1816
        %v1849 = vadd.f32 %v1746, %v1817
        %v1850 = vadd.f32 %v1747, %v1818
        %s1851 = scalar_lea.vmem %s1327, 1280 [#allocation2]
        %v1852 = vld [vmem:[%s1851] sm:$0xff]
        %v1853 = vld [vmem:[%s1851 + $0x8] sm:$0xff]
        %v1854 = vld [vmem:[%s1851 + $0x10] sm:$0xff]
        %v1855 = vld [vmem:[%s1851 + $0x18] sm:$0xff]
        %v1856 = vld [vmem:[%s1851 + $0x20] sm:$0xff]
        %v1857 = vld [vmem:[%s1851 + $0x28] sm:$0xff]
        %v1858 = vld [vmem:[%s1851 + $0x30] sm:$0xff]
        %v1859 = vld [vmem:[%s1851 + $0x38] sm:$0xff]
        %v1860 = vld [vmem:[%s1851 + $0x40] sm:$0xff]
        %v1861 = vld [vmem:[%s1851 + $0x48] sm:$0xff]
        %v1862 = vld [vmem:[%s1851 + $0x50] sm:$0xff]
        %v1863 = vld [vmem:[%s1851 + $0x58] sm:$0xff]
        %v1864 = vld [vmem:[%s1851 + $0x60] sm:$0xff]
        %v1865 = vld [vmem:[%s1851 + $0x68] sm:$0xff]
        %v1866 = vld [vmem:[%s1851 + $0x70] sm:$0xff]
        %v1867 = vld [vmem:[%s1851 + $0x78] sm:$0xff]
        %v1868 = vld [vmem:[%s1851 + $0x80] sm:$0xff]
        %v1869 = vld [vmem:[%s1851 + $0x88] sm:$0xff]
        %v1870 = vld [vmem:[%s1851 + $0x90] sm:$0xff]
        %v1871 = vld [vmem:[%s1851 + $0x98] sm:$0xff]
        %v1872 = vld [vmem:[%s1851 + $0xa0] sm:$0xff]
        %v1873 = vld [vmem:[%s1851 + $0xa8] sm:$0xff]
        %v1874 = vld [vmem:[%s1851 + $0xb0] sm:$0xff]
        %v1875 = vld [vmem:[%s1851 + $0xb8] sm:$0xff]
        %v1876 = vld [vmem:[%s1851 + $0xc0] sm:$0xff]
        %v1877 = vld [vmem:[%s1851 + $0xc8] sm:$0xff]
        %v1878 = vld [vmem:[%s1851 + $0xd0] sm:$0xff]
        %v1879 = vld [vmem:[%s1851 + $0xd8] sm:$0xff]
        %v1880 = vld [vmem:[%s1851 + $0xe0] sm:$0xff]
        %v1881 = vld [vmem:[%s1851 + $0xe8] sm:$0xff]
        %v1882 = vld [vmem:[%s1851 + $0xf0] sm:$0xff]
        %v1883 = vld [vmem:[%s1851 + $0xf8] sm:$0xff]
        %v1885 = vlaneseq
        %v1886 = vshrl.u32 %v1885, 7
        %v1887 = vsub.s32 0, %v1886
        %v1888 = vrot.slane %v1365, %v1887
        %v1890 = vmul.f32 %v1852, %v1888
        %v1891 = vmul.f32 %v1853, %v1888
        %v1892 = vmul.f32 %v1854, %v1888
        %v1893 = vmul.f32 %v1855, %v1888
        %v1894 = vmul.f32 %v1856, %v1888
        %v1895 = vmul.f32 %v1857, %v1888
        %v1896 = vmul.f32 %v1858, %v1888
        %v1897 = vmul.f32 %v1859, %v1888
        %v1898 = vmul.f32 %v1860, %v1888
        %v1899 = vmul.f32 %v1861, %v1888
        %v1900 = vmul.f32 %v1862, %v1888
        %v1901 = vmul.f32 %v1863, %v1888
        %v1902 = vmul.f32 %v1864, %v1888
        %v1903 = vmul.f32 %v1865, %v1888
        %v1904 = vmul.f32 %v1866, %v1888
        %v1905 = vmul.f32 %v1867, %v1888
        %v1906 = vmul.f32 %v1868, %v1888
        %v1907 = vmul.f32 %v1869, %v1888
        %v1908 = vmul.f32 %v1870, %v1888
        %v1909 = vmul.f32 %v1871, %v1888
        %v1910 = vmul.f32 %v1872, %v1888
        %v1911 = vmul.f32 %v1873, %v1888
        %v1912 = vmul.f32 %v1874, %v1888
        %v1913 = vmul.f32 %v1875, %v1888
        %v1914 = vmul.f32 %v1876, %v1888
        %v1915 = vmul.f32 %v1877, %v1888
        %v1916 = vmul.f32 %v1878, %v1888
        %v1917 = vmul.f32 %v1879, %v1888
        %v1918 = vmul.f32 %v1880, %v1888
        %v1919 = vmul.f32 %v1881, %v1888
        %v1920 = vmul.f32 %v1882, %v1888
        %v1921 = vmul.f32 %v1883, %v1888
        %v1922 = vadd.f32 %v1819, %v1890
        %v1923 = vadd.f32 %v1820, %v1891
        %v1924 = vadd.f32 %v1821, %v1892
        %v1925 = vadd.f32 %v1822, %v1893
        %v1926 = vadd.f32 %v1823, %v1894
        %v1927 = vadd.f32 %v1824, %v1895
        %v1928 = vadd.f32 %v1825, %v1896
        %v1929 = vadd.f32 %v1826, %v1897
        %v1930 = vadd.f32 %v1827, %v1898
        %v1931 = vadd.f32 %v1828, %v1899
        %v1932 = vadd.f32 %v1829, %v1900
        %v1933 = vadd.f32 %v1830, %v1901
        %v1934 = vadd.f32 %v1831, %v1902
        %v1935 = vadd.f32 %v1832, %v1903
        %v1936 = vadd.f32 %v1833, %v1904
        %v1937 = vadd.f32 %v1834, %v1905
        %v1938 = vadd.f32 %v1835, %v1906
        %v1939 = vadd.f32 %v1836, %v1907
        %v1940 = vadd.f32 %v1837, %v1908
        %v1941 = vadd.f32 %v1838, %v1909
        %v1942 = vadd.f32 %v1839, %v1910
        %v1943 = vadd.f32 %v1840, %v1911
        %v1944 = vadd.f32 %v1841, %v1912
        %v1945 = vadd.f32 %v1842, %v1913
        %v1946 = vadd.f32 %v1843, %v1914
        %v1947 = vadd.f32 %v1844, %v1915
        %v1948 = vadd.f32 %v1845, %v1916
        %v1949 = vadd.f32 %v1846, %v1917
        %v1950 = vadd.f32 %v1847, %v1918
        %v1951 = vadd.f32 %v1848, %v1919
        %v1952 = vadd.f32 %v1849, %v1920
        %v1953 = vadd.f32 %v1850, %v1921
        %s1954 = scalar_lea.vmem %s1327, 1536 [#allocation2]
        %v1955 = vld [vmem:[%s1954] sm:$0xff]
        %v1956 = vld [vmem:[%s1954 + $0x8] sm:$0xff]
        %v1957 = vld [vmem:[%s1954 + $0x10] sm:$0xff]
        %v1958 = vld [vmem:[%s1954 + $0x18] sm:$0xff]
        %v1959 = vld [vmem:[%s1954 + $0x20] sm:$0xff]
        %v1960 = vld [vmem:[%s1954 + $0x28] sm:$0xff]
        %v1961 = vld [vmem:[%s1954 + $0x30] sm:$0xff]
        %v1962 = vld [vmem:[%s1954 + $0x38] sm:$0xff]
        %v1963 = vld [vmem:[%s1954 + $0x40] sm:$0xff]
        %v1964 = vld [vmem:[%s1954 + $0x48] sm:$0xff]
        %v1965 = vld [vmem:[%s1954 + $0x50] sm:$0xff]
        %v1966 = vld [vmem:[%s1954 + $0x58] sm:$0xff]
        %v1967 = vld [vmem:[%s1954 + $0x60] sm:$0xff]
        %v1968 = vld [vmem:[%s1954 + $0x68] sm:$0xff]
        %v1969 = vld [vmem:[%s1954 + $0x70] sm:$0xff]
        %v1970 = vld [vmem:[%s1954 + $0x78] sm:$0xff]
        %v1971 = vld [vmem:[%s1954 + $0x80] sm:$0xff]
        %v1972 = vld [vmem:[%s1954 + $0x88] sm:$0xff]
        %v1973 = vld [vmem:[%s1954 + $0x90] sm:$0xff]
        %v1974 = vld [vmem:[%s1954 + $0x98] sm:$0xff]
        %v1975 = vld [vmem:[%s1954 + $0xa0] sm:$0xff]
        %v1976 = vld [vmem:[%s1954 + $0xa8] sm:$0xff]
        %v1977 = vld [vmem:[%s1954 + $0xb0] sm:$0xff]
        %v1978 = vld [vmem:[%s1954 + $0xb8] sm:$0xff]
        %v1979 = vld [vmem:[%s1954 + $0xc0] sm:$0xff]
        %v1980 = vld [vmem:[%s1954 + $0xc8] sm:$0xff]
        %v1981 = vld [vmem:[%s1954 + $0xd0] sm:$0xff]
        %v1982 = vld [vmem:[%s1954 + $0xd8] sm:$0xff]
        %v1983 = vld [vmem:[%s1954 + $0xe0] sm:$0xff]
        %v1984 = vld [vmem:[%s1954 + $0xe8] sm:$0xff]
        %v1985 = vld [vmem:[%s1954 + $0xf0] sm:$0xff]
        %v1986 = vld [vmem:[%s1954 + $0xf8] sm:$0xff]
        %v1988 = vlaneseq
        %v1989 = vshrl.u32 %v1988, 7
        %v1990 = vsub.s32 0, %v1989
        %v1991 = vrot.slane %v1366, %v1990
        %v1993 = vmul.f32 %v1955, %v1991
        %v1994 = vmul.f32 %v1956, %v1991
        %v1995 = vmul.f32 %v1957, %v1991
        %v1996 = vmul.f32 %v1958, %v1991
        %v1997 = vmul.f32 %v1959, %v1991
        %v1998 = vmul.f32 %v1960, %v1991
        %v1999 = vmul.f32 %v1961, %v1991
        %v2000 = vmul.f32 %v1962, %v1991
        %v2001 = vmul.f32 %v1963, %v1991
        %v2002 = vmul.f32 %v1964, %v1991
        %v2003 = vmul.f32 %v1965, %v1991
        %v2004 = vmul.f32 %v1966, %v1991
        %v2005 = vmul.f32 %v1967, %v1991
        %v2006 = vmul.f32 %v1968, %v1991
        %v2007 = vmul.f32 %v1969, %v1991
        %v2008 = vmul.f32 %v1970, %v1991
        %v2009 = vmul.f32 %v1971, %v1991
        %v2010 = vmul.f32 %v1972, %v1991
        %v2011 = vmul.f32 %v1973, %v1991
        %v2012 = vmul.f32 %v1974, %v1991
        %v2013 = vmul.f32 %v1975, %v1991
        %v2014 = vmul.f32 %v1976, %v1991
        %v2015 = vmul.f32 %v1977, %v1991
        %v2016 = vmul.f32 %v1978, %v1991
        %v2017 = vmul.f32 %v1979, %v1991
        %v2018 = vmul.f32 %v1980, %v1991
        %v2019 = vmul.f32 %v1981, %v1991
        %v2020 = vmul.f32 %v1982, %v1991
        %v2021 = vmul.f32 %v1983, %v1991
        %v2022 = vmul.f32 %v1984, %v1991
        %v2023 = vmul.f32 %v1985, %v1991
        %v2024 = vmul.f32 %v1986, %v1991
        %v2025 = vadd.f32 %v1922, %v1993
        %v2026 = vadd.f32 %v1923, %v1994
        %v2027 = vadd.f32 %v1924, %v1995
        %v2028 = vadd.f32 %v1925, %v1996
        %v2029 = vadd.f32 %v1926, %v1997
        %v2030 = vadd.f32 %v1927, %v1998
        %v2031 = vadd.f32 %v1928, %v1999
        %v2032 = vadd.f32 %v1929, %v2000
        %v2033 = vadd.f32 %v1930, %v2001
        %v2034 = vadd.f32 %v1931, %v2002
        %v2035 = vadd.f32 %v1932, %v2003
        %v2036 = vadd.f32 %v1933, %v2004
        %v2037 = vadd.f32 %v1934, %v2005
        %v2038 = vadd.f32 %v1935, %v2006
        %v2039 = vadd.f32 %v1936, %v2007
        %v2040 = vadd.f32 %v1937, %v2008
        %v2041 = vadd.f32 %v1938, %v2009
        %v2042 = vadd.f32 %v1939, %v2010
        %v2043 = vadd.f32 %v1940, %v2011
        %v2044 = vadd.f32 %v1941, %v2012
        %v2045 = vadd.f32 %v1942, %v2013
        %v2046 = vadd.f32 %v1943, %v2014
        %v2047 = vadd.f32 %v1944, %v2015
        %v2048 = vadd.f32 %v1945, %v2016
        %v2049 = vadd.f32 %v1946, %v2017
        %v2050 = vadd.f32 %v1947, %v2018
        %v2051 = vadd.f32 %v1948, %v2019
        %v2052 = vadd.f32 %v1949, %v2020
        %v2053 = vadd.f32 %v1950, %v2021
        %v2054 = vadd.f32 %v1951, %v2022
        %v2055 = vadd.f32 %v1952, %v2023
        %v2056 = vadd.f32 %v1953, %v2024
        %s2057 = scalar_lea.vmem %s1327, 1792 [#allocation2]
        %v2058 = vld [vmem:[%s2057] sm:$0xff]
        %v2059 = vld [vmem:[%s2057 + $0x8] sm:$0xff]
        %v2060 = vld [vmem:[%s2057 + $0x10] sm:$0xff]
        %v2061 = vld [vmem:[%s2057 + $0x18] sm:$0xff]
        %v2062 = vld [vmem:[%s2057 + $0x20] sm:$0xff]
        %v2063 = vld [vmem:[%s2057 + $0x28] sm:$0xff]
        %v2064 = vld [vmem:[%s2057 + $0x30] sm:$0xff]
        %v2065 = vld [vmem:[%s2057 + $0x38] sm:$0xff]
        %v2066 = vld [vmem:[%s2057 + $0x40] sm:$0xff]
        %v2067 = vld [vmem:[%s2057 + $0x48] sm:$0xff]
        %v2068 = vld [vmem:[%s2057 + $0x50] sm:$0xff]
        %v2069 = vld [vmem:[%s2057 + $0x58] sm:$0xff]
        %v2070 = vld [vmem:[%s2057 + $0x60] sm:$0xff]
        %v2071 = vld [vmem:[%s2057 + $0x68] sm:$0xff]
        %v2072 = vld [vmem:[%s2057 + $0x70] sm:$0xff]
        %v2073 = vld [vmem:[%s2057 + $0x78] sm:$0xff]
        %v2074 = vld [vmem:[%s2057 + $0x80] sm:$0xff]
        %v2075 = vld [vmem:[%s2057 + $0x88] sm:$0xff]
        %v2076 = vld [vmem:[%s2057 + $0x90] sm:$0xff]
        %v2077 = vld [vmem:[%s2057 + $0x98] sm:$0xff]
        %v2078 = vld [vmem:[%s2057 + $0xa0] sm:$0xff]
        %v2079 = vld [vmem:[%s2057 + $0xa8] sm:$0xff]
        %v2080 = vld [vmem:[%s2057 + $0xb0] sm:$0xff]
        %v2081 = vld [vmem:[%s2057 + $0xb8] sm:$0xff]
        %v2082 = vld [vmem:[%s2057 + $0xc0] sm:$0xff]
        %v2083 = vld [vmem:[%s2057 + $0xc8] sm:$0xff]
        %v2084 = vld [vmem:[%s2057 + $0xd0] sm:$0xff]
        %v2085 = vld [vmem:[%s2057 + $0xd8] sm:$0xff]
        %v2086 = vld [vmem:[%s2057 + $0xe0] sm:$0xff]
        %v2087 = vld [vmem:[%s2057 + $0xe8] sm:$0xff]
        %v2088 = vld [vmem:[%s2057 + $0xf0] sm:$0xff]
        %v2089 = vld [vmem:[%s2057 + $0xf8] sm:$0xff]
        %v2091 = vlaneseq
        %v2092 = vshrl.u32 %v2091, 7
        %v2093 = vsub.s32 0, %v2092
        %v2094 = vrot.slane %v1367, %v2093
        %v2096 = vmul.f32 %v2058, %v2094
        %v2097 = vmul.f32 %v2059, %v2094
        %v2098 = vmul.f32 %v2060, %v2094
        %v2099 = vmul.f32 %v2061, %v2094
        %v2100 = vmul.f32 %v2062, %v2094
        %v2101 = vmul.f32 %v2063, %v2094
        %v2102 = vmul.f32 %v2064, %v2094
        %v2103 = vmul.f32 %v2065, %v2094
        %v2104 = vmul.f32 %v2066, %v2094
        %v2105 = vmul.f32 %v2067, %v2094
        %v2106 = vmul.f32 %v2068, %v2094
        %v2107 = vmul.f32 %v2069, %v2094
        %v2108 = vmul.f32 %v2070, %v2094
        %v2109 = vmul.f32 %v2071, %v2094
        %v2110 = vmul.f32 %v2072, %v2094
        %v2111 = vmul.f32 %v2073, %v2094
        %v2112 = vmul.f32 %v2074, %v2094
        %v2113 = vmul.f32 %v2075, %v2094
        %v2114 = vmul.f32 %v2076, %v2094
        %v2115 = vmul.f32 %v2077, %v2094
        %v2116 = vmul.f32 %v2078, %v2094
        %v2117 = vmul.f32 %v2079, %v2094
        %v2118 = vmul.f32 %v2080, %v2094
        %v2119 = vmul.f32 %v2081, %v2094
        %v2120 = vmul.f32 %v2082, %v2094
        %v2121 = vmul.f32 %v2083, %v2094
        %v2122 = vmul.f32 %v2084, %v2094
        %v2123 = vmul.f32 %v2085, %v2094
        %v2124 = vmul.f32 %v2086, %v2094
        %v2125 = vmul.f32 %v2087, %v2094
        %v2126 = vmul.f32 %v2088, %v2094
        %v2127 = vmul.f32 %v2089, %v2094
        %v2128 = vadd.f32 %v2025, %v2096
        %v2129 = vadd.f32 %v2026, %v2097
        %v2130 = vadd.f32 %v2027, %v2098
        %v2131 = vadd.f32 %v2028, %v2099
        %v2132 = vadd.f32 %v2029, %v2100
        %v2133 = vadd.f32 %v2030, %v2101
        %v2134 = vadd.f32 %v2031, %v2102
        %v2135 = vadd.f32 %v2032, %v2103
        %v2136 = vadd.f32 %v2033, %v2104
        %v2137 = vadd.f32 %v2034, %v2105
        %v2138 = vadd.f32 %v2035, %v2106
        %v2139 = vadd.f32 %v2036, %v2107
        %v2140 = vadd.f32 %v2037, %v2108
        %v2141 = vadd.f32 %v2038, %v2109
        %v2142 = vadd.f32 %v2039, %v2110
        %v2143 = vadd.f32 %v2040, %v2111
        %v2144 = vadd.f32 %v2041, %v2112
        %v2145 = vadd.f32 %v2042, %v2113
        %v2146 = vadd.f32 %v2043, %v2114
        %v2147 = vadd.f32 %v2044, %v2115
        %v2148 = vadd.f32 %v2045, %v2116
        %v2149 = vadd.f32 %v2046, %v2117
        %v2150 = vadd.f32 %v2047, %v2118
        %v2151 = vadd.f32 %v2048, %v2119
        %v2152 = vadd.f32 %v2049, %v2120
        %v2153 = vadd.f32 %v2050, %v2121
        %v2154 = vadd.f32 %v2051, %v2122
        %v2155 = vadd.f32 %v2052, %v2123
        %v2156 = vadd.f32 %v2053, %v2124
        %v2157 = vadd.f32 %v2054, %v2125
        %v2158 = vadd.f32 %v2055, %v2126
        %v2159 = vadd.f32 %v2056, %v2127
        %s2160 = scalar_lea.vmem %s1327, 2048 [#allocation2]
        %v2161 = vld [vmem:[%s2160] sm:$0xff]
        %v2162 = vld [vmem:[%s2160 + $0x8] sm:$0xff]
        %v2163 = vld [vmem:[%s2160 + $0x10] sm:$0xff]
        %v2164 = vld [vmem:[%s2160 + $0x18] sm:$0xff]
        %v2165 = vld [vmem:[%s2160 + $0x20] sm:$0xff]
        %v2166 = vld [vmem:[%s2160 + $0x28] sm:$0xff]
        %v2167 = vld [vmem:[%s2160 + $0x30] sm:$0xff]
        %v2168 = vld [vmem:[%s2160 + $0x38] sm:$0xff]
        %v2169 = vld [vmem:[%s2160 + $0x40] sm:$0xff]
        %v2170 = vld [vmem:[%s2160 + $0x48] sm:$0xff]
        %v2171 = vld [vmem:[%s2160 + $0x50] sm:$0xff]
        %v2172 = vld [vmem:[%s2160 + $0x58] sm:$0xff]
        %v2173 = vld [vmem:[%s2160 + $0x60] sm:$0xff]
        %v2174 = vld [vmem:[%s2160 + $0x68] sm:$0xff]
        %v2175 = vld [vmem:[%s2160 + $0x70] sm:$0xff]
        %v2176 = vld [vmem:[%s2160 + $0x78] sm:$0xff]
        %v2177 = vld [vmem:[%s2160 + $0x80] sm:$0xff]
        %v2178 = vld [vmem:[%s2160 + $0x88] sm:$0xff]
        %v2179 = vld [vmem:[%s2160 + $0x90] sm:$0xff]
        %v2180 = vld [vmem:[%s2160 + $0x98] sm:$0xff]
        %v2181 = vld [vmem:[%s2160 + $0xa0] sm:$0xff]
        %v2182 = vld [vmem:[%s2160 + $0xa8] sm:$0xff]
        %v2183 = vld [vmem:[%s2160 + $0xb0] sm:$0xff]
        %v2184 = vld [vmem:[%s2160 + $0xb8] sm:$0xff]
        %v2185 = vld [vmem:[%s2160 + $0xc0] sm:$0xff]
        %v2186 = vld [vmem:[%s2160 + $0xc8] sm:$0xff]
        %v2187 = vld [vmem:[%s2160 + $0xd0] sm:$0xff]
        %v2188 = vld [vmem:[%s2160 + $0xd8] sm:$0xff]
        %v2189 = vld [vmem:[%s2160 + $0xe0] sm:$0xff]
        %v2190 = vld [vmem:[%s2160 + $0xe8] sm:$0xff]
        %v2191 = vld [vmem:[%s2160 + $0xf0] sm:$0xff]
        %v2192 = vld [vmem:[%s2160 + $0xf8] sm:$0xff]
        %v2194 = vlaneseq
        %v2195 = vshrl.u32 %v2194, 7
        %v2196 = vsub.s32 0, %v2195
        %v2197 = vrot.slane %v1368, %v2196
        %v2199 = vmul.f32 %v2161, %v2197
        %v2200 = vmul.f32 %v2162, %v2197
        %v2201 = vmul.f32 %v2163, %v2197
        %v2202 = vmul.f32 %v2164, %v2197
        %v2203 = vmul.f32 %v2165, %v2197
        %v2204 = vmul.f32 %v2166, %v2197
        %v2205 = vmul.f32 %v2167, %v2197
        %v2206 = vmul.f32 %v2168, %v2197
        %v2207 = vmul.f32 %v2169, %v2197
        %v2208 = vmul.f32 %v2170, %v2197
        %v2209 = vmul.f32 %v2171, %v2197
        %v2210 = vmul.f32 %v2172, %v2197
        %v2211 = vmul.f32 %v2173, %v2197
        %v2212 = vmul.f32 %v2174, %v2197
        %v2213 = vmul.f32 %v2175, %v2197
        %v2214 = vmul.f32 %v2176, %v2197
        %v2215 = vmul.f32 %v2177, %v2197
        %v2216 = vmul.f32 %v2178, %v2197
        %v2217 = vmul.f32 %v2179, %v2197
        %v2218 = vmul.f32 %v2180, %v2197
        %v2219 = vmul.f32 %v2181, %v2197
        %v2220 = vmul.f32 %v2182, %v2197
        %v2221 = vmul.f32 %v2183, %v2197
        %v2222 = vmul.f32 %v2184, %v2197
        %v2223 = vmul.f32 %v2185, %v2197
        %v2224 = vmul.f32 %v2186, %v2197
        %v2225 = vmul.f32 %v2187, %v2197
        %v2226 = vmul.f32 %v2188, %v2197
        %v2227 = vmul.f32 %v2189, %v2197
        %v2228 = vmul.f32 %v2190, %v2197
        %v2229 = vmul.f32 %v2191, %v2197
        %v2230 = vmul.f32 %v2192, %v2197
        %v2231 = vadd.f32 %v2128, %v2199
        %v2232 = vadd.f32 %v2129, %v2200
        %v2233 = vadd.f32 %v2130, %v2201
        %v2234 = vadd.f32 %v2131, %v2202
        %v2235 = vadd.f32 %v2132, %v2203
        %v2236 = vadd.f32 %v2133, %v2204
        %v2237 = vadd.f32 %v2134, %v2205
        %v2238 = vadd.f32 %v2135, %v2206
        %v2239 = vadd.f32 %v2136, %v2207
        %v2240 = vadd.f32 %v2137, %v2208
        %v2241 = vadd.f32 %v2138, %v2209
        %v2242 = vadd.f32 %v2139, %v2210
        %v2243 = vadd.f32 %v2140, %v2211
        %v2244 = vadd.f32 %v2141, %v2212
        %v2245 = vadd.f32 %v2142, %v2213
        %v2246 = vadd.f32 %v2143, %v2214
        %v2247 = vadd.f32 %v2144, %v2215
        %v2248 = vadd.f32 %v2145, %v2216
        %v2249 = vadd.f32 %v2146, %v2217
        %v2250 = vadd.f32 %v2147, %v2218
        %v2251 = vadd.f32 %v2148, %v2219
        %v2252 = vadd.f32 %v2149, %v2220
        %v2253 = vadd.f32 %v2150, %v2221
        %v2254 = vadd.f32 %v2151, %v2222
        %v2255 = vadd.f32 %v2152, %v2223
        %v2256 = vadd.f32 %v2153, %v2224
        %v2257 = vadd.f32 %v2154, %v2225
        %v2258 = vadd.f32 %v2155, %v2226
        %v2259 = vadd.f32 %v2156, %v2227
        %v2260 = vadd.f32 %v2157, %v2228
        %v2261 = vadd.f32 %v2158, %v2229
        %v2262 = vadd.f32 %v2159, %v2230
        %2263 = vst [vmem:[%s1353] sm:$0xff] %v2231
        %2264 = vst [vmem:[%s1353 + $0x8] sm:$0xff] %v2232
        %2265 = vst [vmem:[%s1353 + $0x10] sm:$0xff] %v2233
        %2266 = vst [vmem:[%s1353 + $0x18] sm:$0xff] %v2234
        %2267 = vst [vmem:[%s1353 + $0x20] sm:$0xff] %v2235
        %2268 = vst [vmem:[%s1353 + $0x28] sm:$0xff] %v2236
        %2269 = vst [vmem:[%s1353 + $0x30] sm:$0xff] %v2237
        %2270 = vst [vmem:[%s1353 + $0x38] sm:$0xff] %v2238
        %2271 = vst [vmem:[%s1353 + $0x40] sm:$0xff] %v2239
        %2272 = vst [vmem:[%s1353 + $0x48] sm:$0xff] %v2240
        %2273 = vst [vmem:[%s1353 + $0x50] sm:$0xff] %v2241
        %2274 = vst [vmem:[%s1353 + $0x58] sm:$0xff] %v2242
        %2275 = vst [vmem:[%s1353 + $0x60] sm:$0xff] %v2243
        %2276 = vst [vmem:[%s1353 + $0x68] sm:$0xff] %v2244
        %2277 = vst [vmem:[%s1353 + $0x70] sm:$0xff] %v2245
        %2278 = vst [vmem:[%s1353 + $0x78] sm:$0xff] %v2246
        %2279 = vst [vmem:[%s1353 + $0x80] sm:$0xff] %v2247
        %2280 = vst [vmem:[%s1353 + $0x88] sm:$0xff] %v2248
        %2281 = vst [vmem:[%s1353 + $0x90] sm:$0xff] %v2249
        %2282 = vst [vmem:[%s1353 + $0x98] sm:$0xff] %v2250
        %2283 = vst [vmem:[%s1353 + $0xa0] sm:$0xff] %v2251
        %2284 = vst [vmem:[%s1353 + $0xa8] sm:$0xff] %v2252
        %2285 = vst [vmem:[%s1353 + $0xb0] sm:$0xff] %v2253
        %2286 = vst [vmem:[%s1353 + $0xb8] sm:$0xff] %v2254
        %2287 = vst [vmem:[%s1353 + $0xc0] sm:$0xff] %v2255
        %2288 = vst [vmem:[%s1353 + $0xc8] sm:$0xff] %v2256
        %2289 = vst [vmem:[%s1353 + $0xd0] sm:$0xff] %v2257
        %2290 = vst [vmem:[%s1353 + $0xd8] sm:$0xff] %v2258
        %2291 = vst [vmem:[%s1353 + $0xe0] sm:$0xff] %v2259
        %2292 = vst [vmem:[%s1353 + $0xe8] sm:$0xff] %v2260
        %2293 = vst [vmem:[%s1353 + $0xf0] sm:$0xff] %v2261
        %2294 = vst [vmem:[%s1353 + $0xf8] sm:$0xff] %v2262
        %v2295 = vld [vmem:[%s3] sm:$0x1]
        %v2296 = vadd.f32 %v2231, %v2232
        %v2297 = vadd.f32 %v2296, %v2233
        %v2298 = vadd.f32 %v2297, %v2234
        %v2299 = vadd.f32 %v2298, %v2235
        %v2300 = vadd.f32 %v2299, %v2236
        %v2301 = vadd.f32 %v2300, %v2237
        %v2302 = vadd.f32 %v2301, %v2238
        %v2303 = vadd.f32 %v2302, %v2239
        %v2304 = vadd.f32 %v2303, %v2240
        %v2305 = vadd.f32 %v2304, %v2241
        %v2306 = vadd.f32 %v2305, %v2242
        %v2307 = vadd.f32 %v2306, %v2243
        %v2308 = vadd.f32 %v2307, %v2244
        %v2309 = vadd.f32 %v2308, %v2245
        %v2310 = vadd.f32 %v2309, %v2246
        %v2311 = vadd.f32 %v2310, %v2247
        %v2312 = vadd.f32 %v2311, %v2248
        %v2313 = vadd.f32 %v2312, %v2249
        %v2314 = vadd.f32 %v2313, %v2250
        %v2315 = vadd.f32 %v2314, %v2251
        %v2316 = vadd.f32 %v2315, %v2252
        %v2317 = vadd.f32 %v2316, %v2253
        %v2318 = vadd.f32 %v2317, %v2254
        %v2319 = vadd.f32 %v2318, %v2255
        %v2320 = vadd.f32 %v2319, %v2256
        %v2321 = vadd.f32 %v2320, %v2257
        %v2322 = vadd.f32 %v2321, %v2258
        %v2323 = vadd.f32 %v2322, %v2259
        %v2324 = vadd.f32 %v2323, %v2260
        %v2325 = vadd.f32 %v2324, %v2261
        %v2326 = vadd.f32 %v2325, %v2262
        %v2327 = vrot.slane %v2326, 4
        %v2328 = vadd.f32 %v2326, %v2327
        %v2329 = vrot.slane %v2328, 2
        %v2330 = vadd.f32 %v2328, %v2329
        %v2331 = vrot.slane %v2330, 1
        %v2332 = vadd.f32 %v2330, %v2331
        %v2333 = vadd.f32 %v2295, %v2332
        %2334 = vst [vmem:[%s3] sm:$0x1] %v2333
        %v2335 = vld [vmem:[%s3 + $0x1] sm:$0x1]
        %v2336 = vmul.f32 %v2231, %v2231
        %v2337 = vmul.f32 %v2232, %v2232
        %v2338 = vmul.f32 %v2233, %v2233
        %v2339 = vmul.f32 %v2234, %v2234
        %v2340 = vmul.f32 %v2235, %v2235
        %v2341 = vmul.f32 %v2236, %v2236
        %v2342 = vmul.f32 %v2237, %v2237
        %v2343 = vmul.f32 %v2238, %v2238
        %v2344 = vmul.f32 %v2239, %v2239
        %v2345 = vmul.f32 %v2240, %v2240
        %v2346 = vmul.f32 %v2241, %v2241
        %v2347 = vmul.f32 %v2242, %v2242
        %v2348 = vmul.f32 %v2243, %v2243
        %v2349 = vmul.f32 %v2244, %v2244
        %v2350 = vmul.f32 %v2245, %v2245
        %v2351 = vmul.f32 %v2246, %v2246
        %v2352 = vmul.f32 %v2247, %v2247
        %v2353 = vmul.f32 %v2248, %v2248
        %v2354 = vmul.f32 %v2249, %v2249
        %v2355 = vmul.f32 %v2250, %v2250
        %v2356 = vmul.f32 %v2251, %v2251
        %v2357 = vmul.f32 %v2252, %v2252
        %v2358 = vmul.f32 %v2253, %v2253
        %v2359 = vmul.f32 %v2254, %v2254
        %v2360 = vmul.f32 %v2255, %v2255
        %v2361 = vmul.f32 %v2256, %v2256
        %v2362 = vmul.f32 %v2257, %v2257
        %v2363 = vmul.f32 %v2258, %v2258
        %v2364 = vmul.f32 %v2259, %v2259
        %v2365 = vmul.f32 %v2260, %v2260
        %v2366 = vmul.f32 %v2261, %v2261
        %v2367 = vmul.f32 %v2262, %v2262
        %v2368 = vadd.f32 %v2336, %v2337
        %v2369 = vadd.f32 %v2368, %v2338
        %v2370 = vadd.f32 %v2369, %v2339
        %v2371 = vadd.f32 %v2370, %v2340
        %v2372 = vadd.f32 %v2371, %v2341
        %v2373 = vadd.f32 %v2372, %v2342
        %v2374 = vadd.f32 %v2373, %v2343
        %v2375 = vadd.f32 %v2374, %v2344
        %v2376 = vadd.f32 %v2375, %v2345
        %v2377 = vadd.f32 %v2376, %v2346
        %v2378 = vadd.f32 %v2377, %v2347
        %v2379 = vadd.f32 %v2378, %v2348
        %v2380 = vadd.f32 %v2379, %v2349
        %v2381 = vadd.f32 %v2380, %v2350
        %v2382 = vadd.f32 %v2381, %v2351
        %v2383 = vadd.f32 %v2382, %v2352
        %v2384 = vadd.f32 %v2383, %v2353
        %v2385 = vadd.f32 %v2384, %v2354
        %v2386 = vadd.f32 %v2385, %v2355
        %v2387 = vadd.f32 %v2386, %v2356
        %v2388 = vadd.f32 %v2387, %v2357
        %v2389 = vadd.f32 %v2388, %v2358
        %v2390 = vadd.f32 %v2389, %v2359
        %v2391 = vadd.f32 %v2390, %v2360
        %v2392 = vadd.f32 %v2391, %v2361
        %v2393 = vadd.f32 %v2392, %v2362
        %v2394 = vadd.f32 %v2393, %v2363
        %v2395 = vadd.f32 %v2394, %v2364
        %v2396 = vadd.f32 %v2395, %v2365
        %v2397 = vadd.f32 %v2396, %v2366
        %v2398 = vadd.f32 %v2397, %v2367
        %v2399 = vrot.slane %v2398, 4
        %v2400 = vadd.f32 %v2398, %v2399
        %v2401 = vrot.slane %v2400, 2
        %v2402 = vadd.f32 %v2400, %v2401
        %v2403 = vrot.slane %v2402, 1
        %v2404 = vadd.f32 %v2402, %v2403
        %v2405 = vadd.f32 %v2335, %v2404
        %2406 = vst [vmem:[%s3 + $0x1] sm:$0x1] %v2405
        %s2407 = smul.u32 32, %s15
        %p2408 = scmp.lt.s32.totalorder %s2407, 63
        %s2409 = scalar_select %p2408, %s2407, 63
        %s2410 = smul.addr %s2409, 8
        %s2411 = scalar_lea.vmem %s2, %s2410
        // Predicated region
        $region71: #{bottleneck_forward.7} parent=61 // pred_check
          %p2412 = pneg %p80
        $region72: #{bottleneck_forward.7} parent=61 // pred_check_branch
          %2414 = sbr.rel (%p2412) target = $region74
        $region73: #{bottleneck_forward.7} parent=61 // pred_region
          %s2415 = smul.u32 32, %s15
        $region74: #{bottleneck_forward.7} parent=61 // pred_fallthru
          _
        // Predicated region
        $region75: #{bottleneck_forward.7} parent=61 // pred_check
          %p2416 = pneg %p101
        $region76: #{bottleneck_forward.7} parent=61 // pred_check_branch
          %2418 = sbr.rel (%p2416) target = $region78
        $region77: #{bottleneck_forward.7} parent=61 // pred_region
          _
        $region78: #{bottleneck_forward.7} parent=61 // pred_fallthru
          _
        // Predicated region
        $region79: #{bottleneck_forward.7} parent=61 // pred_check
          %p2419 = pneg %p101
        $region80: #{bottleneck_forward.7} parent=61 // pred_check_branch
          %2421 = sbr.rel (%p2419) target = $region82
        $region81: #{bottleneck_forward.7} parent=61 // pred_region
          _
        $region82: #{bottleneck_forward.7} parent=61 // pred_fallthru
          _
      $region62: #{bottleneck_forward.7} parent=5 // pred_fallthru
        _
      %p2422 = scmp.le.s32.totalorder 2, %s10
      // Predicated region
      $region83: #{bottleneck_forward.7} parent=5 // pred_check
        %p2423 = pneg %p2422
      $region84: #{bottleneck_forward.7} parent=5 // pred_check_branch
        %2425 = sbr.rel (%p2423) target = $region86
      $region85: #{bottleneck_forward.7} parent=5 // pred_region
        %s2426 = ssub.s32 %s10, 2
        // Predicated region
        $region87: #{bottleneck_forward.7} parent=85 // pred_check
          %p2427 = pneg %p86
        $region88: #{bottleneck_forward.7} parent=85 // pred_check_branch
          %2429 = sbr.rel (%p2427) target = $region90
        $region89: #{bottleneck_forward.7} parent=85 // pred_region
          %s2430 = smul.u32 32, %s16
          %p2431 = scmp.lt.s32.totalorder %s2430, 63
          %s2432 = scalar_select %p2431, %s2430, 63
          %s2433 = smul.addr %s2432, 8
          %s2434 = scalar_lea.vmem %s2, %s2433
        $region90: #{bottleneck_forward.7} parent=85 // pred_fallthru
          _
      $region86: #{bottleneck_forward.7} parent=5 // pred_fallthru
        _
    $region6: #{bottleneck_forward.7} parent=1 // loop_footer
      %s14 = sadd.s32 1, %s10
    $region7: #{bottleneck_forward.7} parent=1 // loop_footer_branch
      %9 = sbr.rel target = $region3
    $region8: #{bottleneck_forward.7} parent=1 // loop_exit
      _

</llo_original>
